<compile_context>
chip_gen: v6e
topology: v6e:2x2x1
jax: 0.10.0
libtpu: 0.0.40
codegen_flags: <defaults>
</compile_context>

<pallas_src>
import functools
import numpy as np
import jax
import jax.numpy as jnp
from jax.experimental import pallas as pl
from jax.experimental.pallas import tpu as pltpu

MIN_K = 2                      # min conv kernel height
MAX_K = 7                      # max conv kernel height (== number of taps)
OUT_CH = 50                    # out channels per conv branch
N_CONVS = MAX_K - MIN_K + 1    # 6 branches
N_FEAT = OUT_CH * N_CONVS      # 300 output features


def _round_up(x, m):
    return (x + m - 1) // m * m


# ----------------------------------------------------------------------------
# Pallas kernel: fused 7-tap conv-as-matmul + bias + ReLU + masked max-pool.
# ----------------------------------------------------------------------------
def _sent_encoder_kernel(x_ref, w_ref, b_ref, m_ref, o_ref, *, l_out):
    # x_ref: (Bt, L_pad, D_pad)   compute dtype (bf16)
    # w_ref: (MAX_K, D_pad, C_pad) compute dtype (bf16), zero-padded per branch
    # b_ref: (1, C_pad)           f32
    # m_ref: (l_out, C_pad)       f32 validity mask (1.0 valid / 0.0 invalid)
    # o_ref: (Bt, C_pad)          f32
    bt, _, d_pad = x_ref.shape
    c_pad = o_ref.shape[-1]

    x = x_ref[...]
    acc = None
    for i in range(MAX_K):                       # static 7-tap unroll
        slab = x[:, i:i + l_out, :].reshape(bt * l_out, d_pad)
        y = jnp.dot(slab, w_ref[i], preferred_element_type=jnp.float32)
        acc = y if acc is None else acc + y      # (Bt*l_out, C_pad) f32

    s = jnp.maximum(acc + b_ref[...], 0.0)                        # bias + ReLU
    s = s.reshape(bt, l_out, c_pad) * m_ref[...][None]            # mask invalid rows
    o_ref[...] = jnp.max(s, axis=1)                               # max-pool over time


def sent_encoder_pallas(x, w_all, bias, mask, *, batch_tile,
                        vmem_limit_bytes=48 * 1024 * 1024):
    """x: (N_pad, L_pad, D_pad); w_all: (7, D_pad, C_pad); bias: (1, C_pad);
    mask: (l_out, C_pad).  N_pad must be a multiple of batch_tile."""
    n_pad, l_pad, d_pad = x.shape
    n_taps, _, c_pad = w_all.shape
    l_out = mask.shape[0]
    assert n_pad % batch_tile == 0
    grid = (n_pad // batch_tile,)

    kernel = functools.partial(_sent_encoder_kernel, l_out=l_out)
    return pl.pallas_call(
        kernel,
        out_shape=jax.ShapeDtypeStruct((n_pad, c_pad), jnp.float32),
        grid=grid,
        in_specs=[
            pl.BlockSpec((batch_tile, l_pad, d_pad), lambda i: (i, 0, 0)),
            pl.BlockSpec((n_taps, d_pad, c_pad), lambda i: (0, 0, 0)),
            pl.BlockSpec((1, c_pad), lambda i: (0, 0)),
            pl.BlockSpec((l_out, c_pad), lambda i: (0, 0)),
        ],
        out_specs=pl.BlockSpec((batch_tile, c_pad), lambda i: (i, 0)),
        compiler_params=pltpu.CompilerParams(
            dimension_semantics=("parallel",),        # shard batch across TCs
            vmem_limit_bytes=vmem_limit_bytes),
    )(x, w_all, bias, mask)


# ----------------------------------------------------------------------------
# Plain-JAX glue: parameter init, embedding lookups, padding, mask building.
# ----------------------------------------------------------------------------
def get_sinusoid_encoding_table(n_position, d_hid, padding_idx=None):
    position = np.arange(n_position, dtype=np.float64)[:, None]
    hid = np.arange(d_hid, dtype=np.float64)[None, :]
    angle = position / np.power(10000.0, 2.0 * (np.floor(hid / 2.0)) / d_hid)
    table = angle.copy()
    table[:, 0::2] = np.sin(angle[:, 0::2])
    table[:, 1::2] = np.cos(angle[:, 1::2])
    if padding_idx is not None:
        table[padding_idx] = 0.0
    return jnp.asarray(table, dtype=jnp.float32)


def init_params(key, vocab_size, emb_dim, sent_max_len):
    keys = jax.random.split(key, 1 + 2 * N_CONVS)
    embed_table = jax.random.normal(keys[0], (vocab_size, emb_dim), jnp.float32)
    embed_table = embed_table.at[0].set(0.0)        # nn.Embedding(padding_idx=0)
    pos_table = get_sinusoid_encoding_table(sent_max_len + 1, emb_dim,
                                            padding_idx=0)

    d_pad = _round_up(emb_dim, 128)                 # K multiple of 128
    c_pad = _round_up(N_FEAT, 128)                  # 384 lanes (lane-dense out)
    w_all = np.zeros((MAX_K, d_pad, c_pad), np.float32)
    bias = np.zeros((1, c_pad), np.float32)

    gain = np.sqrt(6.0)   # matches reference: init.xavier_normal_(w, gain=sqrt(6))
    for idx, h in enumerate(range(MIN_K, MAX_K + 1)):
        fan_in = 1 * h * emb_dim
        fan_out = OUT_CH * h * emb_dim
        std = gain * np.sqrt(2.0 / (fan_in + fan_out))          # xavier_normal_
        w = std * jax.random.normal(keys[1 + 2 * idx],
                                    (OUT_CH, 1, h, emb_dim), jnp.float32)
        bound = 1.0 / np.sqrt(fan_in)                           # Conv2d bias default
        b = jax.random.uniform(keys[2 + 2 * idx], (OUT_CH,), jnp.float32,
                               -bound, bound)
        w_np = np.asarray(w)
        for i in range(h):                                      # tap i of branch idx
            w_all[i, :emb_dim, idx * OUT_CH:(idx + 1) * OUT_CH] = w_np[:, 0, i, :].T
        bias[0, idx * OUT_CH:(idx + 1) * OUT_CH] = np.asarray(b)

    return embed_table, pos_table, jnp.asarray(w_all), jnp.asarray(bias)


def _make_time_mask(seq_len, l_out, c_pad):
    t = np.arange(l_out)[:, None]
    branch = np.arange(c_pad)[None, :] // OUT_CH
    h = branch + MIN_K
    valid = (t < (seq_len - h + 1)) & (branch < N_CONVS)
    return jnp.asarray(valid.astype(np.float32))


def sent_encoder_forward(tokens, embed_table, pos_table, w_all, bias,
                         sent_max_len, compute_dtype=jnp.bfloat16):
    n_batch, seq_len = tokens.shape
    assert seq_len == sent_max_len
    emb_dim = embed_table.shape[1]
    _, d_pad, c_pad = w_all.shape

    sent_len = jnp.sum((tokens != 0).astype(jnp.int32), axis=1)       # (N,)
    emb = jnp.take(embed_table, tokens, axis=0)                       # (N, L, D)
    # TODO(synk): the reference forward builds ragged (L-1)-length position
    # lists (it drops the `+1` of the original HSG code), which cannot be
    # stacked nor added to the (N, L, D) embeddings; we implement the intended
    # fixed-length semantics: pos[t] = t+1 if t < sent_len else 0 (pad idx 0).
    t = jnp.arange(seq_len)
    pos_ids = jnp.where(t[None, :] < sent_len[:, None], t[None, :] + 1, 0)
    pos_emb = jnp.take(pos_table, pos_ids, axis=0)                    # (N, L, D)
    x = emb + pos_emb                        # f32 add in XLA (fuses with gathers)

    # Geometry: common (padded) conv-output length and time padding for taps.
    l_out = _round_up(seq_len - MIN_K + 1, 8)
    l_pad = l_out + 8                        # room for tap offsets 0..6

    # Batch tile sized against a VMEM budget (portable to v7x's 64 MiB VMEM).
    x_bytes = np.dtype(compute_dtype).itemsize
    per_row = (2 * l_pad * d_pad * x_bytes        # double-buffered input tile
               + 2 * c_pad * 4                    # double-buffered output tile
               + 2 * l_out * c_pad * 4)           # f32 accumulator + live temp
    budget = 24 * 1024 * 1024
    bt = max(8, min(512, (budget // per_row) // 8 * 8))
    bt = min(bt, _round_up(n_batch, 8))
    n_pad = _round_up(n_batch, bt)

    x = jnp.pad(x, ((0, n_pad - n_batch),
                    (0, l_pad - seq_len),
                    (0, d_pad - emb_dim))).astype(compute_dtype)
    mask = _make_time_mask(seq_len, l_out, c_pad)

    out = sent_encoder_pallas(x, w_all.astype(compute_dtype), bias, mask,
                              batch_tile=bt)
    return out[:n_batch, :N_FEAT]


if __name__ == "__main__":
    VOCAB = 20
    EMB_DIM = 32          # hps.word_emb_dim
    SENT_MAX_LEN = 16     # hps.sent_max_len
    BATCH = 2

    key = jax.random.PRNGKey(0)
    pkey, tkey = jax.random.split(key)
    embed_table, pos_table, w_all, bias = init_params(
        pkey, VOCAB, EMB_DIM, SENT_MAX_LEN)

    # deterministic token ids with trailing padding (id 0)
    tokens = jax.random.randint(tkey, (BATCH, SENT_MAX_LEN), 1, VOCAB,
                                dtype=jnp.int32)
    tokens = tokens.at[0, 12:].set(0)
    tokens = tokens.at[1, 9:].set(0)

    out = sent_encoder_forward(tokens, embed_table, pos_table, w_all, bias,
                               SENT_MAX_LEN)
    out = jax.block_until_ready(out)
    assert out.shape == (BATCH, N_FEAT)
    assert bool(jnp.all(jnp.isfinite(out)))
    print("KERNEL_OK")
</pallas_src>

<mosaic_0001>
module attributes {stable_mosaic.version = 11 : i64} {
  func.func @_sent_encoder_kernel(%arg0: i32, %arg1: memref<8x24x128xbf16, #tpu.memory_space<vmem>>, %arg2: memref<7x128x384xbf16, #tpu.memory_space<vmem>>, %arg3: memref<1x384xf32, #tpu.memory_space<vmem>>, %arg4: memref<16x384xf32, #tpu.memory_space<vmem>>, %arg5: memref<8x384xf32, #tpu.memory_space<vmem>>) attributes {dimension_semantics = [#tpu.dimension_semantics<parallel>], iteration_bounds = array<i64: 1>, scalar_prefetch = 0 : i64, scratch_operands = 0 : i64, tpu.core_type = #tpu.core_type<tc>, window_params = [{transform_indices = @transform_0, window_bounds = array<i64: 8, 24, 128>}, {pipeline_mode = #tpu.pipeline_mode<synchronous>, transform_indices = @transform_1, window_bounds = array<i64: 7, 128, 384>}, {pipeline_mode = #tpu.pipeline_mode<synchronous>, transform_indices = @transform_2, window_bounds = array<i64: 1, 384>}, {pipeline_mode = #tpu.pipeline_mode<synchronous>, transform_indices = @transform_3, window_bounds = array<i64: 16, 384>}, {transform_indices = @transform_4, window_bounds = array<i64: 8, 384>}]} {
    %c0 = arith.constant 0 : index
    %c0_0 = arith.constant 0 : index
    %c0_1 = arith.constant 0 : index
    %0 = vector.load %arg1[%c0, %c0_0, %c0_1] : memref<8x24x128xbf16, #tpu.memory_space<vmem>>, vector<8x24x128xbf16>
    %1 = vector.extract_strided_slice %0 {offsets = [0, 0, 0], sizes = [8, 16, 128], strides = [1, 1, 1]} : vector<8x24x128xbf16> to vector<8x16x128xbf16>
    %2 = vector.shape_cast %1 : vector<8x16x128xbf16> to vector<128x128xbf16>
    %c0_2 = arith.constant 0 : index
    %c0_3 = arith.constant 0 : index
    %c0_4 = arith.constant 0 : index
    %3 = vector.load %arg2[%c0_2, %c0_3, %c0_4] : memref<7x128x384xbf16, #tpu.memory_space<vmem>>, vector<1x128x384xbf16>
    %4 = vector.shape_cast %3 : vector<1x128x384xbf16> to vector<128x384xbf16>
    %cst = arith.constant dense<0.000000e+00> : vector<128x384xf32>
    %5 = tpu.matmul %2, %4, %cst {dimension_numbers = #tpu.dot_dimension_numbers<[1], [0], [0], [1], [0, 0, 1, 1], [], []>} : vector<128x128xbf16>, vector<128x384xbf16>, vector<128x384xf32> -> vector<128x384xf32>
    %6 = vector.extract_strided_slice %0 {offsets = [0, 1, 0], sizes = [8, 16, 128], strides = [1, 1, 1]} : vector<8x24x128xbf16> to vector<8x16x128xbf16>
    %7 = vector.shape_cast %6 : vector<8x16x128xbf16> to vector<128x128xbf16>
    %c1 = arith.constant 1 : index
    %c0_5 = arith.constant 0 : index
    %c0_6 = arith.constant 0 : index
    %8 = vector.load %arg2[%c1, %c0_5, %c0_6] : memref<7x128x384xbf16, #tpu.memory_space<vmem>>, vector<1x128x384xbf16>
    %9 = vector.shape_cast %8 : vector<1x128x384xbf16> to vector<128x384xbf16>
    %cst_7 = arith.constant dense<0.000000e+00> : vector<128x384xf32>
    %10 = tpu.matmul %7, %9, %cst_7 {dimension_numbers = #tpu.dot_dimension_numbers<[1], [0], [0], [1], [0, 0, 1, 1], [], []>} : vector<128x128xbf16>, vector<128x384xbf16>, vector<128x384xf32> -> vector<128x384xf32>
    %11 = arith.addf %5, %10 : vector<128x384xf32>
    %12 = vector.extract_strided_slice %0 {offsets = [0, 2, 0], sizes = [8, 16, 128], strides = [1, 1, 1]} : vector<8x24x128xbf16> to vector<8x16x128xbf16>
    %13 = vector.shape_cast %12 : vector<8x16x128xbf16> to vector<128x128xbf16>
    %c2 = arith.constant 2 : index
    %c0_8 = arith.constant 0 : index
    %c0_9 = arith.constant 0 : index
    %14 = vector.load %arg2[%c2, %c0_8, %c0_9] : memref<7x128x384xbf16, #tpu.memory_space<vmem>>, vector<1x128x384xbf16>
    %15 = vector.shape_cast %14 : vector<1x128x384xbf16> to vector<128x384xbf16>
    %cst_10 = arith.constant dense<0.000000e+00> : vector<128x384xf32>
    %16 = tpu.matmul %13, %15, %cst_10 {dimension_numbers = #tpu.dot_dimension_numbers<[1], [0], [0], [1], [0, 0, 1, 1], [], []>} : vector<128x128xbf16>, vector<128x384xbf16>, vector<128x384xf32> -> vector<128x384xf32>
    %17 = arith.addf %11, %16 : vector<128x384xf32>
    %18 = vector.extract_strided_slice %0 {offsets = [0, 3, 0], sizes = [8, 16, 128], strides = [1, 1, 1]} : vector<8x24x128xbf16> to vector<8x16x128xbf16>
    %19 = vector.shape_cast %18 : vector<8x16x128xbf16> to vector<128x128xbf16>
    %c3 = arith.constant 3 : index
    %c0_11 = arith.constant 0 : index
    %c0_12 = arith.constant 0 : index
    %20 = vector.load %arg2[%c3, %c0_11, %c0_12] : memref<7x128x384xbf16, #tpu.memory_space<vmem>>, vector<1x128x384xbf16>
    %21 = vector.shape_cast %20 : vector<1x128x384xbf16> to vector<128x384xbf16>
    %cst_13 = arith.constant dense<0.000000e+00> : vector<128x384xf32>
    %22 = tpu.matmul %19, %21, %cst_13 {dimension_numbers = #tpu.dot_dimension_numbers<[1], [0], [0], [1], [0, 0, 1, 1], [], []>} : vector<128x128xbf16>, vector<128x384xbf16>, vector<128x384xf32> -> vector<128x384xf32>
    %23 = arith.addf %17, %22 : vector<128x384xf32>
    %24 = vector.extract_strided_slice %0 {offsets = [0, 4, 0], sizes = [8, 16, 128], strides = [1, 1, 1]} : vector<8x24x128xbf16> to vector<8x16x128xbf16>
    %25 = vector.shape_cast %24 : vector<8x16x128xbf16> to vector<128x128xbf16>
    %c4 = arith.constant 4 : index
    %c0_14 = arith.constant 0 : index
    %c0_15 = arith.constant 0 : index
    %26 = vector.load %arg2[%c4, %c0_14, %c0_15] : memref<7x128x384xbf16, #tpu.memory_space<vmem>>, vector<1x128x384xbf16>
    %27 = vector.shape_cast %26 : vector<1x128x384xbf16> to vector<128x384xbf16>
    %cst_16 = arith.constant dense<0.000000e+00> : vector<128x384xf32>
    %28 = tpu.matmul %25, %27, %cst_16 {dimension_numbers = #tpu.dot_dimension_numbers<[1], [0], [0], [1], [0, 0, 1, 1], [], []>} : vector<128x128xbf16>, vector<128x384xbf16>, vector<128x384xf32> -> vector<128x384xf32>
    %29 = arith.addf %23, %28 : vector<128x384xf32>
    %30 = vector.extract_strided_slice %0 {offsets = [0, 5, 0], sizes = [8, 16, 128], strides = [1, 1, 1]} : vector<8x24x128xbf16> to vector<8x16x128xbf16>
    %31 = vector.shape_cast %30 : vector<8x16x128xbf16> to vector<128x128xbf16>
    %c5 = arith.constant 5 : index
    %c0_17 = arith.constant 0 : index
    %c0_18 = arith.constant 0 : index
    %32 = vector.load %arg2[%c5, %c0_17, %c0_18] : memref<7x128x384xbf16, #tpu.memory_space<vmem>>, vector<1x128x384xbf16>
    %33 = vector.shape_cast %32 : vector<1x128x384xbf16> to vector<128x384xbf16>
    %cst_19 = arith.constant dense<0.000000e+00> : vector<128x384xf32>
    %34 = tpu.matmul %31, %33, %cst_19 {dimension_numbers = #tpu.dot_dimension_numbers<[1], [0], [0], [1], [0, 0, 1, 1], [], []>} : vector<128x128xbf16>, vector<128x384xbf16>, vector<128x384xf32> -> vector<128x384xf32>
    %35 = arith.addf %29, %34 : vector<128x384xf32>
    %36 = vector.extract_strided_slice %0 {offsets = [0, 6, 0], sizes = [8, 16, 128], strides = [1, 1, 1]} : vector<8x24x128xbf16> to vector<8x16x128xbf16>
    %37 = vector.shape_cast %36 : vector<8x16x128xbf16> to vector<128x128xbf16>
    %c6 = arith.constant 6 : index
    %c0_20 = arith.constant 0 : index
    %c0_21 = arith.constant 0 : index
    %38 = vector.load %arg2[%c6, %c0_20, %c0_21] : memref<7x128x384xbf16, #tpu.memory_space<vmem>>, vector<1x128x384xbf16>
    %39 = vector.shape_cast %38 : vector<1x128x384xbf16> to vector<128x384xbf16>
    %cst_22 = arith.constant dense<0.000000e+00> : vector<128x384xf32>
    %40 = tpu.matmul %37, %39, %cst_22 {dimension_numbers = #tpu.dot_dimension_numbers<[1], [0], [0], [1], [0, 0, 1, 1], [], []>} : vector<128x128xbf16>, vector<128x384xbf16>, vector<128x384xf32> -> vector<128x384xf32>
    %41 = arith.addf %35, %40 : vector<128x384xf32>
    %c0_23 = arith.constant 0 : index
    %c0_24 = arith.constant 0 : index
    %42 = vector.load %arg3[%c0_23, %c0_24] : memref<1x384xf32, #tpu.memory_space<vmem>>, vector<1x384xf32>
    %43 = vector.broadcast %42 : vector<1x384xf32> to vector<128x384xf32>
    %44 = arith.addf %41, %43 : vector<128x384xf32>
    %cst_25 = arith.constant 0.000000e+00 : f32
    %45 = vector.broadcast %cst_25 : f32 to vector<128x384xf32>
    %46 = arith.maximumf %44, %45 : vector<128x384xf32>
    %47 = vector.shape_cast %46 : vector<128x384xf32> to vector<8x16x384xf32>
    %c0_26 = arith.constant 0 : index
    %c0_27 = arith.constant 0 : index
    %48 = vector.load %arg4[%c0_26, %c0_27] : memref<16x384xf32, #tpu.memory_space<vmem>>, vector<16x384xf32>
    %49 = vector.shape_cast %48 : vector<16x384xf32> to vector<1x16x384xf32>
    %50 = vector.broadcast %49 : vector<1x16x384xf32> to vector<8x16x384xf32>
    %51 = arith.mulf %47, %50 : vector<8x16x384xf32>
    %cst_28 = arith.constant dense<0xFF800000> : vector<8x384xf32>
    %52 = vector.multi_reduction <maximumf>, %51, %cst_28 [1] : vector<8x16x384xf32> to vector<8x384xf32>
    %c0_29 = arith.constant 0 : index
    %c0_30 = arith.constant 0 : index
    %53 = vector.load %arg5[%c0_29, %c0_30] : memref<8x384xf32, #tpu.memory_space<vmem>>, vector<8x384xf32>
    tpu.vector_store %arg5[%c0_29, %c0_30], %52 {strides = array<i32>} : memref<8x384xf32, #tpu.memory_space<vmem>>, vector<8x384xf32>,
    return
  }
  func.func @transform_0(%arg0: i32) -> (i32, i32, i32) {
    %c0_i32 = arith.constant 0 : i32
    %c0_i32_0 = arith.constant 0 : i32
    %c0_i32_1 = arith.constant 0 : i32
    return %arg0, %c0_i32, %c0_i32_0 : i32, i32, i32
  }
  func.func @transform_1(%arg0: i32) -> (i32, i32, i32) {
    %c0_i32 = arith.constant 0 : i32
    %c0_i32_0 = arith.constant 0 : i32
    %c0_i32_1 = arith.constant 0 : i32
    %c0_i32_2 = arith.constant 0 : i32
    return %c0_i32, %c0_i32_0, %c0_i32_1 : i32, i32, i32
  }
  func.func @transform_2(%arg0: i32) -> (i32, i32) {
    %c0_i32 = arith.constant 0 : i32
    %c0_i32_0 = arith.constant 0 : i32
    %c0_i32_1 = arith.constant 0 : i32
    return %c0_i32, %c0_i32_0 : i32, i32
  }
  func.func @transform_3(%arg0: i32) -> (i32, i32) {
    %c0_i32 = arith.constant 0 : i32
    %c0_i32_0 = arith.constant 0 : i32
    %c0_i32_1 = arith.constant 0 : i32
    return %c0_i32, %c0_i32_0 : i32, i32
  }
  func.func @transform_4(%arg0: i32) -> (i32, i32) {
    %c0_i32 = arith.constant 0 : i32
    %c0_i32_0 = arith.constant 0 : i32
    return %arg0, %c0_i32 : i32, i32
  }
}

</mosaic_0001>

<llo_original>
// kernel: tpu_custom_call.1
$region0: #{tpu_custom_call.1}
  #allocation0 [shape = 'u32[]', space=smem, size = 0x4, offset = 0x4, fixed_abs, tag = 'smem constant byte address 0x4 - core index']
  #allocation1 [shape = 'u32[144,128]{1,0:T(1,128)}', space=vmem, size = 0x12000, scoped, tag = 'internal scratch']
  %s0 = inlined_call_operand.hbm [shape: bf16[8,24,128], index: 0, kind: input, shape index: {}]
  %s1 = inlined_call_operand.hbm [shape: bf16[7,128,384], index: 1, kind: input, shape index: {}]
  %s2 = inlined_call_operand.vmem [shape: f32[1,384], index: 2, kind: input, shape index: {}]
  %s3 = inlined_call_operand.hbm [shape: f32[16,384], index: 3, kind: input, shape index: {}]
  %s4 = inlined_call_operand.hbm [shape: f32[8,384], index: 4, kind: output, shape index: {}]
  %s5 = sld [smem:[#allocation0]]
  $region38: #{tpu_custom_call.1} parent=0
    _
  %s7 = ssub.s32 1, %s5
  %s8 = scalar_select 0, %s7, %s5
  $region1: #{tpu_custom_call.1} parent=0
    #allocation2 [shape = 'u8[49152]{0}', space=vmem, size = 0xc000, scoped, tag = 'input window, operand 0, single buffered']
    #allocation3 [shape = 's32[1]{0}', space=sflag, size = 0x4, scoped, tag = 'scoped memory for tpu_custom_call.1']
    #allocation4 [shape = 's32[1]{0}', space=sflag, size = 0x4, scoped, tag = 'scoped memory for tpu_custom_call.1']
    #allocation5 [shape = 'u8[688128]{0}', space=vmem, size = 0xa8000, scoped, tag = 'input window, operand 1, single buffered']
    #allocation6 [shape = 's32[1]{0}', space=sflag, size = 0x4, scoped, tag = 'scoped memory for tpu_custom_call.1']
    #allocation7 [shape = 'u8[24576]{0}', space=vmem, size = 0x6000, scoped, tag = 'input window, operand 3, single buffered']
    #allocation8 [shape = 'u8[12288]{0}', space=vmem, size = 0x3000, scoped, tag = 'output window, operand 0, single buffered']
    %9 = vsyncpa [#allocation3], 0
    %10 = vsyncpa [#allocation6], 0
    %11 = vsyncpa [#allocation4], 0
    // Predicated region
    $region2: #{tpu_custom_call.1} parent=1 // pred_check
      _
    $region3: #{tpu_custom_call.1} parent=1 // pred_check_branch
      %13 = sbr.rel (0) target = $region5
    $region4: #{tpu_custom_call.1} parent=1 // pred_region
      %s15 = ssub.s32 1536, 1536
      %16 = vsyncadd [#allocation3], %s15
      %s17 = sshll.u32 [#allocation2], 4
      %s18 = int_to_ptr.vmem [resolvable:$true] %s17
      %23 = dma.hbm_to_vmem [thread:$0]  %s0, 1536, %s18, [#allocation3], 64, 64, 4
    $region5: #{tpu_custom_call.1} parent=1 // pred_fallthru
      _
    // Predicated region
    $region6: #{tpu_custom_call.1} parent=1 // pred_check
      _
    $region7: #{tpu_custom_call.1} parent=1 // pred_check_branch
      %25 = sbr.rel (0) target = $region9
    $region8: #{tpu_custom_call.1} parent=1 // pred_region
      %s27 = ssub.s32 21504, 21504
      %28 = vsyncadd [#allocation6], %s27
      %s29 = sshll.u32 [#allocation5], 4
      %s30 = int_to_ptr.vmem [resolvable:$true] %s29
      %35 = dma.hbm_to_vmem [thread:$0]  %s1, 21504, %s30, [#allocation6], 192, 192, 12
    $region9: #{tpu_custom_call.1} parent=1 // pred_fallthru
      _
    // Predicated region
    $region10: #{tpu_custom_call.1} parent=1 // pred_check
      _
    $region11: #{tpu_custom_call.1} parent=1 // pred_check_branch
      %37 = sbr.rel (0) target = $region13
    $region12: #{tpu_custom_call.1} parent=1 // pred_region
      _
    $region13: #{tpu_custom_call.1} parent=1 // pred_fallthru
      _
    // Predicated region
    $region14: #{tpu_custom_call.1} parent=1 // pred_check
      _
    $region15: #{tpu_custom_call.1} parent=1 // pred_check_branch
      %39 = sbr.rel (0) target = $region17
    $region16: #{tpu_custom_call.1} parent=1 // pred_region
      %s41 = ssub.s32 768, 768
      %42 = vsyncadd [#allocation6], %s41
      %s43 = sshll.u32 [#allocation7], 4
      %s44 = int_to_ptr.vmem [resolvable:$true] %s43
      %49 = dma.hbm_to_vmem [thread:$0]  %s3, 768, %s44, [#allocation6], 384, 384, 24
    $region17: #{tpu_custom_call.1} parent=1 // pred_fallthru
      _
    // Predicated region
    $region18: #{tpu_custom_call.1} parent=1 // pred_check
      _
    $region19: #{tpu_custom_call.1} parent=1 // pred_check_branch
      %51 = sbr.rel (0) target = $region21
    $region20: #{tpu_custom_call.1} parent=1 // pred_region
      %52 = dma.done [#allocation3], 1536
    $region21: #{tpu_custom_call.1} parent=1 // pred_fallthru
      _
    // Predicated region
    $region22: #{tpu_custom_call.1} parent=1 // pred_check
      _
    $region23: #{tpu_custom_call.1} parent=1 // pred_check_branch
      %54 = sbr.rel (0) target = $region25
    $region24: #{tpu_custom_call.1} parent=1 // pred_region
      %55 = dma.done [#allocation6], 21504
    $region25: #{tpu_custom_call.1} parent=1 // pred_fallthru
      _
    // Predicated region
    $region26: #{tpu_custom_call.1} parent=1 // pred_check
      _
    $region27: #{tpu_custom_call.1} parent=1 // pred_check_branch
      %57 = sbr.rel (0) target = $region29
    $region28: #{tpu_custom_call.1} parent=1 // pred_region
      %58 = dma.done [#allocation6], 768
    $region29: #{tpu_custom_call.1} parent=1 // pred_fallthru
      _
    %v60 = vld [vmem:[#allocation2] sm:$0xf]
    %v61 = vld [vmem:[#allocation2 + $0x4] sm:$0xf]
    %v62 = vld [vmem:[#allocation2 + $0x8] sm:$0xf]
    %v63 = vld [vmem:[#allocation2 + $0xc] sm:$0xf]
    %v64 = vld [vmem:[#allocation2 + $0x10] sm:$0xf]
    %v65 = vld [vmem:[#allocation2 + $0x14] sm:$0xf]
    %v66 = vld [vmem:[#allocation2 + $0x18] sm:$0xf]
    %v67 = vld [vmem:[#allocation2 + $0x1c] sm:$0xf]
    %v68 = vld [vmem:[#allocation2 + $0x20] sm:$0xf]
    %v69 = vld [vmem:[#allocation2 + $0x24] sm:$0xf]
    %v70 = vld [vmem:[#allocation2 + $0x28] sm:$0xf]
    %v71 = vld [vmem:[#allocation2 + $0x2c] sm:$0xf]
    %v72 = vld [vmem:[#allocation2 + $0x30] sm:$0xf]
    %v73 = vld [vmem:[#allocation2 + $0x34] sm:$0xf]
    %v74 = vld [vmem:[#allocation2 + $0x38] sm:$0xf]
    %v75 = vld [vmem:[#allocation2 + $0x3c] sm:$0xf]
    %v76 = vld [vmem:[#allocation2 + $0x40] sm:$0xf]
    %v77 = vld [vmem:[#allocation2 + $0x44] sm:$0xf]
    %v78 = vld [vmem:[#allocation2 + $0x48] sm:$0xf]
    %v79 = vld [vmem:[#allocation2 + $0x4c] sm:$0xf]
    %v80 = vld [vmem:[#allocation2 + $0x50] sm:$0xf]
    %v81 = vld [vmem:[#allocation2 + $0x54] sm:$0xf]
    %v82 = vld [vmem:[#allocation2 + $0x58] sm:$0xf]
    %v83 = vld [vmem:[#allocation2 + $0x5c] sm:$0xf]
    %v84 = vld [vmem:[#allocation5] sm:$0xff]
    %v85 = vld [vmem:[#allocation5 + $0x8] sm:$0xf]
    %v86 = vld [vmem:[#allocation5 + $0xc] sm:$0xff]
    %v87 = vld [vmem:[#allocation5 + $0x14] sm:$0xf]
    %v88 = vld [vmem:[#allocation5 + $0x18] sm:$0xff]
    %v89 = vld [vmem:[#allocation5 + $0x20] sm:$0xf]
    %v90 = vld [vmem:[#allocation5 + $0x24] sm:$0xff]
    %v91 = vld [vmem:[#allocation5 + $0x2c] sm:$0xf]
    %v92 = vld [vmem:[#allocation5 + $0x30] sm:$0xff]
    %v93 = vld [vmem:[#allocation5 + $0x38] sm:$0xf]
    %v94 = vld [vmem:[#allocation5 + $0x3c] sm:$0xff]
    %v95 = vld [vmem:[#allocation5 + $0x44] sm:$0xf]
    %v96 = vld [vmem:[#allocation5 + $0x48] sm:$0xff]
    %v97 = vld [vmem:[#allocation5 + $0x50] sm:$0xf]
    %v98 = vld [vmem:[#allocation5 + $0x54] sm:$0xff]
    %v99 = vld [vmem:[#allocation5 + $0x5c] sm:$0xf]
    %v100 = vld [vmem:[#allocation5 + $0x60] sm:$0xff]
    %v101 = vld [vmem:[#allocation5 + $0x68] sm:$0xf]
    %v102 = vld [vmem:[#allocation5 + $0x6c] sm:$0xff]
    %v103 = vld [vmem:[#allocation5 + $0x74] sm:$0xf]
    %v104 = vld [vmem:[#allocation5 + $0x78] sm:$0xff]
    %v105 = vld [vmem:[#allocation5 + $0x80] sm:$0xf]
    %v106 = vld [vmem:[#allocation5 + $0x84] sm:$0xff]
    %v107 = vld [vmem:[#allocation5 + $0x8c] sm:$0xf]
    %v108 = vld [vmem:[#allocation5 + $0x90] sm:$0xff]
    %v109 = vld [vmem:[#allocation5 + $0x98] sm:$0xf]
    %v110 = vld [vmem:[#allocation5 + $0x9c] sm:$0xff]
    %v111 = vld [vmem:[#allocation5 + $0xa4] sm:$0xf]
    %v112 = vld [vmem:[#allocation5 + $0xa8] sm:$0xff]
    %v113 = vld [vmem:[#allocation5 + $0xb0] sm:$0xf]
    %v114 = vld [vmem:[#allocation5 + $0xb4] sm:$0xff]
    %v115 = vld [vmem:[#allocation5 + $0xbc] sm:$0xf]
    %vm116 = vsmask.f32 3328
    %vm117 = vsmask.f32 7440
    %vm118 = vmor %vm116, %vm117
    %v120 = vshrl.u32 %v60, 16
    %v122 = vrot.slane %v120, 4
    %v123 = vshll.u32 %v60, 16
    %v125 = vrot.slane %v123, 5
    %v126 = vor.u32 %v122, %v125
    %v127 = vrot.slane %v126, 4
    %v129 = vshll.u32 %v61, 16
    %v131 = vrot.slane %v129, 5
    %v132 = vsel %vm118, %v127, %v131
    %v133 = vshrl.u32 %v61, 16
    %v135 = vrot.slane %v133, 4
    %v136 = vor.u32 %v135, %v131
    %v137 = vrot.slane %v136, 4
    %v139 = vshll.u32 %v62, 16
    %v141 = vrot.slane %v139, 5
    %v142 = vsel %vm118, %v137, %v141
    %v144 = vshrl.u32 %v63, 16
    %v146 = vrot.slane %v144, 4
    %v147 = vshll.u32 %v63, 16
    %v149 = vrot.slane %v147, 5
    %v150 = vor.u32 %v146, %v149
    %v151 = vrot.slane %v150, 4
    %v153 = vshll.u32 %v64, 16
    %v155 = vrot.slane %v153, 5
    %v156 = vsel %vm118, %v151, %v155
    %v157 = vshrl.u32 %v64, 16
    %v159 = vrot.slane %v157, 4
    %v160 = vor.u32 %v159, %v155
    %v161 = vrot.slane %v160, 4
    %v163 = vshll.u32 %v65, 16
    %v165 = vrot.slane %v163, 5
    %v166 = vsel %vm118, %v161, %v165
    %v168 = vshrl.u32 %v66, 16
    %v170 = vrot.slane %v168, 4
    %v171 = vshll.u32 %v66, 16
    %v173 = vrot.slane %v171, 5
    %v174 = vor.u32 %v170, %v173
    %v175 = vrot.slane %v174, 4
    %v177 = vshll.u32 %v67, 16
    %v179 = vrot.slane %v177, 5
    %v180 = vsel %vm118, %v175, %v179
    %v181 = vshrl.u32 %v67, 16
    %v183 = vrot.slane %v181, 4
    %v184 = vor.u32 %v183, %v179
    %v185 = vrot.slane %v184, 4
    %v187 = vshll.u32 %v68, 16
    %v189 = vrot.slane %v187, 5
    %v190 = vsel %vm118, %v185, %v189
    %v192 = vshrl.u32 %v69, 16
    %v194 = vrot.slane %v192, 4
    %v195 = vshll.u32 %v69, 16
    %v197 = vrot.slane %v195, 5
    %v198 = vor.u32 %v194, %v197
    %v199 = vrot.slane %v198, 4
    %v201 = vshll.u32 %v70, 16
    %v203 = vrot.slane %v201, 5
    %v204 = vsel %vm118, %v199, %v203
    %v205 = vshrl.u32 %v70, 16
    %v207 = vrot.slane %v205, 4
    %v208 = vor.u32 %v207, %v203
    %v209 = vrot.slane %v208, 4
    %v211 = vshll.u32 %v71, 16
    %v213 = vrot.slane %v211, 5
    %v214 = vsel %vm118, %v209, %v213
    %v216 = vshrl.u32 %v72, 16
    %v218 = vrot.slane %v216, 4
    %v219 = vshll.u32 %v72, 16
    %v221 = vrot.slane %v219, 5
    %v222 = vor.u32 %v218, %v221
    %v223 = vrot.slane %v222, 4
    %v225 = vshll.u32 %v73, 16
    %v227 = vrot.slane %v225, 5
    %v228 = vsel %vm118, %v223, %v227
    %v229 = vshrl.u32 %v73, 16
    %v231 = vrot.slane %v229, 4
    %v232 = vor.u32 %v231, %v227
    %v233 = vrot.slane %v232, 4
    %v235 = vshll.u32 %v74, 16
    %v237 = vrot.slane %v235, 5
    %v238 = vsel %vm118, %v233, %v237
    %v240 = vshrl.u32 %v75, 16
    %v242 = vrot.slane %v240, 4
    %v243 = vshll.u32 %v75, 16
    %v245 = vrot.slane %v243, 5
    %v246 = vor.u32 %v242, %v245
    %v247 = vrot.slane %v246, 4
    %v249 = vshll.u32 %v76, 16
    %v251 = vrot.slane %v249, 5
    %v252 = vsel %vm118, %v247, %v251
    %v253 = vshrl.u32 %v76, 16
    %v255 = vrot.slane %v253, 4
    %v256 = vor.u32 %v255, %v251
    %v257 = vrot.slane %v256, 4
    %v259 = vshll.u32 %v77, 16
    %v261 = vrot.slane %v259, 5
    %v262 = vsel %vm118, %v257, %v261
    %v264 = vshrl.u32 %v78, 16
    %v266 = vrot.slane %v264, 4
    %v267 = vshll.u32 %v78, 16
    %v269 = vrot.slane %v267, 5
    %v270 = vor.u32 %v266, %v269
    %v271 = vrot.slane %v270, 4
    %v273 = vshll.u32 %v79, 16
    %v275 = vrot.slane %v273, 5
    %v276 = vsel %vm118, %v271, %v275
    %v277 = vshrl.u32 %v79, 16
    %v279 = vrot.slane %v277, 4
    %v280 = vor.u32 %v279, %v275
    %v281 = vrot.slane %v280, 4
    %v283 = vshll.u32 %v80, 16
    %v285 = vrot.slane %v283, 5
    %v286 = vsel %vm118, %v281, %v285
    %v288 = vshrl.u32 %v81, 16
    %v290 = vrot.slane %v288, 4
    %v291 = vshll.u32 %v81, 16
    %v293 = vrot.slane %v291, 5
    %v294 = vor.u32 %v290, %v293
    %v295 = vrot.slane %v294, 4
    %v297 = vshll.u32 %v82, 16
    %v299 = vrot.slane %v297, 5
    %v300 = vsel %vm118, %v295, %v299
    %v301 = vshrl.u32 %v82, 16
    %v303 = vrot.slane %v301, 4
    %v304 = vor.u32 %v303, %v299
    %v305 = vrot.slane %v304, 4
    %v307 = vshll.u32 %v83, 16
    %v309 = vrot.slane %v307, 5
    %v310 = vsel %vm118, %v305, %v309
    %s311 = scalar_lea.vmem [#allocation5], 192
    %v312 = vld [vmem:[%s311] sm:$0xff]
    %v313 = vld [vmem:[%s311 + $0x8] sm:$0xf]
    %v314 = vld [vmem:[%s311 + $0xc] sm:$0xff]
    %v315 = vld [vmem:[%s311 + $0x14] sm:$0xf]
    %v316 = vld [vmem:[%s311 + $0x18] sm:$0xff]
    %v317 = vld [vmem:[%s311 + $0x20] sm:$0xf]
    %v318 = vld [vmem:[%s311 + $0x24] sm:$0xff]
    %v319 = vld [vmem:[%s311 + $0x2c] sm:$0xf]
    %v320 = vld [vmem:[%s311 + $0x30] sm:$0xff]
    %v321 = vld [vmem:[%s311 + $0x38] sm:$0xf]
    %v322 = vld [vmem:[%s311 + $0x3c] sm:$0xff]
    %v323 = vld [vmem:[%s311 + $0x44] sm:$0xf]
    %v324 = vld [vmem:[%s311 + $0x48] sm:$0xff]
    %v325 = vld [vmem:[%s311 + $0x50] sm:$0xf]
    %v326 = vld [vmem:[%s311 + $0x54] sm:$0xff]
    %v327 = vld [vmem:[%s311 + $0x5c] sm:$0xf]
    %v328 = vld [vmem:[%s311 + $0x60] sm:$0xff]
    %v329 = vld [vmem:[%s311 + $0x68] sm:$0xf]
    %v330 = vld [vmem:[%s311 + $0x6c] sm:$0xff]
    %v331 = vld [vmem:[%s311 + $0x74] sm:$0xf]
    %v332 = vld [vmem:[%s311 + $0x78] sm:$0xff]
    %v333 = vld [vmem:[%s311 + $0x80] sm:$0xf]
    %v334 = vld [vmem:[%s311 + $0x84] sm:$0xff]
    %v335 = vld [vmem:[%s311 + $0x8c] sm:$0xf]
    %v336 = vld [vmem:[%s311 + $0x90] sm:$0xff]
    %v337 = vld [vmem:[%s311 + $0x98] sm:$0xf]
    %v338 = vld [vmem:[%s311 + $0x9c] sm:$0xff]
    %v339 = vld [vmem:[%s311 + $0xa4] sm:$0xf]
    %v340 = vld [vmem:[%s311 + $0xa8] sm:$0xff]
    %v341 = vld [vmem:[%s311 + $0xb0] sm:$0xf]
    %v342 = vld [vmem:[%s311 + $0xb4] sm:$0xff]
    %v343 = vld [vmem:[%s311 + $0xbc] sm:$0xf]
    %v344 = vunpack.c.l.b16 %v132
    %v345 = vunpack.c.l.b16 %v142
    %v346 = vunpack.c.l.b16 %v156
    %v347 = vunpack.c.l.b16 %v166
    %v348 = vunpack.c.l.b16 %v180
    %v349 = vunpack.c.l.b16 %v190
    %v350 = vunpack.c.l.b16 %v204
    %v351 = vunpack.c.l.b16 %v214
    %v352 = vunpack.c.l.b16 %v228
    %v353 = vunpack.c.l.b16 %v238
    %v354 = vunpack.c.l.b16 %v252
    %v355 = vunpack.c.l.b16 %v262
    %v356 = vunpack.c.l.b16 %v276
    %v357 = vunpack.c.l.b16 %v286
    %v358 = vunpack.c.l.b16 %v300
    %v359 = vunpack.c.l.b16 %v310
    %v360 = vpack.c.b16 %v345, %v344
    %v361 = vpack.c.b16 %v347, %v346
    %v362 = vpack.c.b16 %v349, %v348
    %v363 = vpack.c.b16 %v351, %v350
    %v364 = vpack.c.b16 %v353, %v352
    %v365 = vpack.c.b16 %v355, %v354
    %v366 = vpack.c.b16 %v357, %v356
    %v367 = vpack.c.b16 %v359, %v358
    %v408 = vunpack.c.l.b16 %v312
    %v409 = vunpack.c.h.b16 %v312
    %v410 = vunpack.c.l.b16 %v313
    %v411 = vunpack.c.l.b16 %v314
    %v412 = vunpack.c.h.b16 %v314
    %v413 = vunpack.c.l.b16 %v315
    %v414 = vunpack.c.l.b16 %v316
    %v415 = vunpack.c.h.b16 %v316
    %v416 = vunpack.c.l.b16 %v317
    %v417 = vunpack.c.l.b16 %v318
    %v418 = vunpack.c.h.b16 %v318
    %v419 = vunpack.c.l.b16 %v319
    %v420 = vunpack.c.l.b16 %v320
    %v421 = vunpack.c.h.b16 %v320
    %v422 = vunpack.c.l.b16 %v321
    %v423 = vunpack.c.l.b16 %v322
    %v424 = vunpack.c.h.b16 %v322
    %v425 = vunpack.c.l.b16 %v323
    %v426 = vunpack.c.l.b16 %v324
    %v427 = vunpack.c.h.b16 %v324
    %v428 = vunpack.c.l.b16 %v325
    %v429 = vunpack.c.l.b16 %v326
    %v430 = vunpack.c.h.b16 %v326
    %v431 = vunpack.c.l.b16 %v327
    %v432 = vunpack.c.l.b16 %v328
    %v433 = vunpack.c.h.b16 %v328
    %v434 = vunpack.c.l.b16 %v329
    %v435 = vunpack.c.l.b16 %v330
    %v436 = vunpack.c.h.b16 %v330
    %v437 = vunpack.c.l.b16 %v331
    %v438 = vunpack.c.l.b16 %v332
    %v439 = vunpack.c.h.b16 %v332
    %v440 = vunpack.c.l.b16 %v333
    %v441 = vunpack.c.l.b16 %v334
    %v442 = vunpack.c.h.b16 %v334
    %v443 = vunpack.c.l.b16 %v335
    %v444 = vunpack.c.l.b16 %v336
    %v445 = vunpack.c.h.b16 %v336
    %v446 = vunpack.c.l.b16 %v337
    %v447 = vunpack.c.l.b16 %v338
    %v448 = vunpack.c.h.b16 %v338
    %v449 = vunpack.c.l.b16 %v339
    %v450 = vunpack.c.l.b16 %v340
    %v451 = vunpack.c.h.b16 %v340
    %v452 = vunpack.c.l.b16 %v341
    %v453 = vunpack.c.l.b16 %v342
    %v454 = vunpack.c.h.b16 %v342
    %v455 = vunpack.c.l.b16 %v343
    %v456 = vpack.c.b16 %v411, %v408
    %v457 = vpack.c.b16 %v412, %v409
    %v458 = vpack.c.b16 %v413, %v410
    %v459 = vpack.c.b16 %v417, %v414
    %v460 = vpack.c.b16 %v418, %v415
    %v461 = vpack.c.b16 %v419, %v416
    %v462 = vpack.c.b16 %v423, %v420
    %v463 = vpack.c.b16 %v424, %v421
    %v464 = vpack.c.b16 %v425, %v422
    %v465 = vpack.c.b16 %v429, %v426
    %v466 = vpack.c.b16 %v430, %v427
    %v467 = vpack.c.b16 %v431, %v428
    %v468 = vpack.c.b16 %v435, %v432
    %v469 = vpack.c.b16 %v436, %v433
    %v470 = vpack.c.b16 %v437, %v434
    %v471 = vpack.c.b16 %v441, %v438
    %v472 = vpack.c.b16 %v442, %v439
    %v473 = vpack.c.b16 %v443, %v440
    %v474 = vpack.c.b16 %v447, %v444
    %v475 = vpack.c.b16 %v448, %v445
    %v476 = vpack.c.b16 %v449, %v446
    %v477 = vpack.c.b16 %v453, %v450
    %v478 = vpack.c.b16 %v454, %v451
    %v479 = vpack.c.b16 %v455, %v452
    %504 = vmatprep.subr.bf16.mxu0 %v478
    %505 = vmatpush1.bf16.msra.mxu0 %v477
    %506 = vmatprep.subr.bf16.mxu0 %v475
    %507 = vmatpush1.bf16.msra.mxu0 %v474
    %508 = vmatprep.subr.bf16.mxu0 %v472
    %509 = vmatpush1.bf16.msra.mxu0 %v471
    %510 = vmatprep.subr.bf16.mxu0 %v469
    %511 = vmatpush1.bf16.msra.mxu0 %v468
    %512 = vmatprep.subr.bf16.mxu0 %v466
    %513 = vmatpush1.bf16.msra.mxu0 %v465
    %514 = vmatprep.subr.bf16.mxu0 %v463
    %515 = vmatpush1.bf16.msra.mxu0 %v462
    %516 = vmatprep.subr.bf16.mxu0 %v460
    %517 = vmatpush1.bf16.msra.mxu0 %v459
    %518 = vmatprep.subr.bf16.mxu0 %v457
    %519 = vmatpush1.bf16.msra.mxu0 %v456
    %520 = vmatprep.subr.bf16.mxu0 0
    %521 = vmatpush2.bf16.msra.mxu0 0
    %522 = vmatprep.subr.bf16.mxu0 0
    %523 = vmatpush2.bf16.msra.mxu0 0
    %524 = vmatprep.subr.bf16.mxu0 0
    %525 = vmatpush2.bf16.msra.mxu0 0
    %526 = vmatprep.subr.bf16.mxu0 0
    %527 = vmatpush2.bf16.msra.mxu0 0
    %528 = vmatprep.subr.bf16.mxu0 0
    %529 = vmatpush2.bf16.msra.mxu0 0
    %530 = vmatprep.subr.bf16.mxu0 0
    %531 = vmatpush2.bf16.msra.mxu0 0
    %532 = vmatprep.subr.bf16.mxu0 0
    %533 = vmatpush2.bf16.msra.mxu0 0
    %534 = vmatprep.subr.bf16.mxu0 0
    %535 = vmatpush2.bf16.msra.mxu0 0
    %536 = vmatprep.mubr.bf16.mxu0 0
    %537 = vmatmul.mubr.bf16.gmra.mxu0 %v360
    %v538 = vpop.f32.mrf.mxu0
    %v539 = vadd.f32 0.0, %v538
    %v540 = vpop.f32.mrf.mxu0
    %v541 = vadd.f32 0.0, %v540
    %v542 = vpop.f32.mrf.mxu0
    %v543 = vadd.f32 0.0, %v542
    %v544 = vpop.f32.mrf.mxu0
    %v545 = vadd.f32 0.0, %v544
    %546 = vmatprep.mubr.bf16.mxu0 0
    %547 = vmatmul.mubr.bf16.gmra.mxu0 %v361
    %v548 = vpop.f32.mrf.mxu0
    %v549 = vadd.f32 0.0, %v548
    %v550 = vpop.f32.mrf.mxu0
    %v551 = vadd.f32 0.0, %v550
    %v552 = vpop.f32.mrf.mxu0
    %v553 = vadd.f32 0.0, %v552
    %v554 = vpop.f32.mrf.mxu0
    %v555 = vadd.f32 0.0, %v554
    %556 = vmatprep.mubr.bf16.mxu0 0
    %557 = vmatmul.mubr.bf16.gmra.mxu0 %v362
    %v558 = vpop.f32.mrf.mxu0
    %v559 = vadd.f32 0.0, %v558
    %v560 = vpop.f32.mrf.mxu0
    %v561 = vadd.f32 0.0, %v560
    %v562 = vpop.f32.mrf.mxu0
    %v563 = vadd.f32 0.0, %v562
    %v564 = vpop.f32.mrf.mxu0
    %v565 = vadd.f32 0.0, %v564
    %566 = vmatprep.mubr.bf16.mxu0 0
    %567 = vmatmul.mubr.bf16.gmra.mxu0 %v363
    %v568 = vpop.f32.mrf.mxu0
    %v569 = vadd.f32 0.0, %v568
    %v570 = vpop.f32.mrf.mxu0
    %v571 = vadd.f32 0.0, %v570
    %v572 = vpop.f32.mrf.mxu0
    %v573 = vadd.f32 0.0, %v572
    %v574 = vpop.f32.mrf.mxu0
    %v575 = vadd.f32 0.0, %v574
    %576 = vmatprep.mubr.bf16.mxu0 0
    %577 = vmatmul.mubr.bf16.gmra.mxu0 %v364
    %v578 = vpop.f32.mrf.mxu0
    %v579 = vadd.f32 0.0, %v578
    %v580 = vpop.f32.mrf.mxu0
    %v581 = vadd.f32 0.0, %v580
    %v582 = vpop.f32.mrf.mxu0
    %v583 = vadd.f32 0.0, %v582
    %v584 = vpop.f32.mrf.mxu0
    %v585 = vadd.f32 0.0, %v584
    %586 = vmatprep.mubr.bf16.mxu0 0
    %587 = vmatmul.mubr.bf16.gmra.mxu0 %v365
    %v588 = vpop.f32.mrf.mxu0
    %v589 = vadd.f32 0.0, %v588
    %v590 = vpop.f32.mrf.mxu0
    %v591 = vadd.f32 0.0, %v590
    %v592 = vpop.f32.mrf.mxu0
    %v593 = vadd.f32 0.0, %v592
    %v594 = vpop.f32.mrf.mxu0
    %v595 = vadd.f32 0.0, %v594
    %596 = vmatprep.mubr.bf16.mxu0 0
    %597 = vmatmul.mubr.bf16.gmra.mxu0 %v366
    %v598 = vpop.f32.mrf.mxu0
    %v599 = vadd.f32 0.0, %v598
    %v600 = vpop.f32.mrf.mxu0
    %v601 = vadd.f32 0.0, %v600
    %v602 = vpop.f32.mrf.mxu0
    %v603 = vadd.f32 0.0, %v602
    %v604 = vpop.f32.mrf.mxu0
    %v605 = vadd.f32 0.0, %v604
    %606 = vmatprep.mubr.bf16.mxu0 0
    %607 = vmatmul.mubr.bf16.gmra.mxu0 %v367
    %v608 = vpop.f32.mrf.mxu0
    %v609 = vadd.f32 0.0, %v608
    %v610 = vpop.f32.mrf.mxu0
    %v611 = vadd.f32 0.0, %v610
    %v612 = vpop.f32.mrf.mxu0
    %v613 = vadd.f32 0.0, %v612
    %v614 = vpop.f32.mrf.mxu0
    %v615 = vadd.f32 0.0, %v614
    %616 = vdwg.mxu0
    %617 = vmatprep.subr.bf16.mxu0 0
    %618 = vmatpush1.bf16.msra.mxu0 %v479
    %619 = vmatprep.subr.bf16.mxu0 0
    %620 = vmatpush1.bf16.msra.mxu0 %v476
    %621 = vmatprep.subr.bf16.mxu0 0
    %622 = vmatpush1.bf16.msra.mxu0 %v473
    %623 = vmatprep.subr.bf16.mxu0 0
    %624 = vmatpush1.bf16.msra.mxu0 %v470
    %625 = vmatprep.subr.bf16.mxu0 0
    %626 = vmatpush1.bf16.msra.mxu0 %v467
    %627 = vmatprep.subr.bf16.mxu0 0
    %628 = vmatpush1.bf16.msra.mxu0 %v464
    %629 = vmatprep.subr.bf16.mxu0 0
    %630 = vmatpush1.bf16.msra.mxu0 %v461
    %631 = vmatprep.subr.bf16.mxu0 0
    %632 = vmatpush1.bf16.msra.mxu0 %v458
    %633 = vmatprep.subr.bf16.mxu0 0
    %634 = vmatpush2.bf16.msra.mxu0 0
    %635 = vmatprep.subr.bf16.mxu0 0
    %636 = vmatpush2.bf16.msra.mxu0 0
    %637 = vmatprep.subr.bf16.mxu0 0
    %638 = vmatpush2.bf16.msra.mxu0 0
    %639 = vmatprep.subr.bf16.mxu0 0
    %640 = vmatpush2.bf16.msra.mxu0 0
    %641 = vmatprep.subr.bf16.mxu0 0
    %642 = vmatpush2.bf16.msra.mxu0 0
    %643 = vmatprep.subr.bf16.mxu0 0
    %644 = vmatpush2.bf16.msra.mxu0 0
    %645 = vmatprep.subr.bf16.mxu0 0
    %646 = vmatpush2.bf16.msra.mxu0 0
    %647 = vmatprep.subr.bf16.mxu0 0
    %648 = vmatpush2.bf16.msra.mxu0 0
    %649 = vmatprep.mubr.bf16.mxu0 0
    %650 = vmatmul.mubr.bf16.gmra.mxu0 %v360
    %v651 = vpop.f32.mrf.mxu0
    %v652 = vadd.f32 0.0, %v651
    %v653 = vpop.f32.mrf.mxu0
    %v654 = vpop.f32.mrf.mxu0
    %v655 = vadd.f32 0.0, %v654
    %v656 = vpop.f32.mrf.mxu0
    %657 = vmatprep.mubr.bf16.mxu0 0
    %658 = vmatmul.mubr.bf16.gmra.mxu0 %v361
    %v659 = vpop.f32.mrf.mxu0
    %v660 = vadd.f32 0.0, %v659
    %v661 = vpop.f32.mrf.mxu0
    %v662 = vpop.f32.mrf.mxu0
    %v663 = vadd.f32 0.0, %v662
    %v664 = vpop.f32.mrf.mxu0
    %665 = vmatprep.mubr.bf16.mxu0 0
    %666 = vmatmul.mubr.bf16.gmra.mxu0 %v362
    %v667 = vpop.f32.mrf.mxu0
    %v668 = vadd.f32 0.0, %v667
    %v669 = vpop.f32.mrf.mxu0
    %v670 = vpop.f32.mrf.mxu0
    %v671 = vadd.f32 0.0, %v670
    %v672 = vpop.f32.mrf.mxu0
    %673 = vmatprep.mubr.bf16.mxu0 0
    %674 = vmatmul.mubr.bf16.gmra.mxu0 %v363
    %v675 = vpop.f32.mrf.mxu0
    %v676 = vadd.f32 0.0, %v675
    %v677 = vpop.f32.mrf.mxu0
    %v678 = vpop.f32.mrf.mxu0
    %v679 = vadd.f32 0.0, %v678
    %v680 = vpop.f32.mrf.mxu0
    %681 = vmatprep.mubr.bf16.mxu0 0
    %682 = vmatmul.mubr.bf16.gmra.mxu0 %v364
    %v683 = vpop.f32.mrf.mxu0
    %v684 = vadd.f32 0.0, %v683
    %v685 = vpop.f32.mrf.mxu0
    %v686 = vpop.f32.mrf.mxu0
    %v687 = vadd.f32 0.0, %v686
    %v688 = vpop.f32.mrf.mxu0
    %689 = vmatprep.mubr.bf16.mxu0 0
    %690 = vmatmul.mubr.bf16.gmra.mxu0 %v365
    %v691 = vpop.f32.mrf.mxu0
    %v692 = vadd.f32 0.0, %v691
    %v693 = vpop.f32.mrf.mxu0
    %v694 = vpop.f32.mrf.mxu0
    %v695 = vadd.f32 0.0, %v694
    %v696 = vpop.f32.mrf.mxu0
    %697 = vmatprep.mubr.bf16.mxu0 0
    %698 = vmatmul.mubr.bf16.gmra.mxu0 %v366
    %v699 = vpop.f32.mrf.mxu0
    %v700 = vadd.f32 0.0, %v699
    %v701 = vpop.f32.mrf.mxu0
    %v702 = vpop.f32.mrf.mxu0
    %v703 = vadd.f32 0.0, %v702
    %v704 = vpop.f32.mrf.mxu0
    %705 = vmatprep.mubr.bf16.mxu0 0
    %706 = vmatmul.mubr.bf16.gmra.mxu0 %v367
    %v707 = vpop.f32.mrf.mxu0
    %v708 = vadd.f32 0.0, %v707
    %v709 = vpop.f32.mrf.mxu0
    %v710 = vpop.f32.mrf.mxu0
    %v711 = vadd.f32 0.0, %v710
    %v712 = vpop.f32.mrf.mxu0
    %713 = vdwg.mxu0
    %v730 = vunpack.c.l.b16 %v60
    %v731 = vunpack.c.l.b16 %v61
    %v732 = vunpack.c.l.b16 %v63
    %v733 = vunpack.c.l.b16 %v64
    %v734 = vunpack.c.l.b16 %v66
    %v735 = vunpack.c.l.b16 %v67
    %v736 = vunpack.c.l.b16 %v69
    %v737 = vunpack.c.l.b16 %v70
    %v738 = vunpack.c.l.b16 %v72
    %v739 = vunpack.c.l.b16 %v73
    %v740 = vunpack.c.l.b16 %v75
    %v741 = vunpack.c.l.b16 %v76
    %v742 = vunpack.c.l.b16 %v78
    %v743 = vunpack.c.l.b16 %v79
    %v744 = vunpack.c.l.b16 %v81
    %v745 = vunpack.c.l.b16 %v82
    %v746 = vpack.c.b16 %v731, %v730
    %v747 = vpack.c.b16 %v733, %v732
    %v748 = vpack.c.b16 %v735, %v734
    %v749 = vpack.c.b16 %v737, %v736
    %v750 = vpack.c.b16 %v739, %v738
    %v751 = vpack.c.b16 %v741, %v740
    %v752 = vpack.c.b16 %v743, %v742
    %v753 = vpack.c.b16 %v745, %v744
    %v794 = vunpack.c.l.b16 %v84
    %v795 = vunpack.c.h.b16 %v84
    %v796 = vunpack.c.l.b16 %v85
    %v797 = vunpack.c.l.b16 %v86
    %v798 = vunpack.c.h.b16 %v86
    %v799 = vunpack.c.l.b16 %v87
    %v800 = vunpack.c.l.b16 %v88
    %v801 = vunpack.c.h.b16 %v88
    %v802 = vunpack.c.l.b16 %v89
    %v803 = vunpack.c.l.b16 %v90
    %v804 = vunpack.c.h.b16 %v90
    %v805 = vunpack.c.l.b16 %v91
    %v806 = vunpack.c.l.b16 %v92
    %v807 = vunpack.c.h.b16 %v92
    %v808 = vunpack.c.l.b16 %v93
    %v809 = vunpack.c.l.b16 %v94
    %v810 = vunpack.c.h.b16 %v94
    %v811 = vunpack.c.l.b16 %v95
    %v812 = vunpack.c.l.b16 %v96
    %v813 = vunpack.c.h.b16 %v96
    %v814 = vunpack.c.l.b16 %v97
    %v815 = vunpack.c.l.b16 %v98
    %v816 = vunpack.c.h.b16 %v98
    %v817 = vunpack.c.l.b16 %v99
    %v818 = vunpack.c.l.b16 %v100
    %v819 = vunpack.c.h.b16 %v100
    %v820 = vunpack.c.l.b16 %v101
    %v821 = vunpack.c.l.b16 %v102
    %v822 = vunpack.c.h.b16 %v102
    %v823 = vunpack.c.l.b16 %v103
    %v824 = vunpack.c.l.b16 %v104
    %v825 = vunpack.c.h.b16 %v104
    %v826 = vunpack.c.l.b16 %v105
    %v827 = vunpack.c.l.b16 %v106
    %v828 = vunpack.c.h.b16 %v106
    %v829 = vunpack.c.l.b16 %v107
    %v830 = vunpack.c.l.b16 %v108
    %v831 = vunpack.c.h.b16 %v108
    %v832 = vunpack.c.l.b16 %v109
    %v833 = vunpack.c.l.b16 %v110
    %v834 = vunpack.c.h.b16 %v110
    %v835 = vunpack.c.l.b16 %v111
    %v836 = vunpack.c.l.b16 %v112
    %v837 = vunpack.c.h.b16 %v112
    %v838 = vunpack.c.l.b16 %v113
    %v839 = vunpack.c.l.b16 %v114
    %v840 = vunpack.c.h.b16 %v114
    %v841 = vunpack.c.l.b16 %v115
    %v842 = vpack.c.b16 %v797, %v794
    %v843 = vpack.c.b16 %v798, %v795
    %v844 = vpack.c.b16 %v799, %v796
    %v845 = vpack.c.b16 %v803, %v800
    %v846 = vpack.c.b16 %v804, %v801
    %v847 = vpack.c.b16 %v805, %v802
    %v848 = vpack.c.b16 %v809, %v806
    %v849 = vpack.c.b16 %v810, %v807
    %v850 = vpack.c.b16 %v811, %v808
    %v851 = vpack.c.b16 %v815, %v812
    %v852 = vpack.c.b16 %v816, %v813
    %v853 = vpack.c.b16 %v817, %v814
    %v854 = vpack.c.b16 %v821, %v818
    %v855 = vpack.c.b16 %v822, %v819
    %v856 = vpack.c.b16 %v823, %v820
    %v857 = vpack.c.b16 %v827, %v824
    %v858 = vpack.c.b16 %v828, %v825
    %v859 = vpack.c.b16 %v829, %v826
    %v860 = vpack.c.b16 %v833, %v830
    %v861 = vpack.c.b16 %v834, %v831
    %v862 = vpack.c.b16 %v835, %v832
    %v863 = vpack.c.b16 %v839, %v836
    %v864 = vpack.c.b16 %v840, %v837
    %v865 = vpack.c.b16 %v841, %v838
    %890 = vmatprep.subr.bf16.mxu0 %v864
    %891 = vmatpush1.bf16.msra.mxu0 %v863
    %892 = vmatprep.subr.bf16.mxu0 %v861
    %893 = vmatpush1.bf16.msra.mxu0 %v860
    %894 = vmatprep.subr.bf16.mxu0 %v858
    %895 = vmatpush1.bf16.msra.mxu0 %v857
    %896 = vmatprep.subr.bf16.mxu0 %v855
    %897 = vmatpush1.bf16.msra.mxu0 %v854
    %898 = vmatprep.subr.bf16.mxu0 %v852
    %899 = vmatpush1.bf16.msra.mxu0 %v851
    %900 = vmatprep.subr.bf16.mxu0 %v849
    %901 = vmatpush1.bf16.msra.mxu0 %v848
    %902 = vmatprep.subr.bf16.mxu0 %v846
    %903 = vmatpush1.bf16.msra.mxu0 %v845
    %904 = vmatprep.subr.bf16.mxu0 %v843
    %905 = vmatpush1.bf16.msra.mxu0 %v842
    %906 = vmatprep.subr.bf16.mxu0 0
    %907 = vmatpush2.bf16.msra.mxu0 0
    %908 = vmatprep.subr.bf16.mxu0 0
    %909 = vmatpush2.bf16.msra.mxu0 0
    %910 = vmatprep.subr.bf16.mxu0 0
    %911 = vmatpush2.bf16.msra.mxu0 0
    %912 = vmatprep.subr.bf16.mxu0 0
    %913 = vmatpush2.bf16.msra.mxu0 0
    %914 = vmatprep.subr.bf16.mxu0 0
    %915 = vmatpush2.bf16.msra.mxu0 0
    %916 = vmatprep.subr.bf16.mxu0 0
    %917 = vmatpush2.bf16.msra.mxu0 0
    %918 = vmatprep.subr.bf16.mxu0 0
    %919 = vmatpush2.bf16.msra.mxu0 0
    %920 = vmatprep.subr.bf16.mxu0 0
    %921 = vmatpush2.bf16.msra.mxu0 0
    %922 = vmatprep.mubr.bf16.mxu0 0
    %923 = vmatmul.mubr.bf16.gmra.mxu0 %v746
    %v924 = vpop.f32.mrf.mxu0
    %v925 = vadd.f32 %v539, %v924
    %v926 = vpop.f32.mrf.mxu0
    %v927 = vadd.f32 %v541, %v926
    %v928 = vpop.f32.mrf.mxu0
    %v929 = vadd.f32 %v543, %v928
    %v930 = vpop.f32.mrf.mxu0
    %v931 = vadd.f32 %v545, %v930
    %932 = vmatprep.mubr.bf16.mxu0 0
    %933 = vmatmul.mubr.bf16.gmra.mxu0 %v747
    %v934 = vpop.f32.mrf.mxu0
    %v935 = vadd.f32 %v549, %v934
    %v936 = vpop.f32.mrf.mxu0
    %v937 = vadd.f32 %v551, %v936
    %v938 = vpop.f32.mrf.mxu0
    %v939 = vadd.f32 %v553, %v938
    %v940 = vpop.f32.mrf.mxu0
    %v941 = vadd.f32 %v555, %v940
    %942 = vmatprep.mubr.bf16.mxu0 0
    %943 = vmatmul.mubr.bf16.gmra.mxu0 %v748
    %v944 = vpop.f32.mrf.mxu0
    %v945 = vadd.f32 %v559, %v944
    %v946 = vpop.f32.mrf.mxu0
    %v947 = vadd.f32 %v561, %v946
    %v948 = vpop.f32.mrf.mxu0
    %v949 = vadd.f32 %v563, %v948
    %v950 = vpop.f32.mrf.mxu0
    %v951 = vadd.f32 %v565, %v950
    %952 = vmatprep.mubr.bf16.mxu0 0
    %953 = vmatmul.mubr.bf16.gmra.mxu0 %v749
    %v954 = vpop.f32.mrf.mxu0
    %v955 = vadd.f32 %v569, %v954
    %v956 = vpop.f32.mrf.mxu0
    %v957 = vadd.f32 %v571, %v956
    %v958 = vpop.f32.mrf.mxu0
    %v959 = vadd.f32 %v573, %v958
    %v960 = vpop.f32.mrf.mxu0
    %v961 = vadd.f32 %v575, %v960
    %962 = vmatprep.mubr.bf16.mxu0 0
    %963 = vmatmul.mubr.bf16.gmra.mxu0 %v750
    %v964 = vpop.f32.mrf.mxu0
    %v965 = vadd.f32 %v579, %v964
    %v966 = vpop.f32.mrf.mxu0
    %v967 = vadd.f32 %v581, %v966
    %v968 = vpop.f32.mrf.mxu0
    %v969 = vadd.f32 %v583, %v968
    %v970 = vpop.f32.mrf.mxu0
    %v971 = vadd.f32 %v585, %v970
    %972 = vmatprep.mubr.bf16.mxu0 0
    %973 = vmatmul.mubr.bf16.gmra.mxu0 %v751
    %v974 = vpop.f32.mrf.mxu0
    %v975 = vadd.f32 %v589, %v974
    %v976 = vpop.f32.mrf.mxu0
    %v977 = vadd.f32 %v591, %v976
    %v978 = vpop.f32.mrf.mxu0
    %v979 = vadd.f32 %v593, %v978
    %v980 = vpop.f32.mrf.mxu0
    %v981 = vadd.f32 %v595, %v980
    %982 = vmatprep.mubr.bf16.mxu0 0
    %983 = vmatmul.mubr.bf16.gmra.mxu0 %v752
    %v984 = vpop.f32.mrf.mxu0
    %v985 = vadd.f32 %v599, %v984
    %v986 = vpop.f32.mrf.mxu0
    %v987 = vadd.f32 %v601, %v986
    %v988 = vpop.f32.mrf.mxu0
    %v989 = vadd.f32 %v603, %v988
    %v990 = vpop.f32.mrf.mxu0
    %v991 = vadd.f32 %v605, %v990
    %992 = vmatprep.mubr.bf16.mxu0 0
    %993 = vmatmul.mubr.bf16.gmra.mxu0 %v753
    %v994 = vpop.f32.mrf.mxu0
    %v995 = vadd.f32 %v609, %v994
    %v996 = vpop.f32.mrf.mxu0
    %v997 = vadd.f32 %v611, %v996
    %v998 = vpop.f32.mrf.mxu0
    %v999 = vadd.f32 %v613, %v998
    %v1000 = vpop.f32.mrf.mxu0
    %v1001 = vadd.f32 %v615, %v1000
    %1002 = vdwg.mxu0
    %1003 = vmatprep.subr.bf16.mxu0 0
    %1004 = vmatpush1.bf16.msra.mxu0 %v865
    %1005 = vmatprep.subr.bf16.mxu0 0
    %1006 = vmatpush1.bf16.msra.mxu0 %v862
    %1007 = vmatprep.subr.bf16.mxu0 0
    %1008 = vmatpush1.bf16.msra.mxu0 %v859
    %1009 = vmatprep.subr.bf16.mxu0 0
    %1010 = vmatpush1.bf16.msra.mxu0 %v856
    %1011 = vmatprep.subr.bf16.mxu0 0
    %1012 = vmatpush1.bf16.msra.mxu0 %v853
    %1013 = vmatprep.subr.bf16.mxu0 0
    %1014 = vmatpush1.bf16.msra.mxu0 %v850
    %1015 = vmatprep.subr.bf16.mxu0 0
    %1016 = vmatpush1.bf16.msra.mxu0 %v847
    %1017 = vmatprep.subr.bf16.mxu0 0
    %1018 = vmatpush1.bf16.msra.mxu0 %v844
    %1019 = vmatprep.subr.bf16.mxu0 0
    %1020 = vmatpush2.bf16.msra.mxu0 0
    %1021 = vmatprep.subr.bf16.mxu0 0
    %1022 = vmatpush2.bf16.msra.mxu0 0
    %1023 = vmatprep.subr.bf16.mxu0 0
    %1024 = vmatpush2.bf16.msra.mxu0 0
    %1025 = vmatprep.subr.bf16.mxu0 0
    %1026 = vmatpush2.bf16.msra.mxu0 0
    %1027 = vmatprep.subr.bf16.mxu0 0
    %1028 = vmatpush2.bf16.msra.mxu0 0
    %1029 = vmatprep.subr.bf16.mxu0 0
    %1030 = vmatpush2.bf16.msra.mxu0 0
    %1031 = vmatprep.subr.bf16.mxu0 0
    %1032 = vmatpush2.bf16.msra.mxu0 0
    %1033 = vmatprep.subr.bf16.mxu0 0
    %1034 = vmatpush2.bf16.msra.mxu0 0
    %1035 = vmatprep.mubr.bf16.mxu0 0
    %1036 = vmatmul.mubr.bf16.gmra.mxu0 %v746
    %v1037 = vpop.f32.mrf.mxu0
    %v1038 = vadd.f32 %v652, %v1037
    %v1039 = vpop.f32.mrf.mxu0
    %v1040 = vpop.f32.mrf.mxu0
    %v1041 = vadd.f32 %v655, %v1040
    %v1042 = vpop.f32.mrf.mxu0
    %1043 = vmatprep.mubr.bf16.mxu0 0
    %1044 = vmatmul.mubr.bf16.gmra.mxu0 %v747
    %v1045 = vpop.f32.mrf.mxu0
    %v1046 = vadd.f32 %v660, %v1045
    %v1047 = vpop.f32.mrf.mxu0
    %v1048 = vpop.f32.mrf.mxu0
    %v1049 = vadd.f32 %v663, %v1048
    %v1050 = vpop.f32.mrf.mxu0
    %1051 = vmatprep.mubr.bf16.mxu0 0
    %1052 = vmatmul.mubr.bf16.gmra.mxu0 %v748
    %v1053 = vpop.f32.mrf.mxu0
    %v1054 = vadd.f32 %v668, %v1053
    %v1055 = vpop.f32.mrf.mxu0
    %v1056 = vpop.f32.mrf.mxu0
    %v1057 = vadd.f32 %v671, %v1056
    %v1058 = vpop.f32.mrf.mxu0
    %1059 = vmatprep.mubr.bf16.mxu0 0
    %1060 = vmatmul.mubr.bf16.gmra.mxu0 %v749
    %v1061 = vpop.f32.mrf.mxu0
    %v1062 = vadd.f32 %v676, %v1061
    %v1063 = vpop.f32.mrf.mxu0
    %v1064 = vpop.f32.mrf.mxu0
    %v1065 = vadd.f32 %v679, %v1064
    %v1066 = vpop.f32.mrf.mxu0
    %1067 = vmatprep.mubr.bf16.mxu0 0
    %1068 = vmatmul.mubr.bf16.gmra.mxu0 %v750
    %v1069 = vpop.f32.mrf.mxu0
    %v1070 = vadd.f32 %v684, %v1069
    %v1071 = vpop.f32.mrf.mxu0
    %v1072 = vpop.f32.mrf.mxu0
    %v1073 = vadd.f32 %v687, %v1072
    %v1074 = vpop.f32.mrf.mxu0
    %1075 = vmatprep.mubr.bf16.mxu0 0
    %1076 = vmatmul.mubr.bf16.gmra.mxu0 %v751
    %v1077 = vpop.f32.mrf.mxu0
    %v1078 = vadd.f32 %v692, %v1077
    %v1079 = vpop.f32.mrf.mxu0
    %v1080 = vpop.f32.mrf.mxu0
    %v1081 = vadd.f32 %v695, %v1080
    %v1082 = vpop.f32.mrf.mxu0
    %1083 = vmatprep.mubr.bf16.mxu0 0
    %1084 = vmatmul.mubr.bf16.gmra.mxu0 %v752
    %v1085 = vpop.f32.mrf.mxu0
    %v1086 = vadd.f32 %v700, %v1085
    %v1087 = vpop.f32.mrf.mxu0
    %v1088 = vpop.f32.mrf.mxu0
    %v1089 = vadd.f32 %v703, %v1088
    %v1090 = vpop.f32.mrf.mxu0
    %1091 = vmatprep.mubr.bf16.mxu0 0
    %1092 = vmatmul.mubr.bf16.gmra.mxu0 %v753
    %v1093 = vpop.f32.mrf.mxu0
    %v1094 = vadd.f32 %v708, %v1093
    %v1095 = vpop.f32.mrf.mxu0
    %v1096 = vpop.f32.mrf.mxu0
    %v1097 = vadd.f32 %v711, %v1096
    %v1098 = vpop.f32.mrf.mxu0
    %1099 = vdwg.mxu0
    %vm1108 = vcmask 1042432
    %vm1109 = vcmask 1046532
    %vm1110 = vmor %vm1108, %vm1109
    %v1111 = vrot.slane %v60, 5
    %v1112 = vrot.slane %v1111, 4
    %v1113 = vrot.slane %v61, 5
    %v1114 = vsel %vm1110, %v1112, %v1113
    %v1115 = vrot.slane %v1113, 4
    %v1116 = vrot.slane %v62, 5
    %v1117 = vsel %vm1110, %v1115, %v1116
    %v1118 = vrot.slane %v63, 5
    %v1119 = vrot.slane %v1118, 4
    %v1120 = vrot.slane %v64, 5
    %v1121 = vsel %vm1110, %v1119, %v1120
    %v1122 = vrot.slane %v1120, 4
    %v1123 = vrot.slane %v65, 5
    %v1124 = vsel %vm1110, %v1122, %v1123
    %v1125 = vrot.slane %v66, 5
    %v1126 = vrot.slane %v1125, 4
    %v1127 = vrot.slane %v67, 5
    %v1128 = vsel %vm1110, %v1126, %v1127
    %v1129 = vrot.slane %v1127, 4
    %v1130 = vrot.slane %v68, 5
    %v1131 = vsel %vm1110, %v1129, %v1130
    %v1132 = vrot.slane %v69, 5
    %v1133 = vrot.slane %v1132, 4
    %v1134 = vrot.slane %v70, 5
    %v1135 = vsel %vm1110, %v1133, %v1134
    %v1136 = vrot.slane %v1134, 4
    %v1137 = vrot.slane %v71, 5
    %v1138 = vsel %vm1110, %v1136, %v1137
    %v1139 = vrot.slane %v72, 5
    %v1140 = vrot.slane %v1139, 4
    %v1141 = vrot.slane %v73, 5
    %v1142 = vsel %vm1110, %v1140, %v1141
    %v1143 = vrot.slane %v1141, 4
    %v1144 = vrot.slane %v74, 5
    %v1145 = vsel %vm1110, %v1143, %v1144
    %v1146 = vrot.slane %v75, 5
    %v1147 = vrot.slane %v1146, 4
    %v1148 = vrot.slane %v76, 5
    %v1149 = vsel %vm1110, %v1147, %v1148
    %v1150 = vrot.slane %v1148, 4
    %v1151 = vrot.slane %v77, 5
    %v1152 = vsel %vm1110, %v1150, %v1151
    %v1153 = vrot.slane %v78, 5
    %v1154 = vrot.slane %v1153, 4
    %v1155 = vrot.slane %v79, 5
    %v1156 = vsel %vm1110, %v1154, %v1155
    %v1157 = vrot.slane %v1155, 4
    %v1158 = vrot.slane %v80, 5
    %v1159 = vsel %vm1110, %v1157, %v1158
    %v1160 = vrot.slane %v81, 5
    %v1161 = vrot.slane %v1160, 4
    %v1162 = vrot.slane %v82, 5
    %v1163 = vsel %vm1110, %v1161, %v1162
    %v1164 = vrot.slane %v1162, 4
    %v1165 = vrot.slane %v83, 5
    %v1166 = vsel %vm1110, %v1164, %v1165
    %s1167 = scalar_lea.vmem [#allocation5], 384
    %v1168 = vld [vmem:[%s1167] sm:$0xff]
    %v1169 = vld [vmem:[%s1167 + $0x8] sm:$0xf]
    %v1170 = vld [vmem:[%s1167 + $0xc] sm:$0xff]
    %v1171 = vld [vmem:[%s1167 + $0x14] sm:$0xf]
    %v1172 = vld [vmem:[%s1167 + $0x18] sm:$0xff]
    %v1173 = vld [vmem:[%s1167 + $0x20] sm:$0xf]
    %v1174 = vld [vmem:[%s1167 + $0x24] sm:$0xff]
    %v1175 = vld [vmem:[%s1167 + $0x2c] sm:$0xf]
    %v1176 = vld [vmem:[%s1167 + $0x30] sm:$0xff]
    %v1177 = vld [vmem:[%s1167 + $0x38] sm:$0xf]
    %v1178 = vld [vmem:[%s1167 + $0x3c] sm:$0xff]
    %v1179 = vld [vmem:[%s1167 + $0x44] sm:$0xf]
    %v1180 = vld [vmem:[%s1167 + $0x48] sm:$0xff]
    %v1181 = vld [vmem:[%s1167 + $0x50] sm:$0xf]
    %v1182 = vld [vmem:[%s1167 + $0x54] sm:$0xff]
    %v1183 = vld [vmem:[%s1167 + $0x5c] sm:$0xf]
    %v1184 = vld [vmem:[%s1167 + $0x60] sm:$0xff]
    %v1185 = vld [vmem:[%s1167 + $0x68] sm:$0xf]
    %v1186 = vld [vmem:[%s1167 + $0x6c] sm:$0xff]
    %v1187 = vld [vmem:[%s1167 + $0x74] sm:$0xf]
    %v1188 = vld [vmem:[%s1167 + $0x78] sm:$0xff]
    %v1189 = vld [vmem:[%s1167 + $0x80] sm:$0xf]
    %v1190 = vld [vmem:[%s1167 + $0x84] sm:$0xff]
    %v1191 = vld [vmem:[%s1167 + $0x8c] sm:$0xf]
    %v1192 = vld [vmem:[%s1167 + $0x90] sm:$0xff]
    %v1193 = vld [vmem:[%s1167 + $0x98] sm:$0xf]
    %v1194 = vld [vmem:[%s1167 + $0x9c] sm:$0xff]
    %v1195 = vld [vmem:[%s1167 + $0xa4] sm:$0xf]
    %v1196 = vld [vmem:[%s1167 + $0xa8] sm:$0xff]
    %v1197 = vld [vmem:[%s1167 + $0xb0] sm:$0xf]
    %v1198 = vld [vmem:[%s1167 + $0xb4] sm:$0xff]
    %v1199 = vld [vmem:[%s1167 + $0xbc] sm:$0xf]
    %v1200 = vunpack.c.l.b16 %v1114
    %v1201 = vunpack.c.l.b16 %v1117
    %v1202 = vunpack.c.l.b16 %v1121
    %v1203 = vunpack.c.l.b16 %v1124
    %v1204 = vunpack.c.l.b16 %v1128
    %v1205 = vunpack.c.l.b16 %v1131
    %v1206 = vunpack.c.l.b16 %v1135
    %v1207 = vunpack.c.l.b16 %v1138
    %v1208 = vunpack.c.l.b16 %v1142
    %v1209 = vunpack.c.l.b16 %v1145
    %v1210 = vunpack.c.l.b16 %v1149
    %v1211 = vunpack.c.l.b16 %v1152
    %v1212 = vunpack.c.l.b16 %v1156
    %v1213 = vunpack.c.l.b16 %v1159
    %v1214 = vunpack.c.l.b16 %v1163
    %v1215 = vunpack.c.l.b16 %v1166
    %v1216 = vpack.c.b16 %v1201, %v1200
    %v1217 = vpack.c.b16 %v1203, %v1202
    %v1218 = vpack.c.b16 %v1205, %v1204
    %v1219 = vpack.c.b16 %v1207, %v1206
    %v1220 = vpack.c.b16 %v1209, %v1208
    %v1221 = vpack.c.b16 %v1211, %v1210
    %v1222 = vpack.c.b16 %v1213, %v1212
    %v1223 = vpack.c.b16 %v1215, %v1214
    %v1264 = vunpack.c.l.b16 %v1168
    %v1265 = vunpack.c.h.b16 %v1168
    %v1266 = vunpack.c.l.b16 %v1169
    %v1267 = vunpack.c.l.b16 %v1170
    %v1268 = vunpack.c.h.b16 %v1170
    %v1269 = vunpack.c.l.b16 %v1171
    %v1270 = vunpack.c.l.b16 %v1172
    %v1271 = vunpack.c.h.b16 %v1172
    %v1272 = vunpack.c.l.b16 %v1173
    %v1273 = vunpack.c.l.b16 %v1174
    %v1274 = vunpack.c.h.b16 %v1174
    %v1275 = vunpack.c.l.b16 %v1175
    %v1276 = vunpack.c.l.b16 %v1176
    %v1277 = vunpack.c.h.b16 %v1176
    %v1278 = vunpack.c.l.b16 %v1177
    %v1279 = vunpack.c.l.b16 %v1178
    %v1280 = vunpack.c.h.b16 %v1178
    %v1281 = vunpack.c.l.b16 %v1179
    %v1282 = vunpack.c.l.b16 %v1180
    %v1283 = vunpack.c.h.b16 %v1180
    %v1284 = vunpack.c.l.b16 %v1181
    %v1285 = vunpack.c.l.b16 %v1182
    %v1286 = vunpack.c.h.b16 %v1182
    %v1287 = vunpack.c.l.b16 %v1183
    %v1288 = vunpack.c.l.b16 %v1184
    %v1289 = vunpack.c.h.b16 %v1184
    %v1290 = vunpack.c.l.b16 %v1185
    %v1291 = vunpack.c.l.b16 %v1186
    %v1292 = vunpack.c.h.b16 %v1186
    %v1293 = vunpack.c.l.b16 %v1187
    %v1294 = vunpack.c.l.b16 %v1188
    %v1295 = vunpack.c.h.b16 %v1188
    %v1296 = vunpack.c.l.b16 %v1189
    %v1297 = vunpack.c.l.b16 %v1190
    %v1298 = vunpack.c.h.b16 %v1190
    %v1299 = vunpack.c.l.b16 %v1191
    %v1300 = vunpack.c.l.b16 %v1192
    %v1301 = vunpack.c.h.b16 %v1192
    %v1302 = vunpack.c.l.b16 %v1193
    %v1303 = vunpack.c.l.b16 %v1194
    %v1304 = vunpack.c.h.b16 %v1194
    %v1305 = vunpack.c.l.b16 %v1195
    %v1306 = vunpack.c.l.b16 %v1196
    %v1307 = vunpack.c.h.b16 %v1196
    %v1308 = vunpack.c.l.b16 %v1197
    %v1309 = vunpack.c.l.b16 %v1198
    %v1310 = vunpack.c.h.b16 %v1198
    %v1311 = vunpack.c.l.b16 %v1199
    %v1312 = vpack.c.b16 %v1267, %v1264
    %v1313 = vpack.c.b16 %v1268, %v1265
    %v1314 = vpack.c.b16 %v1269, %v1266
    %v1315 = vpack.c.b16 %v1273, %v1270
    %v1316 = vpack.c.b16 %v1274, %v1271
    %v1317 = vpack.c.b16 %v1275, %v1272
    %v1318 = vpack.c.b16 %v1279, %v1276
    %v1319 = vpack.c.b16 %v1280, %v1277
    %v1320 = vpack.c.b16 %v1281, %v1278
    %v1321 = vpack.c.b16 %v1285, %v1282
    %v1322 = vpack.c.b16 %v1286, %v1283
    %v1323 = vpack.c.b16 %v1287, %v1284
    %v1324 = vpack.c.b16 %v1291, %v1288
    %v1325 = vpack.c.b16 %v1292, %v1289
    %v1326 = vpack.c.b16 %v1293, %v1290
    %v1327 = vpack.c.b16 %v1297, %v1294
    %v1328 = vpack.c.b16 %v1298, %v1295
    %v1329 = vpack.c.b16 %v1299, %v1296
    %v1330 = vpack.c.b16 %v1303, %v1300
    %v1331 = vpack.c.b16 %v1304, %v1301
    %v1332 = vpack.c.b16 %v1305, %v1302
    %v1333 = vpack.c.b16 %v1309, %v1306
    %v1334 = vpack.c.b16 %v1310, %v1307
    %v1335 = vpack.c.b16 %v1311, %v1308
    %1360 = vmatprep.subr.bf16.mxu0 %v1334
    %1361 = vmatpush1.bf16.msra.mxu0 %v1333
    %1362 = vmatprep.subr.bf16.mxu0 %v1331
    %1363 = vmatpush1.bf16.msra.mxu0 %v1330
    %1364 = vmatprep.subr.bf16.mxu0 %v1328
    %1365 = vmatpush1.bf16.msra.mxu0 %v1327
    %1366 = vmatprep.subr.bf16.mxu0 %v1325
    %1367 = vmatpush1.bf16.msra.mxu0 %v1324
    %1368 = vmatprep.subr.bf16.mxu0 %v1322
    %1369 = vmatpush1.bf16.msra.mxu0 %v1321
    %1370 = vmatprep.subr.bf16.mxu0 %v1319
    %1371 = vmatpush1.bf16.msra.mxu0 %v1318
    %1372 = vmatprep.subr.bf16.mxu0 %v1316
    %1373 = vmatpush1.bf16.msra.mxu0 %v1315
    %1374 = vmatprep.subr.bf16.mxu0 %v1313
    %1375 = vmatpush1.bf16.msra.mxu0 %v1312
    %1376 = vmatprep.subr.bf16.mxu0 0
    %1377 = vmatpush2.bf16.msra.mxu0 0
    %1378 = vmatprep.subr.bf16.mxu0 0
    %1379 = vmatpush2.bf16.msra.mxu0 0
    %1380 = vmatprep.subr.bf16.mxu0 0
    %1381 = vmatpush2.bf16.msra.mxu0 0
    %1382 = vmatprep.subr.bf16.mxu0 0
    %1383 = vmatpush2.bf16.msra.mxu0 0
    %1384 = vmatprep.subr.bf16.mxu0 0
    %1385 = vmatpush2.bf16.msra.mxu0 0
    %1386 = vmatprep.subr.bf16.mxu0 0
    %1387 = vmatpush2.bf16.msra.mxu0 0
    %1388 = vmatprep.subr.bf16.mxu0 0
    %1389 = vmatpush2.bf16.msra.mxu0 0
    %1390 = vmatprep.subr.bf16.mxu0 0
    %1391 = vmatpush2.bf16.msra.mxu0 0
    %1392 = vmatprep.mubr.bf16.mxu0 0
    %1393 = vmatmul.mubr.bf16.gmra.mxu0 %v1216
    %v1394 = vpop.f32.mrf.mxu0
    %v1395 = vadd.f32 0.0, %v1394
    %v1396 = vpop.f32.mrf.mxu0
    %v1397 = vadd.f32 0.0, %v1396
    %v1398 = vpop.f32.mrf.mxu0
    %v1399 = vadd.f32 0.0, %v1398
    %v1400 = vpop.f32.mrf.mxu0
    %v1401 = vadd.f32 0.0, %v1400
    %1402 = vmatprep.mubr.bf16.mxu0 0
    %1403 = vmatmul.mubr.bf16.gmra.mxu0 %v1217
    %v1404 = vpop.f32.mrf.mxu0
    %v1405 = vadd.f32 0.0, %v1404
    %v1406 = vpop.f32.mrf.mxu0
    %v1407 = vadd.f32 0.0, %v1406
    %v1408 = vpop.f32.mrf.mxu0
    %v1409 = vadd.f32 0.0, %v1408
    %v1410 = vpop.f32.mrf.mxu0
    %v1411 = vadd.f32 0.0, %v1410
    %1412 = vmatprep.mubr.bf16.mxu0 0
    %1413 = vmatmul.mubr.bf16.gmra.mxu0 %v1218
    %v1414 = vpop.f32.mrf.mxu0
    %v1415 = vadd.f32 0.0, %v1414
    %v1416 = vpop.f32.mrf.mxu0
    %v1417 = vadd.f32 0.0, %v1416
    %v1418 = vpop.f32.mrf.mxu0
    %v1419 = vadd.f32 0.0, %v1418
    %v1420 = vpop.f32.mrf.mxu0
    %v1421 = vadd.f32 0.0, %v1420
    %1422 = vmatprep.mubr.bf16.mxu0 0
    %1423 = vmatmul.mubr.bf16.gmra.mxu0 %v1219
    %v1424 = vpop.f32.mrf.mxu0
    %v1425 = vadd.f32 0.0, %v1424
    %v1426 = vpop.f32.mrf.mxu0
    %v1427 = vadd.f32 0.0, %v1426
    %v1428 = vpop.f32.mrf.mxu0
    %v1429 = vadd.f32 0.0, %v1428
    %v1430 = vpop.f32.mrf.mxu0
    %v1431 = vadd.f32 0.0, %v1430
    %1432 = vmatprep.mubr.bf16.mxu0 0
    %1433 = vmatmul.mubr.bf16.gmra.mxu0 %v1220
    %v1434 = vpop.f32.mrf.mxu0
    %v1435 = vadd.f32 0.0, %v1434
    %v1436 = vpop.f32.mrf.mxu0
    %v1437 = vadd.f32 0.0, %v1436
    %v1438 = vpop.f32.mrf.mxu0
    %v1439 = vadd.f32 0.0, %v1438
    %v1440 = vpop.f32.mrf.mxu0
    %v1441 = vadd.f32 0.0, %v1440
    %1442 = vmatprep.mubr.bf16.mxu0 0
    %1443 = vmatmul.mubr.bf16.gmra.mxu0 %v1221
    %v1444 = vpop.f32.mrf.mxu0
    %v1445 = vadd.f32 0.0, %v1444
    %v1446 = vpop.f32.mrf.mxu0
    %v1447 = vadd.f32 0.0, %v1446
    %v1448 = vpop.f32.mrf.mxu0
    %v1449 = vadd.f32 0.0, %v1448
    %v1450 = vpop.f32.mrf.mxu0
    %v1451 = vadd.f32 0.0, %v1450
    %1452 = vmatprep.mubr.bf16.mxu0 0
    %1453 = vmatmul.mubr.bf16.gmra.mxu0 %v1222
    %v1454 = vpop.f32.mrf.mxu0
    %v1455 = vadd.f32 0.0, %v1454
    %v1456 = vpop.f32.mrf.mxu0
    %v1457 = vadd.f32 0.0, %v1456
    %v1458 = vpop.f32.mrf.mxu0
    %v1459 = vadd.f32 0.0, %v1458
    %v1460 = vpop.f32.mrf.mxu0
    %v1461 = vadd.f32 0.0, %v1460
    %1462 = vmatprep.mubr.bf16.mxu0 0
    %1463 = vmatmul.mubr.bf16.gmra.mxu0 %v1223
    %v1464 = vpop.f32.mrf.mxu0
    %v1465 = vadd.f32 0.0, %v1464
    %v1466 = vpop.f32.mrf.mxu0
    %v1467 = vadd.f32 0.0, %v1466
    %v1468 = vpop.f32.mrf.mxu0
    %v1469 = vadd.f32 0.0, %v1468
    %v1470 = vpop.f32.mrf.mxu0
    %v1471 = vadd.f32 0.0, %v1470
    %1472 = vdwg.mxu0
    %1473 = vmatprep.subr.bf16.mxu0 0
    %1474 = vmatpush1.bf16.msra.mxu0 %v1335
    %1475 = vmatprep.subr.bf16.mxu0 0
    %1476 = vmatpush1.bf16.msra.mxu0 %v1332
    %1477 = vmatprep.subr.bf16.mxu0 0
    %1478 = vmatpush1.bf16.msra.mxu0 %v1329
    %1479 = vmatprep.subr.bf16.mxu0 0
    %1480 = vmatpush1.bf16.msra.mxu0 %v1326
    %1481 = vmatprep.subr.bf16.mxu0 0
    %1482 = vmatpush1.bf16.msra.mxu0 %v1323
    %1483 = vmatprep.subr.bf16.mxu0 0
    %1484 = vmatpush1.bf16.msra.mxu0 %v1320
    %1485 = vmatprep.subr.bf16.mxu0 0
    %1486 = vmatpush1.bf16.msra.mxu0 %v1317
    %1487 = vmatprep.subr.bf16.mxu0 0
    %1488 = vmatpush1.bf16.msra.mxu0 %v1314
    %1489 = vmatprep.subr.bf16.mxu0 0
    %1490 = vmatpush2.bf16.msra.mxu0 0
    %1491 = vmatprep.subr.bf16.mxu0 0
    %1492 = vmatpush2.bf16.msra.mxu0 0
    %1493 = vmatprep.subr.bf16.mxu0 0
    %1494 = vmatpush2.bf16.msra.mxu0 0
    %1495 = vmatprep.subr.bf16.mxu0 0
    %1496 = vmatpush2.bf16.msra.mxu0 0
    %1497 = vmatprep.subr.bf16.mxu0 0
    %1498 = vmatpush2.bf16.msra.mxu0 0
    %1499 = vmatprep.subr.bf16.mxu0 0
    %1500 = vmatpush2.bf16.msra.mxu0 0
    %1501 = vmatprep.subr.bf16.mxu0 0
    %1502 = vmatpush2.bf16.msra.mxu0 0
    %1503 = vmatprep.subr.bf16.mxu0 0
    %1504 = vmatpush2.bf16.msra.mxu0 0
    %1505 = vmatprep.mubr.bf16.mxu0 0
    %1506 = vmatmul.mubr.bf16.gmra.mxu0 %v1216
    %v1507 = vpop.f32.mrf.mxu0
    %v1508 = vadd.f32 0.0, %v1507
    %v1509 = vpop.f32.mrf.mxu0
    %v1510 = vpop.f32.mrf.mxu0
    %v1511 = vadd.f32 0.0, %v1510
    %v1512 = vpop.f32.mrf.mxu0
    %1513 = vmatprep.mubr.bf16.mxu0 0
    %1514 = vmatmul.mubr.bf16.gmra.mxu0 %v1217
    %v1515 = vpop.f32.mrf.mxu0
    %v1516 = vadd.f32 0.0, %v1515
    %v1517 = vpop.f32.mrf.mxu0
    %v1518 = vpop.f32.mrf.mxu0
    %v1519 = vadd.f32 0.0, %v1518
    %v1520 = vpop.f32.mrf.mxu0
    %1521 = vmatprep.mubr.bf16.mxu0 0
    %1522 = vmatmul.mubr.bf16.gmra.mxu0 %v1218
    %v1523 = vpop.f32.mrf.mxu0
    %v1524 = vadd.f32 0.0, %v1523
    %v1525 = vpop.f32.mrf.mxu0
    %v1526 = vpop.f32.mrf.mxu0
    %v1527 = vadd.f32 0.0, %v1526
    %v1528 = vpop.f32.mrf.mxu0
    %1529 = vmatprep.mubr.bf16.mxu0 0
    %1530 = vmatmul.mubr.bf16.gmra.mxu0 %v1219
    %v1531 = vpop.f32.mrf.mxu0
    %v1532 = vadd.f32 0.0, %v1531
    %v1533 = vpop.f32.mrf.mxu0
    %v1534 = vpop.f32.mrf.mxu0
    %v1535 = vadd.f32 0.0, %v1534
    %v1536 = vpop.f32.mrf.mxu0
    %1537 = vmatprep.mubr.bf16.mxu0 0
    %1538 = vmatmul.mubr.bf16.gmra.mxu0 %v1220
    %v1539 = vpop.f32.mrf.mxu0
    %v1540 = vadd.f32 0.0, %v1539
    %v1541 = vpop.f32.mrf.mxu0
    %v1542 = vpop.f32.mrf.mxu0
    %v1543 = vadd.f32 0.0, %v1542
    %v1544 = vpop.f32.mrf.mxu0
    %1545 = vmatprep.mubr.bf16.mxu0 0
    %1546 = vmatmul.mubr.bf16.gmra.mxu0 %v1221
    %v1547 = vpop.f32.mrf.mxu0
    %v1548 = vadd.f32 0.0, %v1547
    %v1549 = vpop.f32.mrf.mxu0
    %v1550 = vpop.f32.mrf.mxu0
    %v1551 = vadd.f32 0.0, %v1550
    %v1552 = vpop.f32.mrf.mxu0
    %1553 = vmatprep.mubr.bf16.mxu0 0
    %1554 = vmatmul.mubr.bf16.gmra.mxu0 %v1222
    %v1555 = vpop.f32.mrf.mxu0
    %v1556 = vadd.f32 0.0, %v1555
    %v1557 = vpop.f32.mrf.mxu0
    %v1558 = vpop.f32.mrf.mxu0
    %v1559 = vadd.f32 0.0, %v1558
    %v1560 = vpop.f32.mrf.mxu0
    %1561 = vmatprep.mubr.bf16.mxu0 0
    %1562 = vmatmul.mubr.bf16.gmra.mxu0 %v1223
    %v1563 = vpop.f32.mrf.mxu0
    %v1564 = vadd.f32 0.0, %v1563
    %v1565 = vpop.f32.mrf.mxu0
    %v1566 = vpop.f32.mrf.mxu0
    %v1567 = vadd.f32 0.0, %v1566
    %v1568 = vpop.f32.mrf.mxu0
    %1569 = vdwg.mxu0
    %v1570 = vadd.f32 %v925, %v1395
    %v1571 = vadd.f32 %v927, %v1397
    %v1572 = vadd.f32 %v1038, %v1508
    %v1573 = vadd.f32 %v929, %v1399
    %v1574 = vadd.f32 %v931, %v1401
    %v1575 = vadd.f32 %v1041, %v1511
    %v1576 = vadd.f32 %v935, %v1405
    %v1577 = vadd.f32 %v937, %v1407
    %v1578 = vadd.f32 %v1046, %v1516
    %v1579 = vadd.f32 %v939, %v1409
    %v1580 = vadd.f32 %v941, %v1411
    %v1581 = vadd.f32 %v1049, %v1519
    %v1582 = vadd.f32 %v945, %v1415
    %v1583 = vadd.f32 %v947, %v1417
    %v1584 = vadd.f32 %v1054, %v1524
    %v1585 = vadd.f32 %v949, %v1419
    %v1586 = vadd.f32 %v951, %v1421
    %v1587 = vadd.f32 %v1057, %v1527
    %v1588 = vadd.f32 %v955, %v1425
    %v1589 = vadd.f32 %v957, %v1427
    %v1590 = vadd.f32 %v1062, %v1532
    %v1591 = vadd.f32 %v959, %v1429
    %v1592 = vadd.f32 %v961, %v1431
    %v1593 = vadd.f32 %v1065, %v1535
    %v1594 = vadd.f32 %v965, %v1435
    %v1595 = vadd.f32 %v967, %v1437
    %v1596 = vadd.f32 %v1070, %v1540
    %v1597 = vadd.f32 %v969, %v1439
    %v1598 = vadd.f32 %v971, %v1441
    %v1599 = vadd.f32 %v1073, %v1543
    %v1600 = vadd.f32 %v975, %v1445
    %v1601 = vadd.f32 %v977, %v1447
    %v1602 = vadd.f32 %v1078, %v1548
    %v1603 = vadd.f32 %v979, %v1449
    %v1604 = vadd.f32 %v981, %v1451
    %v1605 = vadd.f32 %v1081, %v1551
    %v1606 = vadd.f32 %v985, %v1455
    %v1607 = vadd.f32 %v987, %v1457
    %v1608 = vadd.f32 %v1086, %v1556
    %v1609 = vadd.f32 %v989, %v1459
    %v1610 = vadd.f32 %v991, %v1461
    %v1611 = vadd.f32 %v1089, %v1559
    %v1612 = vadd.f32 %v995, %v1465
    %v1613 = vadd.f32 %v997, %v1467
    %v1614 = vadd.f32 %v1094, %v1564
    %v1615 = vadd.f32 %v999, %v1469
    %v1616 = vadd.f32 %v1001, %v1471
    %v1617 = vadd.f32 %v1097, %v1567
    %vm1618 = vsmask.f32 2304
    %vm1619 = vsmask.f32 6416
    %vm1620 = vmor %vm1618, %vm1619
    %v1621 = vrot.slane %v120, 5
    %v1622 = vrot.slane %v123, 6
    %v1623 = vor.u32 %v1621, %v1622
    %v1624 = vrot.slane %v1623, 4
    %v1625 = vrot.slane %v133, 5
    %v1626 = vrot.slane %v129, 6
    %v1627 = vor.u32 %v1625, %v1626
    %v1628 = vsel %vm1620, %v1624, %v1627
    %v1629 = vrot.slane %v1627, 4
    %v1630 = vshrl.u32 %v62, 16
    %v1632 = vrot.slane %v1630, 5
    %v1633 = vrot.slane %v139, 6
    %v1634 = vor.u32 %v1632, %v1633
    %v1635 = vsel %vm1620, %v1629, %v1634
    %v1636 = vrot.slane %v144, 5
    %v1637 = vrot.slane %v147, 6
    %v1638 = vor.u32 %v1636, %v1637
    %v1639 = vrot.slane %v1638, 4
    %v1640 = vrot.slane %v157, 5
    %v1641 = vrot.slane %v153, 6
    %v1642 = vor.u32 %v1640, %v1641
    %v1643 = vsel %vm1620, %v1639, %v1642
    %v1644 = vrot.slane %v1642, 4
    %v1645 = vshrl.u32 %v65, 16
    %v1647 = vrot.slane %v1645, 5
    %v1648 = vrot.slane %v163, 6
    %v1649 = vor.u32 %v1647, %v1648
    %v1650 = vsel %vm1620, %v1644, %v1649
    %v1651 = vrot.slane %v168, 5
    %v1652 = vrot.slane %v171, 6
    %v1653 = vor.u32 %v1651, %v1652
    %v1654 = vrot.slane %v1653, 4
    %v1655 = vrot.slane %v181, 5
    %v1656 = vrot.slane %v177, 6
    %v1657 = vor.u32 %v1655, %v1656
    %v1658 = vsel %vm1620, %v1654, %v1657
    %v1659 = vrot.slane %v1657, 4
    %v1660 = vshrl.u32 %v68, 16
    %v1662 = vrot.slane %v1660, 5
    %v1663 = vrot.slane %v187, 6
    %v1664 = vor.u32 %v1662, %v1663
    %v1665 = vsel %vm1620, %v1659, %v1664
    %v1666 = vrot.slane %v192, 5
    %v1667 = vrot.slane %v195, 6
    %v1668 = vor.u32 %v1666, %v1667
    %v1669 = vrot.slane %v1668, 4
    %v1670 = vrot.slane %v205, 5
    %v1671 = vrot.slane %v201, 6
    %v1672 = vor.u32 %v1670, %v1671
    %v1673 = vsel %vm1620, %v1669, %v1672
    %v1674 = vrot.slane %v1672, 4
    %v1675 = vshrl.u32 %v71, 16
    %v1677 = vrot.slane %v1675, 5
    %v1678 = vrot.slane %v211, 6
    %v1679 = vor.u32 %v1677, %v1678
    %v1680 = vsel %vm1620, %v1674, %v1679
    %v1681 = vrot.slane %v216, 5
    %v1682 = vrot.slane %v219, 6
    %v1683 = vor.u32 %v1681, %v1682
    %v1684 = vrot.slane %v1683, 4
    %v1685 = vrot.slane %v229, 5
    %v1686 = vrot.slane %v225, 6
    %v1687 = vor.u32 %v1685, %v1686
    %v1688 = vsel %vm1620, %v1684, %v1687
    %v1689 = vrot.slane %v1687, 4
    %v1690 = vshrl.u32 %v74, 16
    %v1692 = vrot.slane %v1690, 5
    %v1693 = vrot.slane %v235, 6
    %v1694 = vor.u32 %v1692, %v1693
    %v1695 = vsel %vm1620, %v1689, %v1694
    %v1696 = vrot.slane %v240, 5
    %v1697 = vrot.slane %v243, 6
    %v1698 = vor.u32 %v1696, %v1697
    %v1699 = vrot.slane %v1698, 4
    %v1700 = vrot.slane %v253, 5
    %v1701 = vrot.slane %v249, 6
    %v1702 = vor.u32 %v1700, %v1701
    %v1703 = vsel %vm1620, %v1699, %v1702
    %v1704 = vrot.slane %v1702, 4
    %v1705 = vshrl.u32 %v77, 16
    %v1707 = vrot.slane %v1705, 5
    %v1708 = vrot.slane %v259, 6
    %v1709 = vor.u32 %v1707, %v1708
    %v1710 = vsel %vm1620, %v1704, %v1709
    %v1711 = vrot.slane %v264, 5
    %v1712 = vrot.slane %v267, 6
    %v1713 = vor.u32 %v1711, %v1712
    %v1714 = vrot.slane %v1713, 4
    %v1715 = vrot.slane %v277, 5
    %v1716 = vrot.slane %v273, 6
    %v1717 = vor.u32 %v1715, %v1716
    %v1718 = vsel %vm1620, %v1714, %v1717
    %v1719 = vrot.slane %v1717, 4
    %v1720 = vshrl.u32 %v80, 16
    %v1722 = vrot.slane %v1720, 5
    %v1723 = vrot.slane %v283, 6
    %v1724 = vor.u32 %v1722, %v1723
    %v1725 = vsel %vm1620, %v1719, %v1724
    %v1726 = vrot.slane %v288, 5
    %v1727 = vrot.slane %v291, 6
    %v1728 = vor.u32 %v1726, %v1727
    %v1729 = vrot.slane %v1728, 4
    %v1730 = vrot.slane %v301, 5
    %v1731 = vrot.slane %v297, 6
    %v1732 = vor.u32 %v1730, %v1731
    %v1733 = vsel %vm1620, %v1729, %v1732
    %v1734 = vrot.slane %v1732, 4
    %v1735 = vshrl.u32 %v83, 16
    %v1737 = vrot.slane %v1735, 5
    %v1738 = vrot.slane %v307, 6
    %v1739 = vor.u32 %v1737, %v1738
    %v1740 = vsel %vm1620, %v1734, %v1739
    %s1741 = scalar_lea.vmem [#allocation5], 576
    %v1742 = vld [vmem:[%s1741] sm:$0xff]
    %v1743 = vld [vmem:[%s1741 + $0x8] sm:$0xf]
    %v1744 = vld [vmem:[%s1741 + $0xc] sm:$0xff]
    %v1745 = vld [vmem:[%s1741 + $0x14] sm:$0xf]
    %v1746 = vld [vmem:[%s1741 + $0x18] sm:$0xff]
    %v1747 = vld [vmem:[%s1741 + $0x20] sm:$0xf]
    %v1748 = vld [vmem:[%s1741 + $0x24] sm:$0xff]
    %v1749 = vld [vmem:[%s1741 + $0x2c] sm:$0xf]
    %v1750 = vld [vmem:[%s1741 + $0x30] sm:$0xff]
    %v1751 = vld [vmem:[%s1741 + $0x38] sm:$0xf]
    %v1752 = vld [vmem:[%s1741 + $0x3c] sm:$0xff]
    %v1753 = vld [vmem:[%s1741 + $0x44] sm:$0xf]
    %v1754 = vld [vmem:[%s1741 + $0x48] sm:$0xff]
    %v1755 = vld [vmem:[%s1741 + $0x50] sm:$0xf]
    %v1756 = vld [vmem:[%s1741 + $0x54] sm:$0xff]
    %v1757 = vld [vmem:[%s1741 + $0x5c] sm:$0xf]
    %v1758 = vld [vmem:[%s1741 + $0x60] sm:$0xff]
    %v1759 = vld [vmem:[%s1741 + $0x68] sm:$0xf]
    %v1760 = vld [vmem:[%s1741 + $0x6c] sm:$0xff]
    %v1761 = vld [vmem:[%s1741 + $0x74] sm:$0xf]
    %v1762 = vld [vmem:[%s1741 + $0x78] sm:$0xff]
    %v1763 = vld [vmem:[%s1741 + $0x80] sm:$0xf]
    %v1764 = vld [vmem:[%s1741 + $0x84] sm:$0xff]
    %v1765 = vld [vmem:[%s1741 + $0x8c] sm:$0xf]
    %v1766 = vld [vmem:[%s1741 + $0x90] sm:$0xff]
    %v1767 = vld [vmem:[%s1741 + $0x98] sm:$0xf]
    %v1768 = vld [vmem:[%s1741 + $0x9c] sm:$0xff]
    %v1769 = vld [vmem:[%s1741 + $0xa4] sm:$0xf]
    %v1770 = vld [vmem:[%s1741 + $0xa8] sm:$0xff]
    %v1771 = vld [vmem:[%s1741 + $0xb0] sm:$0xf]
    %v1772 = vld [vmem:[%s1741 + $0xb4] sm:$0xff]
    %v1773 = vld [vmem:[%s1741 + $0xbc] sm:$0xf]
    %v1774 = vunpack.c.l.b16 %v1628
    %v1775 = vunpack.c.l.b16 %v1635
    %v1776 = vunpack.c.l.b16 %v1643
    %v1777 = vunpack.c.l.b16 %v1650
    %v1778 = vunpack.c.l.b16 %v1658
    %v1779 = vunpack.c.l.b16 %v1665
    %v1780 = vunpack.c.l.b16 %v1673
    %v1781 = vunpack.c.l.b16 %v1680
    %v1782 = vunpack.c.l.b16 %v1688
    %v1783 = vunpack.c.l.b16 %v1695
    %v1784 = vunpack.c.l.b16 %v1703
    %v1785 = vunpack.c.l.b16 %v1710
    %v1786 = vunpack.c.l.b16 %v1718
    %v1787 = vunpack.c.l.b16 %v1725
    %v1788 = vunpack.c.l.b16 %v1733
    %v1789 = vunpack.c.l.b16 %v1740
    %v1790 = vpack.c.b16 %v1775, %v1774
    %v1791 = vpack.c.b16 %v1777, %v1776
    %v1792 = vpack.c.b16 %v1779, %v1778
    %v1793 = vpack.c.b16 %v1781, %v1780
    %v1794 = vpack.c.b16 %v1783, %v1782
    %v1795 = vpack.c.b16 %v1785, %v1784
    %v1796 = vpack.c.b16 %v1787, %v1786
    %v1797 = vpack.c.b16 %v1789, %v1788
    %v1838 = vunpack.c.l.b16 %v1742
    %v1839 = vunpack.c.h.b16 %v1742
    %v1840 = vunpack.c.l.b16 %v1743
    %v1841 = vunpack.c.l.b16 %v1744
    %v1842 = vunpack.c.h.b16 %v1744
    %v1843 = vunpack.c.l.b16 %v1745
    %v1844 = vunpack.c.l.b16 %v1746
    %v1845 = vunpack.c.h.b16 %v1746
    %v1846 = vunpack.c.l.b16 %v1747
    %v1847 = vunpack.c.l.b16 %v1748
    %v1848 = vunpack.c.h.b16 %v1748
    %v1849 = vunpack.c.l.b16 %v1749
    %v1850 = vunpack.c.l.b16 %v1750
    %v1851 = vunpack.c.h.b16 %v1750
    %v1852 = vunpack.c.l.b16 %v1751
    %v1853 = vunpack.c.l.b16 %v1752
    %v1854 = vunpack.c.h.b16 %v1752
    %v1855 = vunpack.c.l.b16 %v1753
    %v1856 = vunpack.c.l.b16 %v1754
    %v1857 = vunpack.c.h.b16 %v1754
    %v1858 = vunpack.c.l.b16 %v1755
    %v1859 = vunpack.c.l.b16 %v1756
    %v1860 = vunpack.c.h.b16 %v1756
    %v1861 = vunpack.c.l.b16 %v1757
    %v1862 = vunpack.c.l.b16 %v1758
    %v1863 = vunpack.c.h.b16 %v1758
    %v1864 = vunpack.c.l.b16 %v1759
    %v1865 = vunpack.c.l.b16 %v1760
    %v1866 = vunpack.c.h.b16 %v1760
    %v1867 = vunpack.c.l.b16 %v1761
    %v1868 = vunpack.c.l.b16 %v1762
    %v1869 = vunpack.c.h.b16 %v1762
    %v1870 = vunpack.c.l.b16 %v1763
    %v1871 = vunpack.c.l.b16 %v1764
    %v1872 = vunpack.c.h.b16 %v1764
    %v1873 = vunpack.c.l.b16 %v1765
    %v1874 = vunpack.c.l.b16 %v1766
    %v1875 = vunpack.c.h.b16 %v1766
    %v1876 = vunpack.c.l.b16 %v1767
    %v1877 = vunpack.c.l.b16 %v1768
    %v1878 = vunpack.c.h.b16 %v1768
    %v1879 = vunpack.c.l.b16 %v1769
    %v1880 = vunpack.c.l.b16 %v1770
    %v1881 = vunpack.c.h.b16 %v1770
    %v1882 = vunpack.c.l.b16 %v1771
    %v1883 = vunpack.c.l.b16 %v1772
    %v1884 = vunpack.c.h.b16 %v1772
    %v1885 = vunpack.c.l.b16 %v1773
    %v1886 = vpack.c.b16 %v1841, %v1838
    %v1887 = vpack.c.b16 %v1842, %v1839
    %v1888 = vpack.c.b16 %v1843, %v1840
    %v1889 = vpack.c.b16 %v1847, %v1844
    %v1890 = vpack.c.b16 %v1848, %v1845
    %v1891 = vpack.c.b16 %v1849, %v1846
    %v1892 = vpack.c.b16 %v1853, %v1850
    %v1893 = vpack.c.b16 %v1854, %v1851
    %v1894 = vpack.c.b16 %v1855, %v1852
    %v1895 = vpack.c.b16 %v1859, %v1856
    %v1896 = vpack.c.b16 %v1860, %v1857
    %v1897 = vpack.c.b16 %v1861, %v1858
    %v1898 = vpack.c.b16 %v1865, %v1862
    %v1899 = vpack.c.b16 %v1866, %v1863
    %v1900 = vpack.c.b16 %v1867, %v1864
    %v1901 = vpack.c.b16 %v1871, %v1868
    %v1902 = vpack.c.b16 %v1872, %v1869
    %v1903 = vpack.c.b16 %v1873, %v1870
    %v1904 = vpack.c.b16 %v1877, %v1874
    %v1905 = vpack.c.b16 %v1878, %v1875
    %v1906 = vpack.c.b16 %v1879, %v1876
    %v1907 = vpack.c.b16 %v1883, %v1880
    %v1908 = vpack.c.b16 %v1884, %v1881
    %v1909 = vpack.c.b16 %v1885, %v1882
    %1934 = vmatprep.subr.bf16.mxu0 %v1908
    %1935 = vmatpush1.bf16.msra.mxu0 %v1907
    %1936 = vmatprep.subr.bf16.mxu0 %v1905
    %1937 = vmatpush1.bf16.msra.mxu0 %v1904
    %1938 = vmatprep.subr.bf16.mxu0 %v1902
    %1939 = vmatpush1.bf16.msra.mxu0 %v1901
    %1940 = vmatprep.subr.bf16.mxu0 %v1899
    %1941 = vmatpush1.bf16.msra.mxu0 %v1898
    %1942 = vmatprep.subr.bf16.mxu0 %v1896
    %1943 = vmatpush1.bf16.msra.mxu0 %v1895
    %1944 = vmatprep.subr.bf16.mxu0 %v1893
    %1945 = vmatpush1.bf16.msra.mxu0 %v1892
    %1946 = vmatprep.subr.bf16.mxu0 %v1890
    %1947 = vmatpush1.bf16.msra.mxu0 %v1889
    %1948 = vmatprep.subr.bf16.mxu0 %v1887
    %1949 = vmatpush1.bf16.msra.mxu0 %v1886
    %1950 = vmatprep.subr.bf16.mxu0 0
    %1951 = vmatpush2.bf16.msra.mxu0 0
    %1952 = vmatprep.subr.bf16.mxu0 0
    %1953 = vmatpush2.bf16.msra.mxu0 0
    %1954 = vmatprep.subr.bf16.mxu0 0
    %1955 = vmatpush2.bf16.msra.mxu0 0
    %1956 = vmatprep.subr.bf16.mxu0 0
    %1957 = vmatpush2.bf16.msra.mxu0 0
    %1958 = vmatprep.subr.bf16.mxu0 0
    %1959 = vmatpush2.bf16.msra.mxu0 0
    %1960 = vmatprep.subr.bf16.mxu0 0
    %1961 = vmatpush2.bf16.msra.mxu0 0
    %1962 = vmatprep.subr.bf16.mxu0 0
    %1963 = vmatpush2.bf16.msra.mxu0 0
    %1964 = vmatprep.subr.bf16.mxu0 0
    %1965 = vmatpush2.bf16.msra.mxu0 0
    %1966 = vmatprep.mubr.bf16.mxu0 0
    %1967 = vmatmul.mubr.bf16.gmra.mxu0 %v1790
    %v1968 = vpop.f32.mrf.mxu0
    %v1969 = vadd.f32 0.0, %v1968
    %v1970 = vpop.f32.mrf.mxu0
    %v1971 = vadd.f32 0.0, %v1970
    %v1972 = vpop.f32.mrf.mxu0
    %v1973 = vadd.f32 0.0, %v1972
    %v1974 = vpop.f32.mrf.mxu0
    %v1975 = vadd.f32 0.0, %v1974
    %1976 = vmatprep.mubr.bf16.mxu0 0
    %1977 = vmatmul.mubr.bf16.gmra.mxu0 %v1791
    %v1978 = vpop.f32.mrf.mxu0
    %v1979 = vadd.f32 0.0, %v1978
    %v1980 = vpop.f32.mrf.mxu0
    %v1981 = vadd.f32 0.0, %v1980
    %v1982 = vpop.f32.mrf.mxu0
    %v1983 = vadd.f32 0.0, %v1982
    %v1984 = vpop.f32.mrf.mxu0
    %v1985 = vadd.f32 0.0, %v1984
    %1986 = vmatprep.mubr.bf16.mxu0 0
    %1987 = vmatmul.mubr.bf16.gmra.mxu0 %v1792
    %v1988 = vpop.f32.mrf.mxu0
    %v1989 = vadd.f32 0.0, %v1988
    %v1990 = vpop.f32.mrf.mxu0
    %v1991 = vadd.f32 0.0, %v1990
    %v1992 = vpop.f32.mrf.mxu0
    %v1993 = vadd.f32 0.0, %v1992
    %v1994 = vpop.f32.mrf.mxu0
    %v1995 = vadd.f32 0.0, %v1994
    %1996 = vmatprep.mubr.bf16.mxu0 0
    %1997 = vmatmul.mubr.bf16.gmra.mxu0 %v1793
    %v1998 = vpop.f32.mrf.mxu0
    %v1999 = vadd.f32 0.0, %v1998
    %v2000 = vpop.f32.mrf.mxu0
    %v2001 = vadd.f32 0.0, %v2000
    %v2002 = vpop.f32.mrf.mxu0
    %v2003 = vadd.f32 0.0, %v2002
    %v2004 = vpop.f32.mrf.mxu0
    %v2005 = vadd.f32 0.0, %v2004
    %2006 = vmatprep.mubr.bf16.mxu0 0
    %2007 = vmatmul.mubr.bf16.gmra.mxu0 %v1794
    %v2008 = vpop.f32.mrf.mxu0
    %v2009 = vadd.f32 0.0, %v2008
    %v2010 = vpop.f32.mrf.mxu0
    %v2011 = vadd.f32 0.0, %v2010
    %v2012 = vpop.f32.mrf.mxu0
    %v2013 = vadd.f32 0.0, %v2012
    %v2014 = vpop.f32.mrf.mxu0
    %v2015 = vadd.f32 0.0, %v2014
    %2016 = vmatprep.mubr.bf16.mxu0 0
    %2017 = vmatmul.mubr.bf16.gmra.mxu0 %v1795
    %v2018 = vpop.f32.mrf.mxu0
    %v2019 = vadd.f32 0.0, %v2018
    %v2020 = vpop.f32.mrf.mxu0
    %v2021 = vadd.f32 0.0, %v2020
    %v2022 = vpop.f32.mrf.mxu0
    %v2023 = vadd.f32 0.0, %v2022
    %v2024 = vpop.f32.mrf.mxu0
    %v2025 = vadd.f32 0.0, %v2024
    %2026 = vmatprep.mubr.bf16.mxu0 0
    %2027 = vmatmul.mubr.bf16.gmra.mxu0 %v1796
    %v2028 = vpop.f32.mrf.mxu0
    %v2029 = vadd.f32 0.0, %v2028
    %v2030 = vpop.f32.mrf.mxu0
    %v2031 = vadd.f32 0.0, %v2030
    %v2032 = vpop.f32.mrf.mxu0
    %v2033 = vadd.f32 0.0, %v2032
    %v2034 = vpop.f32.mrf.mxu0
    %v2035 = vadd.f32 0.0, %v2034
    %2036 = vmatprep.mubr.bf16.mxu0 0
    %2037 = vmatmul.mubr.bf16.gmra.mxu0 %v1797
    %v2038 = vpop.f32.mrf.mxu0
    %v2039 = vadd.f32 0.0, %v2038
    %v2040 = vpop.f32.mrf.mxu0
    %v2041 = vadd.f32 0.0, %v2040
    %v2042 = vpop.f32.mrf.mxu0
    %v2043 = vadd.f32 0.0, %v2042
    %v2044 = vpop.f32.mrf.mxu0
    %v2045 = vadd.f32 0.0, %v2044
    %2046 = vdwg.mxu0
    %2047 = vmatprep.subr.bf16.mxu0 0
    %2048 = vmatpush1.bf16.msra.mxu0 %v1909
    %2049 = vmatprep.subr.bf16.mxu0 0
    %2050 = vmatpush1.bf16.msra.mxu0 %v1906
    %2051 = vmatprep.subr.bf16.mxu0 0
    %2052 = vmatpush1.bf16.msra.mxu0 %v1903
    %2053 = vmatprep.subr.bf16.mxu0 0
    %2054 = vmatpush1.bf16.msra.mxu0 %v1900
    %2055 = vmatprep.subr.bf16.mxu0 0
    %2056 = vmatpush1.bf16.msra.mxu0 %v1897
    %2057 = vmatprep.subr.bf16.mxu0 0
    %2058 = vmatpush1.bf16.msra.mxu0 %v1894
    %2059 = vmatprep.subr.bf16.mxu0 0
    %2060 = vmatpush1.bf16.msra.mxu0 %v1891
    %2061 = vmatprep.subr.bf16.mxu0 0
    %2062 = vmatpush1.bf16.msra.mxu0 %v1888
    %2063 = vmatprep.subr.bf16.mxu0 0
    %2064 = vmatpush2.bf16.msra.mxu0 0
    %2065 = vmatprep.subr.bf16.mxu0 0
    %2066 = vmatpush2.bf16.msra.mxu0 0
    %2067 = vmatprep.subr.bf16.mxu0 0
    %2068 = vmatpush2.bf16.msra.mxu0 0
    %2069 = vmatprep.subr.bf16.mxu0 0
    %2070 = vmatpush2.bf16.msra.mxu0 0
    %2071 = vmatprep.subr.bf16.mxu0 0
    %2072 = vmatpush2.bf16.msra.mxu0 0
    %2073 = vmatprep.subr.bf16.mxu0 0
    %2074 = vmatpush2.bf16.msra.mxu0 0
    %2075 = vmatprep.subr.bf16.mxu0 0
    %2076 = vmatpush2.bf16.msra.mxu0 0
    %2077 = vmatprep.subr.bf16.mxu0 0
    %2078 = vmatpush2.bf16.msra.mxu0 0
    %2079 = vmatprep.mubr.bf16.mxu0 0
    %2080 = vmatmul.mubr.bf16.gmra.mxu0 %v1790
    %v2081 = vpop.f32.mrf.mxu0
    %v2082 = vadd.f32 0.0, %v2081
    %v2083 = vpop.f32.mrf.mxu0
    %v2084 = vpop.f32.mrf.mxu0
    %v2085 = vadd.f32 0.0, %v2084
    %v2086 = vpop.f32.mrf.mxu0
    %2087 = vmatprep.mubr.bf16.mxu0 0
    %2088 = vmatmul.mubr.bf16.gmra.mxu0 %v1791
    %v2089 = vpop.f32.mrf.mxu0
    %v2090 = vadd.f32 0.0, %v2089
    %v2091 = vpop.f32.mrf.mxu0
    %v2092 = vpop.f32.mrf.mxu0
    %v2093 = vadd.f32 0.0, %v2092
    %v2094 = vpop.f32.mrf.mxu0
    %2095 = vmatprep.mubr.bf16.mxu0 0
    %2096 = vmatmul.mubr.bf16.gmra.mxu0 %v1792
    %v2097 = vpop.f32.mrf.mxu0
    %v2098 = vadd.f32 0.0, %v2097
    %v2099 = vpop.f32.mrf.mxu0
    %v2100 = vpop.f32.mrf.mxu0
    %v2101 = vadd.f32 0.0, %v2100
    %v2102 = vpop.f32.mrf.mxu0
    %2103 = vmatprep.mubr.bf16.mxu0 0
    %2104 = vmatmul.mubr.bf16.gmra.mxu0 %v1793
    %v2105 = vpop.f32.mrf.mxu0
    %v2106 = vadd.f32 0.0, %v2105
    %v2107 = vpop.f32.mrf.mxu0
    %v2108 = vpop.f32.mrf.mxu0
    %v2109 = vadd.f32 0.0, %v2108
    %v2110 = vpop.f32.mrf.mxu0
    %2111 = vmatprep.mubr.bf16.mxu0 0
    %2112 = vmatmul.mubr.bf16.gmra.mxu0 %v1794
    %v2113 = vpop.f32.mrf.mxu0
    %v2114 = vadd.f32 0.0, %v2113
    %v2115 = vpop.f32.mrf.mxu0
    %v2116 = vpop.f32.mrf.mxu0
    %v2117 = vadd.f32 0.0, %v2116
    %v2118 = vpop.f32.mrf.mxu0
    %2119 = vmatprep.mubr.bf16.mxu0 0
    %2120 = vmatmul.mubr.bf16.gmra.mxu0 %v1795
    %v2121 = vpop.f32.mrf.mxu0
    %v2122 = vadd.f32 0.0, %v2121
    %v2123 = vpop.f32.mrf.mxu0
    %v2124 = vpop.f32.mrf.mxu0
    %v2125 = vadd.f32 0.0, %v2124
    %v2126 = vpop.f32.mrf.mxu0
    %2127 = vmatprep.mubr.bf16.mxu0 0
    %2128 = vmatmul.mubr.bf16.gmra.mxu0 %v1796
    %v2129 = vpop.f32.mrf.mxu0
    %v2130 = vadd.f32 0.0, %v2129
    %v2131 = vpop.f32.mrf.mxu0
    %v2132 = vpop.f32.mrf.mxu0
    %v2133 = vadd.f32 0.0, %v2132
    %v2134 = vpop.f32.mrf.mxu0
    %2135 = vmatprep.mubr.bf16.mxu0 0
    %2136 = vmatmul.mubr.bf16.gmra.mxu0 %v1797
    %v2137 = vpop.f32.mrf.mxu0
    %v2138 = vadd.f32 0.0, %v2137
    %v2139 = vpop.f32.mrf.mxu0
    %v2140 = vpop.f32.mrf.mxu0
    %v2141 = vadd.f32 0.0, %v2140
    %v2142 = vpop.f32.mrf.mxu0
    %2143 = vdwg.mxu0
    %v2144 = vadd.f32 %v1570, %v1969
    %v2145 = vadd.f32 %v1571, %v1971
    %v2146 = vadd.f32 %v1572, %v2082
    %v2147 = vadd.f32 %v1573, %v1973
    %v2148 = vadd.f32 %v1574, %v1975
    %v2149 = vadd.f32 %v1575, %v2085
    %v2150 = vadd.f32 %v1576, %v1979
    %v2151 = vadd.f32 %v1577, %v1981
    %v2152 = vadd.f32 %v1578, %v2090
    %v2153 = vadd.f32 %v1579, %v1983
    %v2154 = vadd.f32 %v1580, %v1985
    %v2155 = vadd.f32 %v1581, %v2093
    %v2156 = vadd.f32 %v1582, %v1989
    %v2157 = vadd.f32 %v1583, %v1991
    %v2158 = vadd.f32 %v1584, %v2098
    %v2159 = vadd.f32 %v1585, %v1993
    %v2160 = vadd.f32 %v1586, %v1995
    %v2161 = vadd.f32 %v1587, %v2101
    %v2162 = vadd.f32 %v1588, %v1999
    %v2163 = vadd.f32 %v1589, %v2001
    %v2164 = vadd.f32 %v1590, %v2106
    %v2165 = vadd.f32 %v1591, %v2003
    %v2166 = vadd.f32 %v1592, %v2005
    %v2167 = vadd.f32 %v1593, %v2109
    %v2168 = vadd.f32 %v1594, %v2009
    %v2169 = vadd.f32 %v1595, %v2011
    %v2170 = vadd.f32 %v1596, %v2114
    %v2171 = vadd.f32 %v1597, %v2013
    %v2172 = vadd.f32 %v1598, %v2015
    %v2173 = vadd.f32 %v1599, %v2117
    %v2174 = vadd.f32 %v1600, %v2019
    %v2175 = vadd.f32 %v1601, %v2021
    %v2176 = vadd.f32 %v1602, %v2122
    %v2177 = vadd.f32 %v1603, %v2023
    %v2178 = vadd.f32 %v1604, %v2025
    %v2179 = vadd.f32 %v1605, %v2125
    %v2180 = vadd.f32 %v1606, %v2029
    %v2181 = vadd.f32 %v1607, %v2031
    %v2182 = vadd.f32 %v1608, %v2130
    %v2183 = vadd.f32 %v1609, %v2033
    %v2184 = vadd.f32 %v1610, %v2035
    %v2185 = vadd.f32 %v1611, %v2133
    %v2186 = vadd.f32 %v1612, %v2039
    %v2187 = vadd.f32 %v1613, %v2041
    %v2188 = vadd.f32 %v1614, %v2138
    %v2189 = vadd.f32 %v1615, %v2043
    %v2190 = vadd.f32 %v1616, %v2045
    %v2191 = vadd.f32 %v1617, %v2141
    %vm2192 = vcmask 1041408
    %vm2193 = vcmask 1045508
    %vm2194 = vmor %vm2192, %vm2193
    %v2195 = vrot.slane %v60, 6
    %v2196 = vrot.slane %v2195, 4
    %v2197 = vrot.slane %v61, 6
    %v2198 = vsel %vm2194, %v2196, %v2197
    %v2199 = vrot.slane %v2197, 4
    %v2200 = vrot.slane %v62, 6
    %v2201 = vsel %vm2194, %v2199, %v2200
    %v2202 = vrot.slane %v63, 6
    %v2203 = vrot.slane %v2202, 4
    %v2204 = vrot.slane %v64, 6
    %v2205 = vsel %vm2194, %v2203, %v2204
    %v2206 = vrot.slane %v2204, 4
    %v2207 = vrot.slane %v65, 6
    %v2208 = vsel %vm2194, %v2206, %v2207
    %v2209 = vrot.slane %v66, 6
    %v2210 = vrot.slane %v2209, 4
    %v2211 = vrot.slane %v67, 6
    %v2212 = vsel %vm2194, %v2210, %v2211
    %v2213 = vrot.slane %v2211, 4
    %v2214 = vrot.slane %v68, 6
    %v2215 = vsel %vm2194, %v2213, %v2214
    %v2216 = vrot.slane %v69, 6
    %v2217 = vrot.slane %v2216, 4
    %v2218 = vrot.slane %v70, 6
    %v2219 = vsel %vm2194, %v2217, %v2218
    %v2220 = vrot.slane %v2218, 4
    %v2221 = vrot.slane %v71, 6
    %v2222 = vsel %vm2194, %v2220, %v2221
    %v2223 = vrot.slane %v72, 6
    %v2224 = vrot.slane %v2223, 4
    %v2225 = vrot.slane %v73, 6
    %v2226 = vsel %vm2194, %v2224, %v2225
    %v2227 = vrot.slane %v2225, 4
    %v2228 = vrot.slane %v74, 6
    %v2229 = vsel %vm2194, %v2227, %v2228
    %v2230 = vrot.slane %v75, 6
    %v2231 = vrot.slane %v2230, 4
    %v2232 = vrot.slane %v76, 6
    %v2233 = vsel %vm2194, %v2231, %v2232
    %v2234 = vrot.slane %v2232, 4
    %v2235 = vrot.slane %v77, 6
    %v2236 = vsel %vm2194, %v2234, %v2235
    %v2237 = vrot.slane %v78, 6
    %v2238 = vrot.slane %v2237, 4
    %v2239 = vrot.slane %v79, 6
    %v2240 = vsel %vm2194, %v2238, %v2239
    %v2241 = vrot.slane %v2239, 4
    %v2242 = vrot.slane %v80, 6
    %v2243 = vsel %vm2194, %v2241, %v2242
    %v2244 = vrot.slane %v81, 6
    %v2245 = vrot.slane %v2244, 4
    %v2246 = vrot.slane %v82, 6
    %v2247 = vsel %vm2194, %v2245, %v2246
    %v2248 = vrot.slane %v2246, 4
    %v2249 = vrot.slane %v83, 6
    %v2250 = vsel %vm2194, %v2248, %v2249
    %s2251 = scalar_lea.vmem [#allocation5], 768
    %v2252 = vld [vmem:[%s2251] sm:$0xff]
    %v2253 = vld [vmem:[%s2251 + $0x8] sm:$0xf]
    %v2254 = vld [vmem:[%s2251 + $0xc] sm:$0xff]
    %v2255 = vld [vmem:[%s2251 + $0x14] sm:$0xf]
    %v2256 = vld [vmem:[%s2251 + $0x18] sm:$0xff]
    %v2257 = vld [vmem:[%s2251 + $0x20] sm:$0xf]
    %v2258 = vld [vmem:[%s2251 + $0x24] sm:$0xff]
    %v2259 = vld [vmem:[%s2251 + $0x2c] sm:$0xf]
    %v2260 = vld [vmem:[%s2251 + $0x30] sm:$0xff]
    %v2261 = vld [vmem:[%s2251 + $0x38] sm:$0xf]
    %v2262 = vld [vmem:[%s2251 + $0x3c] sm:$0xff]
    %v2263 = vld [vmem:[%s2251 + $0x44] sm:$0xf]
    %v2264 = vld [vmem:[%s2251 + $0x48] sm:$0xff]
    %v2265 = vld [vmem:[%s2251 + $0x50] sm:$0xf]
    %v2266 = vld [vmem:[%s2251 + $0x54] sm:$0xff]
    %v2267 = vld [vmem:[%s2251 + $0x5c] sm:$0xf]
    %v2268 = vld [vmem:[%s2251 + $0x60] sm:$0xff]
    %v2269 = vld [vmem:[%s2251 + $0x68] sm:$0xf]
    %v2270 = vld [vmem:[%s2251 + $0x6c] sm:$0xff]
    %v2271 = vld [vmem:[%s2251 + $0x74] sm:$0xf]
    %v2272 = vld [vmem:[%s2251 + $0x78] sm:$0xff]
    %v2273 = vld [vmem:[%s2251 + $0x80] sm:$0xf]
    %v2274 = vld [vmem:[%s2251 + $0x84] sm:$0xff]
    %v2275 = vld [vmem:[%s2251 + $0x8c] sm:$0xf]
    %v2276 = vld [vmem:[%s2251 + $0x90] sm:$0xff]
    %v2277 = vld [vmem:[%s2251 + $0x98] sm:$0xf]
    %v2278 = vld [vmem:[%s2251 + $0x9c] sm:$0xff]
    %v2279 = vld [vmem:[%s2251 + $0xa4] sm:$0xf]
    %v2280 = vld [vmem:[%s2251 + $0xa8] sm:$0xff]
    %v2281 = vld [vmem:[%s2251 + $0xb0] sm:$0xf]
    %v2282 = vld [vmem:[%s2251 + $0xb4] sm:$0xff]
    %v2283 = vld [vmem:[%s2251 + $0xbc] sm:$0xf]
    %v2284 = vunpack.c.l.b16 %v2198
    %v2285 = vunpack.c.l.b16 %v2201
    %v2286 = vunpack.c.l.b16 %v2205
    %v2287 = vunpack.c.l.b16 %v2208
    %v2288 = vunpack.c.l.b16 %v2212
    %v2289 = vunpack.c.l.b16 %v2215
    %v2290 = vunpack.c.l.b16 %v2219
    %v2291 = vunpack.c.l.b16 %v2222
    %v2292 = vunpack.c.l.b16 %v2226
    %v2293 = vunpack.c.l.b16 %v2229
    %v2294 = vunpack.c.l.b16 %v2233
    %v2295 = vunpack.c.l.b16 %v2236
    %v2296 = vunpack.c.l.b16 %v2240
    %v2297 = vunpack.c.l.b16 %v2243
    %v2298 = vunpack.c.l.b16 %v2247
    %v2299 = vunpack.c.l.b16 %v2250
    %v2300 = vpack.c.b16 %v2285, %v2284
    %v2301 = vpack.c.b16 %v2287, %v2286
    %v2302 = vpack.c.b16 %v2289, %v2288
    %v2303 = vpack.c.b16 %v2291, %v2290
    %v2304 = vpack.c.b16 %v2293, %v2292
    %v2305 = vpack.c.b16 %v2295, %v2294
    %v2306 = vpack.c.b16 %v2297, %v2296
    %v2307 = vpack.c.b16 %v2299, %v2298
    %v2348 = vunpack.c.l.b16 %v2252
    %v2349 = vunpack.c.h.b16 %v2252
    %v2350 = vunpack.c.l.b16 %v2253
    %v2351 = vunpack.c.l.b16 %v2254
    %v2352 = vunpack.c.h.b16 %v2254
    %v2353 = vunpack.c.l.b16 %v2255
    %v2354 = vunpack.c.l.b16 %v2256
    %v2355 = vunpack.c.h.b16 %v2256
    %v2356 = vunpack.c.l.b16 %v2257
    %v2357 = vunpack.c.l.b16 %v2258
    %v2358 = vunpack.c.h.b16 %v2258
    %v2359 = vunpack.c.l.b16 %v2259
    %v2360 = vunpack.c.l.b16 %v2260
    %v2361 = vunpack.c.h.b16 %v2260
    %v2362 = vunpack.c.l.b16 %v2261
    %v2363 = vunpack.c.l.b16 %v2262
    %v2364 = vunpack.c.h.b16 %v2262
    %v2365 = vunpack.c.l.b16 %v2263
    %v2366 = vunpack.c.l.b16 %v2264
    %v2367 = vunpack.c.h.b16 %v2264
    %v2368 = vunpack.c.l.b16 %v2265
    %v2369 = vunpack.c.l.b16 %v2266
    %v2370 = vunpack.c.h.b16 %v2266
    %v2371 = vunpack.c.l.b16 %v2267
    %v2372 = vunpack.c.l.b16 %v2268
    %v2373 = vunpack.c.h.b16 %v2268
    %v2374 = vunpack.c.l.b16 %v2269
    %v2375 = vunpack.c.l.b16 %v2270
    %v2376 = vunpack.c.h.b16 %v2270
    %v2377 = vunpack.c.l.b16 %v2271
    %v2378 = vunpack.c.l.b16 %v2272
    %v2379 = vunpack.c.h.b16 %v2272
    %v2380 = vunpack.c.l.b16 %v2273
    %v2381 = vunpack.c.l.b16 %v2274
    %v2382 = vunpack.c.h.b16 %v2274
    %v2383 = vunpack.c.l.b16 %v2275
    %v2384 = vunpack.c.l.b16 %v2276
    %v2385 = vunpack.c.h.b16 %v2276
    %v2386 = vunpack.c.l.b16 %v2277
    %v2387 = vunpack.c.l.b16 %v2278
    %v2388 = vunpack.c.h.b16 %v2278
    %v2389 = vunpack.c.l.b16 %v2279
    %v2390 = vunpack.c.l.b16 %v2280
    %v2391 = vunpack.c.h.b16 %v2280
    %v2392 = vunpack.c.l.b16 %v2281
    %v2393 = vunpack.c.l.b16 %v2282
    %v2394 = vunpack.c.h.b16 %v2282
    %v2395 = vunpack.c.l.b16 %v2283
    %v2396 = vpack.c.b16 %v2351, %v2348
    %v2397 = vpack.c.b16 %v2352, %v2349
    %v2398 = vpack.c.b16 %v2353, %v2350
    %v2399 = vpack.c.b16 %v2357, %v2354
    %v2400 = vpack.c.b16 %v2358, %v2355
    %v2401 = vpack.c.b16 %v2359, %v2356
    %v2402 = vpack.c.b16 %v2363, %v2360
    %v2403 = vpack.c.b16 %v2364, %v2361
    %v2404 = vpack.c.b16 %v2365, %v2362
    %v2405 = vpack.c.b16 %v2369, %v2366
    %v2406 = vpack.c.b16 %v2370, %v2367
    %v2407 = vpack.c.b16 %v2371, %v2368
    %v2408 = vpack.c.b16 %v2375, %v2372
    %v2409 = vpack.c.b16 %v2376, %v2373
    %v2410 = vpack.c.b16 %v2377, %v2374
    %v2411 = vpack.c.b16 %v2381, %v2378
    %v2412 = vpack.c.b16 %v2382, %v2379
    %v2413 = vpack.c.b16 %v2383, %v2380
    %v2414 = vpack.c.b16 %v2387, %v2384
    %v2415 = vpack.c.b16 %v2388, %v2385
    %v2416 = vpack.c.b16 %v2389, %v2386
    %v2417 = vpack.c.b16 %v2393, %v2390
    %v2418 = vpack.c.b16 %v2394, %v2391
    %v2419 = vpack.c.b16 %v2395, %v2392
    %2444 = vmatprep.subr.bf16.mxu0 %v2418
    %2445 = vmatpush1.bf16.msra.mxu0 %v2417
    %2446 = vmatprep.subr.bf16.mxu0 %v2415
    %2447 = vmatpush1.bf16.msra.mxu0 %v2414
    %2448 = vmatprep.subr.bf16.mxu0 %v2412
    %2449 = vmatpush1.bf16.msra.mxu0 %v2411
    %2450 = vmatprep.subr.bf16.mxu0 %v2409
    %2451 = vmatpush1.bf16.msra.mxu0 %v2408
    %2452 = vmatprep.subr.bf16.mxu0 %v2406
    %2453 = vmatpush1.bf16.msra.mxu0 %v2405
    %2454 = vmatprep.subr.bf16.mxu0 %v2403
    %2455 = vmatpush1.bf16.msra.mxu0 %v2402
    %2456 = vmatprep.subr.bf16.mxu0 %v2400
    %2457 = vmatpush1.bf16.msra.mxu0 %v2399
    %2458 = vmatprep.subr.bf16.mxu0 %v2397
    %2459 = vmatpush1.bf16.msra.mxu0 %v2396
    %2460 = vmatprep.subr.bf16.mxu0 0
    %2461 = vmatpush2.bf16.msra.mxu0 0
    %2462 = vmatprep.subr.bf16.mxu0 0
    %2463 = vmatpush2.bf16.msra.mxu0 0
    %2464 = vmatprep.subr.bf16.mxu0 0
    %2465 = vmatpush2.bf16.msra.mxu0 0
    %2466 = vmatprep.subr.bf16.mxu0 0
    %2467 = vmatpush2.bf16.msra.mxu0 0
    %2468 = vmatprep.subr.bf16.mxu0 0
    %2469 = vmatpush2.bf16.msra.mxu0 0
    %2470 = vmatprep.subr.bf16.mxu0 0
    %2471 = vmatpush2.bf16.msra.mxu0 0
    %2472 = vmatprep.subr.bf16.mxu0 0
    %2473 = vmatpush2.bf16.msra.mxu0 0
    %2474 = vmatprep.subr.bf16.mxu0 0
    %2475 = vmatpush2.bf16.msra.mxu0 0
    %2476 = vmatprep.mubr.bf16.mxu0 0
    %2477 = vmatmul.mubr.bf16.gmra.mxu0 %v2300
    %v2478 = vpop.f32.mrf.mxu0
    %v2479 = vadd.f32 0.0, %v2478
    %v2480 = vpop.f32.mrf.mxu0
    %v2481 = vadd.f32 0.0, %v2480
    %v2482 = vpop.f32.mrf.mxu0
    %v2483 = vadd.f32 0.0, %v2482
    %v2484 = vpop.f32.mrf.mxu0
    %v2485 = vadd.f32 0.0, %v2484
    %2486 = vmatprep.mubr.bf16.mxu0 0
    %2487 = vmatmul.mubr.bf16.gmra.mxu0 %v2301
    %v2488 = vpop.f32.mrf.mxu0
    %v2489 = vadd.f32 0.0, %v2488
    %v2490 = vpop.f32.mrf.mxu0
    %v2491 = vadd.f32 0.0, %v2490
    %v2492 = vpop.f32.mrf.mxu0
    %v2493 = vadd.f32 0.0, %v2492
    %v2494 = vpop.f32.mrf.mxu0
    %v2495 = vadd.f32 0.0, %v2494
    %2496 = vmatprep.mubr.bf16.mxu0 0
    %2497 = vmatmul.mubr.bf16.gmra.mxu0 %v2302
    %v2498 = vpop.f32.mrf.mxu0
    %v2499 = vadd.f32 0.0, %v2498
    %v2500 = vpop.f32.mrf.mxu0
    %v2501 = vadd.f32 0.0, %v2500
    %v2502 = vpop.f32.mrf.mxu0
    %v2503 = vadd.f32 0.0, %v2502
    %v2504 = vpop.f32.mrf.mxu0
    %v2505 = vadd.f32 0.0, %v2504
    %2506 = vmatprep.mubr.bf16.mxu0 0
    %2507 = vmatmul.mubr.bf16.gmra.mxu0 %v2303
    %v2508 = vpop.f32.mrf.mxu0
    %v2509 = vadd.f32 0.0, %v2508
    %v2510 = vpop.f32.mrf.mxu0
    %v2511 = vadd.f32 0.0, %v2510
    %v2512 = vpop.f32.mrf.mxu0
    %v2513 = vadd.f32 0.0, %v2512
    %v2514 = vpop.f32.mrf.mxu0
    %v2515 = vadd.f32 0.0, %v2514
    %2516 = vmatprep.mubr.bf16.mxu0 0
    %2517 = vmatmul.mubr.bf16.gmra.mxu0 %v2304
    %v2518 = vpop.f32.mrf.mxu0
    %v2519 = vadd.f32 0.0, %v2518
    %v2520 = vpop.f32.mrf.mxu0
    %v2521 = vadd.f32 0.0, %v2520
    %v2522 = vpop.f32.mrf.mxu0
    %v2523 = vadd.f32 0.0, %v2522
    %v2524 = vpop.f32.mrf.mxu0
    %v2525 = vadd.f32 0.0, %v2524
    %2526 = vmatprep.mubr.bf16.mxu0 0
    %2527 = vmatmul.mubr.bf16.gmra.mxu0 %v2305
    %v2528 = vpop.f32.mrf.mxu0
    %v2529 = vadd.f32 0.0, %v2528
    %v2530 = vpop.f32.mrf.mxu0
    %v2531 = vadd.f32 0.0, %v2530
    %v2532 = vpop.f32.mrf.mxu0
    %v2533 = vadd.f32 0.0, %v2532
    %v2534 = vpop.f32.mrf.mxu0
    %v2535 = vadd.f32 0.0, %v2534
    %2536 = vmatprep.mubr.bf16.mxu0 0
    %2537 = vmatmul.mubr.bf16.gmra.mxu0 %v2306
    %v2538 = vpop.f32.mrf.mxu0
    %v2539 = vadd.f32 0.0, %v2538
    %v2540 = vpop.f32.mrf.mxu0
    %v2541 = vadd.f32 0.0, %v2540
    %v2542 = vpop.f32.mrf.mxu0
    %v2543 = vadd.f32 0.0, %v2542
    %v2544 = vpop.f32.mrf.mxu0
    %v2545 = vadd.f32 0.0, %v2544
    %2546 = vmatprep.mubr.bf16.mxu0 0
    %2547 = vmatmul.mubr.bf16.gmra.mxu0 %v2307
    %v2548 = vpop.f32.mrf.mxu0
    %v2549 = vadd.f32 0.0, %v2548
    %v2550 = vpop.f32.mrf.mxu0
    %v2551 = vadd.f32 0.0, %v2550
    %v2552 = vpop.f32.mrf.mxu0
    %v2553 = vadd.f32 0.0, %v2552
    %v2554 = vpop.f32.mrf.mxu0
    %v2555 = vadd.f32 0.0, %v2554
    %2556 = vdwg.mxu0
    %2557 = vmatprep.subr.bf16.mxu0 0
    %2558 = vmatpush1.bf16.msra.mxu0 %v2419
    %2559 = vmatprep.subr.bf16.mxu0 0
    %2560 = vmatpush1.bf16.msra.mxu0 %v2416
    %2561 = vmatprep.subr.bf16.mxu0 0
    %2562 = vmatpush1.bf16.msra.mxu0 %v2413
    %2563 = vmatprep.subr.bf16.mxu0 0
    %2564 = vmatpush1.bf16.msra.mxu0 %v2410
    %2565 = vmatprep.subr.bf16.mxu0 0
    %2566 = vmatpush1.bf16.msra.mxu0 %v2407
    %2567 = vmatprep.subr.bf16.mxu0 0
    %2568 = vmatpush1.bf16.msra.mxu0 %v2404
    %2569 = vmatprep.subr.bf16.mxu0 0
    %2570 = vmatpush1.bf16.msra.mxu0 %v2401
    %2571 = vmatprep.subr.bf16.mxu0 0
    %2572 = vmatpush1.bf16.msra.mxu0 %v2398
    %2573 = vmatprep.subr.bf16.mxu0 0
    %2574 = vmatpush2.bf16.msra.mxu0 0
    %2575 = vmatprep.subr.bf16.mxu0 0
    %2576 = vmatpush2.bf16.msra.mxu0 0
    %2577 = vmatprep.subr.bf16.mxu0 0
    %2578 = vmatpush2.bf16.msra.mxu0 0
    %2579 = vmatprep.subr.bf16.mxu0 0
    %2580 = vmatpush2.bf16.msra.mxu0 0
    %2581 = vmatprep.subr.bf16.mxu0 0
    %2582 = vmatpush2.bf16.msra.mxu0 0
    %2583 = vmatprep.subr.bf16.mxu0 0
    %2584 = vmatpush2.bf16.msra.mxu0 0
    %2585 = vmatprep.subr.bf16.mxu0 0
    %2586 = vmatpush2.bf16.msra.mxu0 0
    %2587 = vmatprep.subr.bf16.mxu0 0
    %2588 = vmatpush2.bf16.msra.mxu0 0
    %2589 = vmatprep.mubr.bf16.mxu0 0
    %2590 = vmatmul.mubr.bf16.gmra.mxu0 %v2300
    %v2591 = vpop.f32.mrf.mxu0
    %v2592 = vadd.f32 0.0, %v2591
    %v2593 = vpop.f32.mrf.mxu0
    %v2594 = vpop.f32.mrf.mxu0
    %v2595 = vadd.f32 0.0, %v2594
    %v2596 = vpop.f32.mrf.mxu0
    %2597 = vmatprep.mubr.bf16.mxu0 0
    %2598 = vmatmul.mubr.bf16.gmra.mxu0 %v2301
    %v2599 = vpop.f32.mrf.mxu0
    %v2600 = vadd.f32 0.0, %v2599
    %v2601 = vpop.f32.mrf.mxu0
    %v2602 = vpop.f32.mrf.mxu0
    %v2603 = vadd.f32 0.0, %v2602
    %v2604 = vpop.f32.mrf.mxu0
    %2605 = vmatprep.mubr.bf16.mxu0 0
    %2606 = vmatmul.mubr.bf16.gmra.mxu0 %v2302
    %v2607 = vpop.f32.mrf.mxu0
    %v2608 = vadd.f32 0.0, %v2607
    %v2609 = vpop.f32.mrf.mxu0
    %v2610 = vpop.f32.mrf.mxu0
    %v2611 = vadd.f32 0.0, %v2610
    %v2612 = vpop.f32.mrf.mxu0
    %2613 = vmatprep.mubr.bf16.mxu0 0
    %2614 = vmatmul.mubr.bf16.gmra.mxu0 %v2303
    %v2615 = vpop.f32.mrf.mxu0
    %v2616 = vadd.f32 0.0, %v2615
    %v2617 = vpop.f32.mrf.mxu0
    %v2618 = vpop.f32.mrf.mxu0
    %v2619 = vadd.f32 0.0, %v2618
    %v2620 = vpop.f32.mrf.mxu0
    %2621 = vmatprep.mubr.bf16.mxu0 0
    %2622 = vmatmul.mubr.bf16.gmra.mxu0 %v2304
    %v2623 = vpop.f32.mrf.mxu0
    %v2624 = vadd.f32 0.0, %v2623
    %v2625 = vpop.f32.mrf.mxu0
    %v2626 = vpop.f32.mrf.mxu0
    %v2627 = vadd.f32 0.0, %v2626
    %v2628 = vpop.f32.mrf.mxu0
    %2629 = vmatprep.mubr.bf16.mxu0 0
    %2630 = vmatmul.mubr.bf16.gmra.mxu0 %v2305
    %v2631 = vpop.f32.mrf.mxu0
    %v2632 = vadd.f32 0.0, %v2631
    %v2633 = vpop.f32.mrf.mxu0
    %v2634 = vpop.f32.mrf.mxu0
    %v2635 = vadd.f32 0.0, %v2634
    %v2636 = vpop.f32.mrf.mxu0
    %2637 = vmatprep.mubr.bf16.mxu0 0
    %2638 = vmatmul.mubr.bf16.gmra.mxu0 %v2306
    %v2639 = vpop.f32.mrf.mxu0
    %v2640 = vadd.f32 0.0, %v2639
    %v2641 = vpop.f32.mrf.mxu0
    %v2642 = vpop.f32.mrf.mxu0
    %v2643 = vadd.f32 0.0, %v2642
    %v2644 = vpop.f32.mrf.mxu0
    %2645 = vmatprep.mubr.bf16.mxu0 0
    %2646 = vmatmul.mubr.bf16.gmra.mxu0 %v2307
    %v2647 = vpop.f32.mrf.mxu0
    %v2648 = vadd.f32 0.0, %v2647
    %v2649 = vpop.f32.mrf.mxu0
    %v2650 = vpop.f32.mrf.mxu0
    %v2651 = vadd.f32 0.0, %v2650
    %v2652 = vpop.f32.mrf.mxu0
    %2653 = vdwg.mxu0
    %v2654 = vadd.f32 %v2144, %v2479
    %v2655 = vadd.f32 %v2145, %v2481
    %v2656 = vadd.f32 %v2146, %v2592
    %v2657 = vadd.f32 %v2147, %v2483
    %v2658 = vadd.f32 %v2148, %v2485
    %v2659 = vadd.f32 %v2149, %v2595
    %v2660 = vadd.f32 %v2150, %v2489
    %v2661 = vadd.f32 %v2151, %v2491
    %v2662 = vadd.f32 %v2152, %v2600
    %v2663 = vadd.f32 %v2153, %v2493
    %v2664 = vadd.f32 %v2154, %v2495
    %v2665 = vadd.f32 %v2155, %v2603
    %v2666 = vadd.f32 %v2156, %v2499
    %v2667 = vadd.f32 %v2157, %v2501
    %v2668 = vadd.f32 %v2158, %v2608
    %v2669 = vadd.f32 %v2159, %v2503
    %v2670 = vadd.f32 %v2160, %v2505
    %v2671 = vadd.f32 %v2161, %v2611
    %v2672 = vadd.f32 %v2162, %v2509
    %v2673 = vadd.f32 %v2163, %v2511
    %v2674 = vadd.f32 %v2164, %v2616
    %v2675 = vadd.f32 %v2165, %v2513
    %v2676 = vadd.f32 %v2166, %v2515
    %v2677 = vadd.f32 %v2167, %v2619
    %v2678 = vadd.f32 %v2168, %v2519
    %v2679 = vadd.f32 %v2169, %v2521
    %v2680 = vadd.f32 %v2170, %v2624
    %v2681 = vadd.f32 %v2171, %v2523
    %v2682 = vadd.f32 %v2172, %v2525
    %v2683 = vadd.f32 %v2173, %v2627
    %v2684 = vadd.f32 %v2174, %v2529
    %v2685 = vadd.f32 %v2175, %v2531
    %v2686 = vadd.f32 %v2176, %v2632
    %v2687 = vadd.f32 %v2177, %v2533
    %v2688 = vadd.f32 %v2178, %v2535
    %v2689 = vadd.f32 %v2179, %v2635
    %v2690 = vadd.f32 %v2180, %v2539
    %v2691 = vadd.f32 %v2181, %v2541
    %v2692 = vadd.f32 %v2182, %v2640
    %v2693 = vadd.f32 %v2183, %v2543
    %v2694 = vadd.f32 %v2184, %v2545
    %v2695 = vadd.f32 %v2185, %v2643
    %v2696 = vadd.f32 %v2186, %v2549
    %v2697 = vadd.f32 %v2187, %v2551
    %v2698 = vadd.f32 %v2188, %v2648
    %v2699 = vadd.f32 %v2189, %v2553
    %v2700 = vadd.f32 %v2190, %v2555
    %v2701 = vadd.f32 %v2191, %v2651
    %vm2702 = vsmask.f32 1280
    %vm2703 = vsmask.f32 5392
    %vm2704 = vmor %vm2702, %vm2703
    %v2705 = vrot.slane %v120, 6
    %v2706 = vrot.slane %v123, 7
    %v2707 = vor.u32 %v2705, %v2706
    %v2708 = vrot.slane %v2707, 4
    %v2709 = vrot.slane %v133, 6
    %v2710 = vrot.slane %v129, 7
    %v2711 = vor.u32 %v2709, %v2710
    %v2712 = vsel %vm2704, %v2708, %v2711
    %v2713 = vrot.slane %v2711, 4
    %v2714 = vrot.slane %v1630, 6
    %v2715 = vrot.slane %v139, 7
    %v2716 = vor.u32 %v2714, %v2715
    %v2717 = vsel %vm2704, %v2713, %v2716
    %v2718 = vrot.slane %v144, 6
    %v2719 = vrot.slane %v147, 7
    %v2720 = vor.u32 %v2718, %v2719
    %v2721 = vrot.slane %v2720, 4
    %v2722 = vrot.slane %v157, 6
    %v2723 = vrot.slane %v153, 7
    %v2724 = vor.u32 %v2722, %v2723
    %v2725 = vsel %vm2704, %v2721, %v2724
    %v2726 = vrot.slane %v2724, 4
    %v2727 = vrot.slane %v1645, 6
    %v2728 = vrot.slane %v163, 7
    %v2729 = vor.u32 %v2727, %v2728
    %v2730 = vsel %vm2704, %v2726, %v2729
    %v2731 = vrot.slane %v168, 6
    %v2732 = vrot.slane %v171, 7
    %v2733 = vor.u32 %v2731, %v2732
    %v2734 = vrot.slane %v2733, 4
    %v2735 = vrot.slane %v181, 6
    %v2736 = vrot.slane %v177, 7
    %v2737 = vor.u32 %v2735, %v2736
    %v2738 = vsel %vm2704, %v2734, %v2737
    %v2739 = vrot.slane %v2737, 4
    %v2740 = vrot.slane %v1660, 6
    %v2741 = vrot.slane %v187, 7
    %v2742 = vor.u32 %v2740, %v2741
    %v2743 = vsel %vm2704, %v2739, %v2742
    %v2744 = vrot.slane %v192, 6
    %v2745 = vrot.slane %v195, 7
    %v2746 = vor.u32 %v2744, %v2745
    %v2747 = vrot.slane %v2746, 4
    %v2748 = vrot.slane %v205, 6
    %v2749 = vrot.slane %v201, 7
    %v2750 = vor.u32 %v2748, %v2749
    %v2751 = vsel %vm2704, %v2747, %v2750
    %v2752 = vrot.slane %v2750, 4
    %v2753 = vrot.slane %v1675, 6
    %v2754 = vrot.slane %v211, 7
    %v2755 = vor.u32 %v2753, %v2754
    %v2756 = vsel %vm2704, %v2752, %v2755
    %v2757 = vrot.slane %v216, 6
    %v2758 = vrot.slane %v219, 7
    %v2759 = vor.u32 %v2757, %v2758
    %v2760 = vrot.slane %v2759, 4
    %v2761 = vrot.slane %v229, 6
    %v2762 = vrot.slane %v225, 7
    %v2763 = vor.u32 %v2761, %v2762
    %v2764 = vsel %vm2704, %v2760, %v2763
    %v2765 = vrot.slane %v2763, 4
    %v2766 = vrot.slane %v1690, 6
    %v2767 = vrot.slane %v235, 7
    %v2768 = vor.u32 %v2766, %v2767
    %v2769 = vsel %vm2704, %v2765, %v2768
    %v2770 = vrot.slane %v240, 6
    %v2771 = vrot.slane %v243, 7
    %v2772 = vor.u32 %v2770, %v2771
    %v2773 = vrot.slane %v2772, 4
    %v2774 = vrot.slane %v253, 6
    %v2775 = vrot.slane %v249, 7
    %v2776 = vor.u32 %v2774, %v2775
    %v2777 = vsel %vm2704, %v2773, %v2776
    %v2778 = vrot.slane %v2776, 4
    %v2779 = vrot.slane %v1705, 6
    %v2780 = vrot.slane %v259, 7
    %v2781 = vor.u32 %v2779, %v2780
    %v2782 = vsel %vm2704, %v2778, %v2781
    %v2783 = vrot.slane %v264, 6
    %v2784 = vrot.slane %v267, 7
    %v2785 = vor.u32 %v2783, %v2784
    %v2786 = vrot.slane %v2785, 4
    %v2787 = vrot.slane %v277, 6
    %v2788 = vrot.slane %v273, 7
    %v2789 = vor.u32 %v2787, %v2788
    %v2790 = vsel %vm2704, %v2786, %v2789
    %v2791 = vrot.slane %v2789, 4
    %v2792 = vrot.slane %v1720, 6
    %v2793 = vrot.slane %v283, 7
    %v2794 = vor.u32 %v2792, %v2793
    %v2795 = vsel %vm2704, %v2791, %v2794
    %v2796 = vrot.slane %v288, 6
    %v2797 = vrot.slane %v291, 7
    %v2798 = vor.u32 %v2796, %v2797
    %v2799 = vrot.slane %v2798, 4
    %v2800 = vrot.slane %v301, 6
    %v2801 = vrot.slane %v297, 7
    %v2802 = vor.u32 %v2800, %v2801
    %v2803 = vsel %vm2704, %v2799, %v2802
    %v2804 = vrot.slane %v2802, 4
    %v2805 = vrot.slane %v1735, 6
    %v2806 = vrot.slane %v307, 7
    %v2807 = vor.u32 %v2805, %v2806
    %v2808 = vsel %vm2704, %v2804, %v2807
    %s2809 = scalar_lea.vmem [#allocation5], 960
    %v2810 = vld [vmem:[%s2809] sm:$0xff]
    %v2811 = vld [vmem:[%s2809 + $0x8] sm:$0xf]
    %v2812 = vld [vmem:[%s2809 + $0xc] sm:$0xff]
    %v2813 = vld [vmem:[%s2809 + $0x14] sm:$0xf]
    %v2814 = vld [vmem:[%s2809 + $0x18] sm:$0xff]
    %v2815 = vld [vmem:[%s2809 + $0x20] sm:$0xf]
    %v2816 = vld [vmem:[%s2809 + $0x24] sm:$0xff]
    %v2817 = vld [vmem:[%s2809 + $0x2c] sm:$0xf]
    %v2818 = vld [vmem:[%s2809 + $0x30] sm:$0xff]
    %v2819 = vld [vmem:[%s2809 + $0x38] sm:$0xf]
    %v2820 = vld [vmem:[%s2809 + $0x3c] sm:$0xff]
    %v2821 = vld [vmem:[%s2809 + $0x44] sm:$0xf]
    %v2822 = vld [vmem:[%s2809 + $0x48] sm:$0xff]
    %v2823 = vld [vmem:[%s2809 + $0x50] sm:$0xf]
    %v2824 = vld [vmem:[%s2809 + $0x54] sm:$0xff]
    %v2825 = vld [vmem:[%s2809 + $0x5c] sm:$0xf]
    %v2826 = vld [vmem:[%s2809 + $0x60] sm:$0xff]
    %v2827 = vld [vmem:[%s2809 + $0x68] sm:$0xf]
    %v2828 = vld [vmem:[%s2809 + $0x6c] sm:$0xff]
    %v2829 = vld [vmem:[%s2809 + $0x74] sm:$0xf]
    %v2830 = vld [vmem:[%s2809 + $0x78] sm:$0xff]
    %v2831 = vld [vmem:[%s2809 + $0x80] sm:$0xf]
    %v2832 = vld [vmem:[%s2809 + $0x84] sm:$0xff]
    %v2833 = vld [vmem:[%s2809 + $0x8c] sm:$0xf]
    %v2834 = vld [vmem:[%s2809 + $0x90] sm:$0xff]
    %v2835 = vld [vmem:[%s2809 + $0x98] sm:$0xf]
    %v2836 = vld [vmem:[%s2809 + $0x9c] sm:$0xff]
    %v2837 = vld [vmem:[%s2809 + $0xa4] sm:$0xf]
    %v2838 = vld [vmem:[%s2809 + $0xa8] sm:$0xff]
    %v2839 = vld [vmem:[%s2809 + $0xb0] sm:$0xf]
    %v2840 = vld [vmem:[%s2809 + $0xb4] sm:$0xff]
    %v2841 = vld [vmem:[%s2809 + $0xbc] sm:$0xf]
    %v2842 = vunpack.c.l.b16 %v2712
    %v2843 = vunpack.c.l.b16 %v2717
    %v2844 = vunpack.c.l.b16 %v2725
    %v2845 = vunpack.c.l.b16 %v2730
    %v2846 = vunpack.c.l.b16 %v2738
    %v2847 = vunpack.c.l.b16 %v2743
    %v2848 = vunpack.c.l.b16 %v2751
    %v2849 = vunpack.c.l.b16 %v2756
    %v2850 = vunpack.c.l.b16 %v2764
    %v2851 = vunpack.c.l.b16 %v2769
    %v2852 = vunpack.c.l.b16 %v2777
    %v2853 = vunpack.c.l.b16 %v2782
    %v2854 = vunpack.c.l.b16 %v2790
    %v2855 = vunpack.c.l.b16 %v2795
    %v2856 = vunpack.c.l.b16 %v2803
    %v2857 = vunpack.c.l.b16 %v2808
    %v2858 = vpack.c.b16 %v2843, %v2842
    %v2859 = vpack.c.b16 %v2845, %v2844
    %v2860 = vpack.c.b16 %v2847, %v2846
    %v2861 = vpack.c.b16 %v2849, %v2848
    %v2862 = vpack.c.b16 %v2851, %v2850
    %v2863 = vpack.c.b16 %v2853, %v2852
    %v2864 = vpack.c.b16 %v2855, %v2854
    %v2865 = vpack.c.b16 %v2857, %v2856
    %v2906 = vunpack.c.l.b16 %v2810
    %v2907 = vunpack.c.h.b16 %v2810
    %v2908 = vunpack.c.l.b16 %v2811
    %v2909 = vunpack.c.l.b16 %v2812
    %v2910 = vunpack.c.h.b16 %v2812
    %v2911 = vunpack.c.l.b16 %v2813
    %v2912 = vunpack.c.l.b16 %v2814
    %v2913 = vunpack.c.h.b16 %v2814
    %v2914 = vunpack.c.l.b16 %v2815
    %v2915 = vunpack.c.l.b16 %v2816
    %v2916 = vunpack.c.h.b16 %v2816
    %v2917 = vunpack.c.l.b16 %v2817
    %v2918 = vunpack.c.l.b16 %v2818
    %v2919 = vunpack.c.h.b16 %v2818
    %v2920 = vunpack.c.l.b16 %v2819
    %v2921 = vunpack.c.l.b16 %v2820
    %v2922 = vunpack.c.h.b16 %v2820
    %v2923 = vunpack.c.l.b16 %v2821
    %v2924 = vunpack.c.l.b16 %v2822
    %v2925 = vunpack.c.h.b16 %v2822
    %v2926 = vunpack.c.l.b16 %v2823
    %v2927 = vunpack.c.l.b16 %v2824
    %v2928 = vunpack.c.h.b16 %v2824
    %v2929 = vunpack.c.l.b16 %v2825
    %v2930 = vunpack.c.l.b16 %v2826
    %v2931 = vunpack.c.h.b16 %v2826
    %v2932 = vunpack.c.l.b16 %v2827
    %v2933 = vunpack.c.l.b16 %v2828
    %v2934 = vunpack.c.h.b16 %v2828
    %v2935 = vunpack.c.l.b16 %v2829
    %v2936 = vunpack.c.l.b16 %v2830
    %v2937 = vunpack.c.h.b16 %v2830
    %v2938 = vunpack.c.l.b16 %v2831
    %v2939 = vunpack.c.l.b16 %v2832
    %v2940 = vunpack.c.h.b16 %v2832
    %v2941 = vunpack.c.l.b16 %v2833
    %v2942 = vunpack.c.l.b16 %v2834
    %v2943 = vunpack.c.h.b16 %v2834
    %v2944 = vunpack.c.l.b16 %v2835
    %v2945 = vunpack.c.l.b16 %v2836
    %v2946 = vunpack.c.h.b16 %v2836
    %v2947 = vunpack.c.l.b16 %v2837
    %v2948 = vunpack.c.l.b16 %v2838
    %v2949 = vunpack.c.h.b16 %v2838
    %v2950 = vunpack.c.l.b16 %v2839
    %v2951 = vunpack.c.l.b16 %v2840
    %v2952 = vunpack.c.h.b16 %v2840
    %v2953 = vunpack.c.l.b16 %v2841
    %v2954 = vpack.c.b16 %v2909, %v2906
    %v2955 = vpack.c.b16 %v2910, %v2907
    %v2956 = vpack.c.b16 %v2911, %v2908
    %v2957 = vpack.c.b16 %v2915, %v2912
    %v2958 = vpack.c.b16 %v2916, %v2913
    %v2959 = vpack.c.b16 %v2917, %v2914
    %v2960 = vpack.c.b16 %v2921, %v2918
    %v2961 = vpack.c.b16 %v2922, %v2919
    %v2962 = vpack.c.b16 %v2923, %v2920
    %v2963 = vpack.c.b16 %v2927, %v2924
    %v2964 = vpack.c.b16 %v2928, %v2925
    %v2965 = vpack.c.b16 %v2929, %v2926
    %v2966 = vpack.c.b16 %v2933, %v2930
    %v2967 = vpack.c.b16 %v2934, %v2931
    %v2968 = vpack.c.b16 %v2935, %v2932
    %v2969 = vpack.c.b16 %v2939, %v2936
    %v2970 = vpack.c.b16 %v2940, %v2937
    %v2971 = vpack.c.b16 %v2941, %v2938
    %v2972 = vpack.c.b16 %v2945, %v2942
    %v2973 = vpack.c.b16 %v2946, %v2943
    %v2974 = vpack.c.b16 %v2947, %v2944
    %v2975 = vpack.c.b16 %v2951, %v2948
    %v2976 = vpack.c.b16 %v2952, %v2949
    %v2977 = vpack.c.b16 %v2953, %v2950
    %3002 = vmatprep.subr.bf16.mxu0 %v2976
    %3003 = vmatpush1.bf16.msra.mxu0 %v2975
    %3004 = vmatprep.subr.bf16.mxu0 %v2973
    %3005 = vmatpush1.bf16.msra.mxu0 %v2972
    %3006 = vmatprep.subr.bf16.mxu0 %v2970
    %3007 = vmatpush1.bf16.msra.mxu0 %v2969
    %3008 = vmatprep.subr.bf16.mxu0 %v2967
    %3009 = vmatpush1.bf16.msra.mxu0 %v2966
    %3010 = vmatprep.subr.bf16.mxu0 %v2964
    %3011 = vmatpush1.bf16.msra.mxu0 %v2963
    %3012 = vmatprep.subr.bf16.mxu0 %v2961
    %3013 = vmatpush1.bf16.msra.mxu0 %v2960
    %3014 = vmatprep.subr.bf16.mxu0 %v2958
    %3015 = vmatpush1.bf16.msra.mxu0 %v2957
    %3016 = vmatprep.subr.bf16.mxu0 %v2955
    %3017 = vmatpush1.bf16.msra.mxu0 %v2954
    %3018 = vmatprep.subr.bf16.mxu0 0
    %3019 = vmatpush2.bf16.msra.mxu0 0
    %3020 = vmatprep.subr.bf16.mxu0 0
    %3021 = vmatpush2.bf16.msra.mxu0 0
    %3022 = vmatprep.subr.bf16.mxu0 0
    %3023 = vmatpush2.bf16.msra.mxu0 0
    %3024 = vmatprep.subr.bf16.mxu0 0
    %3025 = vmatpush2.bf16.msra.mxu0 0
    %3026 = vmatprep.subr.bf16.mxu0 0
    %3027 = vmatpush2.bf16.msra.mxu0 0
    %3028 = vmatprep.subr.bf16.mxu0 0
    %3029 = vmatpush2.bf16.msra.mxu0 0
    %3030 = vmatprep.subr.bf16.mxu0 0
    %3031 = vmatpush2.bf16.msra.mxu0 0
    %3032 = vmatprep.subr.bf16.mxu0 0
    %3033 = vmatpush2.bf16.msra.mxu0 0
    %3034 = vmatprep.mubr.bf16.mxu0 0
    %3035 = vmatmul.mubr.bf16.gmra.mxu0 %v2858
    %v3036 = vpop.f32.mrf.mxu0
    %v3037 = vadd.f32 0.0, %v3036
    %v3038 = vpop.f32.mrf.mxu0
    %v3039 = vadd.f32 0.0, %v3038
    %v3040 = vpop.f32.mrf.mxu0
    %v3041 = vadd.f32 0.0, %v3040
    %v3042 = vpop.f32.mrf.mxu0
    %v3043 = vadd.f32 0.0, %v3042
    %3044 = vmatprep.mubr.bf16.mxu0 0
    %3045 = vmatmul.mubr.bf16.gmra.mxu0 %v2859
    %v3046 = vpop.f32.mrf.mxu0
    %v3047 = vadd.f32 0.0, %v3046
    %v3048 = vpop.f32.mrf.mxu0
    %v3049 = vadd.f32 0.0, %v3048
    %v3050 = vpop.f32.mrf.mxu0
    %v3051 = vadd.f32 0.0, %v3050
    %v3052 = vpop.f32.mrf.mxu0
    %v3053 = vadd.f32 0.0, %v3052
    %3054 = vmatprep.mubr.bf16.mxu0 0
    %3055 = vmatmul.mubr.bf16.gmra.mxu0 %v2860
    %v3056 = vpop.f32.mrf.mxu0
    %v3057 = vadd.f32 0.0, %v3056
    %v3058 = vpop.f32.mrf.mxu0
    %v3059 = vadd.f32 0.0, %v3058
    %v3060 = vpop.f32.mrf.mxu0
    %v3061 = vadd.f32 0.0, %v3060
    %v3062 = vpop.f32.mrf.mxu0
    %v3063 = vadd.f32 0.0, %v3062
    %3064 = vmatprep.mubr.bf16.mxu0 0
    %3065 = vmatmul.mubr.bf16.gmra.mxu0 %v2861
    %v3066 = vpop.f32.mrf.mxu0
    %v3067 = vadd.f32 0.0, %v3066
    %v3068 = vpop.f32.mrf.mxu0
    %v3069 = vadd.f32 0.0, %v3068
    %v3070 = vpop.f32.mrf.mxu0
    %v3071 = vadd.f32 0.0, %v3070
    %v3072 = vpop.f32.mrf.mxu0
    %v3073 = vadd.f32 0.0, %v3072
    %3074 = vmatprep.mubr.bf16.mxu0 0
    %3075 = vmatmul.mubr.bf16.gmra.mxu0 %v2862
    %v3076 = vpop.f32.mrf.mxu0
    %v3077 = vadd.f32 0.0, %v3076
    %v3078 = vpop.f32.mrf.mxu0
    %v3079 = vadd.f32 0.0, %v3078
    %v3080 = vpop.f32.mrf.mxu0
    %v3081 = vadd.f32 0.0, %v3080
    %v3082 = vpop.f32.mrf.mxu0
    %v3083 = vadd.f32 0.0, %v3082
    %3084 = vmatprep.mubr.bf16.mxu0 0
    %3085 = vmatmul.mubr.bf16.gmra.mxu0 %v2863
    %v3086 = vpop.f32.mrf.mxu0
    %v3087 = vadd.f32 0.0, %v3086
    %v3088 = vpop.f32.mrf.mxu0
    %v3089 = vadd.f32 0.0, %v3088
    %v3090 = vpop.f32.mrf.mxu0
    %v3091 = vadd.f32 0.0, %v3090
    %v3092 = vpop.f32.mrf.mxu0
    %v3093 = vadd.f32 0.0, %v3092
    %3094 = vmatprep.mubr.bf16.mxu0 0
    %3095 = vmatmul.mubr.bf16.gmra.mxu0 %v2864
    %v3096 = vpop.f32.mrf.mxu0
    %v3097 = vadd.f32 0.0, %v3096
    %v3098 = vpop.f32.mrf.mxu0
    %v3099 = vadd.f32 0.0, %v3098
    %v3100 = vpop.f32.mrf.mxu0
    %v3101 = vadd.f32 0.0, %v3100
    %v3102 = vpop.f32.mrf.mxu0
    %v3103 = vadd.f32 0.0, %v3102
    %3104 = vmatprep.mubr.bf16.mxu0 0
    %3105 = vmatmul.mubr.bf16.gmra.mxu0 %v2865
    %v3106 = vpop.f32.mrf.mxu0
    %v3107 = vadd.f32 0.0, %v3106
    %v3108 = vpop.f32.mrf.mxu0
    %v3109 = vadd.f32 0.0, %v3108
    %v3110 = vpop.f32.mrf.mxu0
    %v3111 = vadd.f32 0.0, %v3110
    %v3112 = vpop.f32.mrf.mxu0
    %v3113 = vadd.f32 0.0, %v3112
    %3114 = vdwg.mxu0
    %3115 = vmatprep.subr.bf16.mxu0 0
    %3116 = vmatpush1.bf16.msra.mxu0 %v2977
    %3117 = vmatprep.subr.bf16.mxu0 0
    %3118 = vmatpush1.bf16.msra.mxu0 %v2974
    %3119 = vmatprep.subr.bf16.mxu0 0
    %3120 = vmatpush1.bf16.msra.mxu0 %v2971
    %3121 = vmatprep.subr.bf16.mxu0 0
    %3122 = vmatpush1.bf16.msra.mxu0 %v2968
    %3123 = vmatprep.subr.bf16.mxu0 0
    %3124 = vmatpush1.bf16.msra.mxu0 %v2965
    %3125 = vmatprep.subr.bf16.mxu0 0
    %3126 = vmatpush1.bf16.msra.mxu0 %v2962
    %3127 = vmatprep.subr.bf16.mxu0 0
    %3128 = vmatpush1.bf16.msra.mxu0 %v2959
    %3129 = vmatprep.subr.bf16.mxu0 0
    %3130 = vmatpush1.bf16.msra.mxu0 %v2956
    %3131 = vmatprep.subr.bf16.mxu0 0
    %3132 = vmatpush2.bf16.msra.mxu0 0
    %3133 = vmatprep.subr.bf16.mxu0 0
    %3134 = vmatpush2.bf16.msra.mxu0 0
    %3135 = vmatprep.subr.bf16.mxu0 0
    %3136 = vmatpush2.bf16.msra.mxu0 0
    %3137 = vmatprep.subr.bf16.mxu0 0
    %3138 = vmatpush2.bf16.msra.mxu0 0
    %3139 = vmatprep.subr.bf16.mxu0 0
    %3140 = vmatpush2.bf16.msra.mxu0 0
    %3141 = vmatprep.subr.bf16.mxu0 0
    %3142 = vmatpush2.bf16.msra.mxu0 0
    %3143 = vmatprep.subr.bf16.mxu0 0
    %3144 = vmatpush2.bf16.msra.mxu0 0
    %3145 = vmatprep.subr.bf16.mxu0 0
    %3146 = vmatpush2.bf16.msra.mxu0 0
    %3147 = vmatprep.mubr.bf16.mxu0 0
    %3148 = vmatmul.mubr.bf16.gmra.mxu0 %v2858
    %v3149 = vpop.f32.mrf.mxu0
    %v3150 = vadd.f32 0.0, %v3149
    %v3151 = vpop.f32.mrf.mxu0
    %v3152 = vpop.f32.mrf.mxu0
    %v3153 = vadd.f32 0.0, %v3152
    %v3154 = vpop.f32.mrf.mxu0
    %3155 = vmatprep.mubr.bf16.mxu0 0
    %3156 = vmatmul.mubr.bf16.gmra.mxu0 %v2859
    %v3157 = vpop.f32.mrf.mxu0
    %v3158 = vadd.f32 0.0, %v3157
    %v3159 = vpop.f32.mrf.mxu0
    %v3160 = vpop.f32.mrf.mxu0
    %v3161 = vadd.f32 0.0, %v3160
    %v3162 = vpop.f32.mrf.mxu0
    %3163 = vmatprep.mubr.bf16.mxu0 0
    %3164 = vmatmul.mubr.bf16.gmra.mxu0 %v2860
    %v3165 = vpop.f32.mrf.mxu0
    %v3166 = vadd.f32 0.0, %v3165
    %v3167 = vpop.f32.mrf.mxu0
    %v3168 = vpop.f32.mrf.mxu0
    %v3169 = vadd.f32 0.0, %v3168
    %v3170 = vpop.f32.mrf.mxu0
    %3171 = vmatprep.mubr.bf16.mxu0 0
    %3172 = vmatmul.mubr.bf16.gmra.mxu0 %v2861
    %v3173 = vpop.f32.mrf.mxu0
    %v3174 = vadd.f32 0.0, %v3173
    %v3175 = vpop.f32.mrf.mxu0
    %v3176 = vpop.f32.mrf.mxu0
    %v3177 = vadd.f32 0.0, %v3176
    %v3178 = vpop.f32.mrf.mxu0
    %3179 = vmatprep.mubr.bf16.mxu0 0
    %3180 = vmatmul.mubr.bf16.gmra.mxu0 %v2862
    %v3181 = vpop.f32.mrf.mxu0
    %v3182 = vadd.f32 0.0, %v3181
    %v3183 = vpop.f32.mrf.mxu0
    %v3184 = vpop.f32.mrf.mxu0
    %v3185 = vadd.f32 0.0, %v3184
    %v3186 = vpop.f32.mrf.mxu0
    %3187 = vmatprep.mubr.bf16.mxu0 0
    %3188 = vmatmul.mubr.bf16.gmra.mxu0 %v2863
    %v3189 = vpop.f32.mrf.mxu0
    %v3190 = vadd.f32 0.0, %v3189
    %v3191 = vpop.f32.mrf.mxu0
    %v3192 = vpop.f32.mrf.mxu0
    %v3193 = vadd.f32 0.0, %v3192
    %v3194 = vpop.f32.mrf.mxu0
    %3195 = vmatprep.mubr.bf16.mxu0 0
    %3196 = vmatmul.mubr.bf16.gmra.mxu0 %v2864
    %v3197 = vpop.f32.mrf.mxu0
    %v3198 = vadd.f32 0.0, %v3197
    %v3199 = vpop.f32.mrf.mxu0
    %v3200 = vpop.f32.mrf.mxu0
    %v3201 = vadd.f32 0.0, %v3200
    %v3202 = vpop.f32.mrf.mxu0
    %3203 = vmatprep.mubr.bf16.mxu0 0
    %3204 = vmatmul.mubr.bf16.gmra.mxu0 %v2865
    %v3205 = vpop.f32.mrf.mxu0
    %v3206 = vadd.f32 0.0, %v3205
    %v3207 = vpop.f32.mrf.mxu0
    %v3208 = vpop.f32.mrf.mxu0
    %v3209 = vadd.f32 0.0, %v3208
    %v3210 = vpop.f32.mrf.mxu0
    %3211 = vdwg.mxu0
    %v3212 = vadd.f32 %v2654, %v3037
    %v3213 = vadd.f32 %v2655, %v3039
    %v3214 = vadd.f32 %v2656, %v3150
    %v3215 = vadd.f32 %v2657, %v3041
    %v3216 = vadd.f32 %v2658, %v3043
    %v3217 = vadd.f32 %v2659, %v3153
    %v3218 = vadd.f32 %v2660, %v3047
    %v3219 = vadd.f32 %v2661, %v3049
    %v3220 = vadd.f32 %v2662, %v3158
    %v3221 = vadd.f32 %v2663, %v3051
    %v3222 = vadd.f32 %v2664, %v3053
    %v3223 = vadd.f32 %v2665, %v3161
    %v3224 = vadd.f32 %v2666, %v3057
    %v3225 = vadd.f32 %v2667, %v3059
    %v3226 = vadd.f32 %v2668, %v3166
    %v3227 = vadd.f32 %v2669, %v3061
    %v3228 = vadd.f32 %v2670, %v3063
    %v3229 = vadd.f32 %v2671, %v3169
    %v3230 = vadd.f32 %v2672, %v3067
    %v3231 = vadd.f32 %v2673, %v3069
    %v3232 = vadd.f32 %v2674, %v3174
    %v3233 = vadd.f32 %v2675, %v3071
    %v3234 = vadd.f32 %v2676, %v3073
    %v3235 = vadd.f32 %v2677, %v3177
    %v3236 = vadd.f32 %v2678, %v3077
    %v3237 = vadd.f32 %v2679, %v3079
    %v3238 = vadd.f32 %v2680, %v3182
    %v3239 = vadd.f32 %v2681, %v3081
    %v3240 = vadd.f32 %v2682, %v3083
    %v3241 = vadd.f32 %v2683, %v3185
    %v3242 = vadd.f32 %v2684, %v3087
    %v3243 = vadd.f32 %v2685, %v3089
    %v3244 = vadd.f32 %v2686, %v3190
    %v3245 = vadd.f32 %v2687, %v3091
    %v3246 = vadd.f32 %v2688, %v3093
    %v3247 = vadd.f32 %v2689, %v3193
    %v3248 = vadd.f32 %v2690, %v3097
    %v3249 = vadd.f32 %v2691, %v3099
    %v3250 = vadd.f32 %v2692, %v3198
    %v3251 = vadd.f32 %v2693, %v3101
    %v3252 = vadd.f32 %v2694, %v3103
    %v3253 = vadd.f32 %v2695, %v3201
    %v3254 = vadd.f32 %v2696, %v3107
    %v3255 = vadd.f32 %v2697, %v3109
    %v3256 = vadd.f32 %v2698, %v3206
    %v3257 = vadd.f32 %v2699, %v3111
    %v3258 = vadd.f32 %v2700, %v3113
    %v3259 = vadd.f32 %v2701, %v3209
    %vm3260 = vcmask 1040384
    %vm3261 = vcmask 1044484
    %vm3262 = vmor %vm3260, %vm3261
    %v3263 = vrot.slane %v60, 7
    %v3264 = vrot.slane %v3263, 4
    %v3265 = vrot.slane %v61, 7
    %v3266 = vsel %vm3262, %v3264, %v3265
    %v3267 = vrot.slane %v3265, 4
    %v3268 = vrot.slane %v62, 7
    %v3269 = vsel %vm3262, %v3267, %v3268
    %v3270 = vrot.slane %v63, 7
    %v3271 = vrot.slane %v3270, 4
    %v3272 = vrot.slane %v64, 7
    %v3273 = vsel %vm3262, %v3271, %v3272
    %v3274 = vrot.slane %v3272, 4
    %v3275 = vrot.slane %v65, 7
    %v3276 = vsel %vm3262, %v3274, %v3275
    %v3277 = vrot.slane %v66, 7
    %v3278 = vrot.slane %v3277, 4
    %v3279 = vrot.slane %v67, 7
    %v3280 = vsel %vm3262, %v3278, %v3279
    %v3281 = vrot.slane %v3279, 4
    %v3282 = vrot.slane %v68, 7
    %v3283 = vsel %vm3262, %v3281, %v3282
    %v3284 = vrot.slane %v69, 7
    %v3285 = vrot.slane %v3284, 4
    %v3286 = vrot.slane %v70, 7
    %v3287 = vsel %vm3262, %v3285, %v3286
    %v3288 = vrot.slane %v3286, 4
    %v3289 = vrot.slane %v71, 7
    %v3290 = vsel %vm3262, %v3288, %v3289
    %v3291 = vrot.slane %v72, 7
    %v3292 = vrot.slane %v3291, 4
    %v3293 = vrot.slane %v73, 7
    %v3294 = vsel %vm3262, %v3292, %v3293
    %v3295 = vrot.slane %v3293, 4
    %v3296 = vrot.slane %v74, 7
    %v3297 = vsel %vm3262, %v3295, %v3296
    %v3298 = vrot.slane %v75, 7
    %v3299 = vrot.slane %v3298, 4
    %v3300 = vrot.slane %v76, 7
    %v3301 = vsel %vm3262, %v3299, %v3300
    %v3302 = vrot.slane %v3300, 4
    %v3303 = vrot.slane %v77, 7
    %v3304 = vsel %vm3262, %v3302, %v3303
    %v3305 = vrot.slane %v78, 7
    %v3306 = vrot.slane %v3305, 4
    %v3307 = vrot.slane %v79, 7
    %v3308 = vsel %vm3262, %v3306, %v3307
    %v3309 = vrot.slane %v3307, 4
    %v3310 = vrot.slane %v80, 7
    %v3311 = vsel %vm3262, %v3309, %v3310
    %v3312 = vrot.slane %v81, 7
    %v3313 = vrot.slane %v3312, 4
    %v3314 = vrot.slane %v82, 7
    %v3315 = vsel %vm3262, %v3313, %v3314
    %v3316 = vrot.slane %v3314, 4
    %v3317 = vrot.slane %v83, 7
    %v3318 = vsel %vm3262, %v3316, %v3317
    %s3319 = scalar_lea.vmem [#allocation5], 1152
    %v3320 = vld [vmem:[%s3319] sm:$0xff]
    %v3321 = vld [vmem:[%s3319 + $0x8] sm:$0xf]
    %v3322 = vld [vmem:[%s3319 + $0xc] sm:$0xff]
    %v3323 = vld [vmem:[%s3319 + $0x14] sm:$0xf]
    %v3324 = vld [vmem:[%s3319 + $0x18] sm:$0xff]
    %v3325 = vld [vmem:[%s3319 + $0x20] sm:$0xf]
    %v3326 = vld [vmem:[%s3319 + $0x24] sm:$0xff]
    %v3327 = vld [vmem:[%s3319 + $0x2c] sm:$0xf]
    %v3328 = vld [vmem:[%s3319 + $0x30] sm:$0xff]
    %v3329 = vld [vmem:[%s3319 + $0x38] sm:$0xf]
    %v3330 = vld [vmem:[%s3319 + $0x3c] sm:$0xff]
    %v3331 = vld [vmem:[%s3319 + $0x44] sm:$0xf]
    %v3332 = vld [vmem:[%s3319 + $0x48] sm:$0xff]
    %v3333 = vld [vmem:[%s3319 + $0x50] sm:$0xf]
    %v3334 = vld [vmem:[%s3319 + $0x54] sm:$0xff]
    %v3335 = vld [vmem:[%s3319 + $0x5c] sm:$0xf]
    %v3336 = vld [vmem:[%s3319 + $0x60] sm:$0xff]
    %v3337 = vld [vmem:[%s3319 + $0x68] sm:$0xf]
    %v3338 = vld [vmem:[%s3319 + $0x6c] sm:$0xff]
    %v3339 = vld [vmem:[%s3319 + $0x74] sm:$0xf]
    %v3340 = vld [vmem:[%s3319 + $0x78] sm:$0xff]
    %v3341 = vld [vmem:[%s3319 + $0x80] sm:$0xf]
    %v3342 = vld [vmem:[%s3319 + $0x84] sm:$0xff]
    %v3343 = vld [vmem:[%s3319 + $0x8c] sm:$0xf]
    %v3344 = vld [vmem:[%s3319 + $0x90] sm:$0xff]
    %v3345 = vld [vmem:[%s3319 + $0x98] sm:$0xf]
    %v3346 = vld [vmem:[%s3319 + $0x9c] sm:$0xff]
    %v3347 = vld [vmem:[%s3319 + $0xa4] sm:$0xf]
    %v3348 = vld [vmem:[%s3319 + $0xa8] sm:$0xff]
    %v3349 = vld [vmem:[%s3319 + $0xb0] sm:$0xf]
    %v3350 = vld [vmem:[%s3319 + $0xb4] sm:$0xff]
    %v3351 = vld [vmem:[%s3319 + $0xbc] sm:$0xf]
    %v3352 = vunpack.c.l.b16 %v3266
    %v3353 = vunpack.c.l.b16 %v3269
    %v3354 = vunpack.c.l.b16 %v3273
    %v3355 = vunpack.c.l.b16 %v3276
    %v3356 = vunpack.c.l.b16 %v3280
    %v3357 = vunpack.c.l.b16 %v3283
    %v3358 = vunpack.c.l.b16 %v3287
    %v3359 = vunpack.c.l.b16 %v3290
    %v3360 = vunpack.c.l.b16 %v3294
    %v3361 = vunpack.c.l.b16 %v3297
    %v3362 = vunpack.c.l.b16 %v3301
    %v3363 = vunpack.c.l.b16 %v3304
    %v3364 = vunpack.c.l.b16 %v3308
    %v3365 = vunpack.c.l.b16 %v3311
    %v3366 = vunpack.c.l.b16 %v3315
    %v3367 = vunpack.c.l.b16 %v3318
    %v3368 = vpack.c.b16 %v3353, %v3352
    %v3369 = vpack.c.b16 %v3355, %v3354
    %v3370 = vpack.c.b16 %v3357, %v3356
    %v3371 = vpack.c.b16 %v3359, %v3358
    %v3372 = vpack.c.b16 %v3361, %v3360
    %v3373 = vpack.c.b16 %v3363, %v3362
    %v3374 = vpack.c.b16 %v3365, %v3364
    %v3375 = vpack.c.b16 %v3367, %v3366
    %v3416 = vunpack.c.l.b16 %v3320
    %v3417 = vunpack.c.h.b16 %v3320
    %v3418 = vunpack.c.l.b16 %v3321
    %v3419 = vunpack.c.l.b16 %v3322
    %v3420 = vunpack.c.h.b16 %v3322
    %v3421 = vunpack.c.l.b16 %v3323
    %v3422 = vunpack.c.l.b16 %v3324
    %v3423 = vunpack.c.h.b16 %v3324
    %v3424 = vunpack.c.l.b16 %v3325
    %v3425 = vunpack.c.l.b16 %v3326
    %v3426 = vunpack.c.h.b16 %v3326
    %v3427 = vunpack.c.l.b16 %v3327
    %v3428 = vunpack.c.l.b16 %v3328
    %v3429 = vunpack.c.h.b16 %v3328
    %v3430 = vunpack.c.l.b16 %v3329
    %v3431 = vunpack.c.l.b16 %v3330
    %v3432 = vunpack.c.h.b16 %v3330
    %v3433 = vunpack.c.l.b16 %v3331
    %v3434 = vunpack.c.l.b16 %v3332
    %v3435 = vunpack.c.h.b16 %v3332
    %v3436 = vunpack.c.l.b16 %v3333
    %v3437 = vunpack.c.l.b16 %v3334
    %v3438 = vunpack.c.h.b16 %v3334
    %v3439 = vunpack.c.l.b16 %v3335
    %v3440 = vunpack.c.l.b16 %v3336
    %v3441 = vunpack.c.h.b16 %v3336
    %v3442 = vunpack.c.l.b16 %v3337
    %v3443 = vunpack.c.l.b16 %v3338
    %v3444 = vunpack.c.h.b16 %v3338
    %v3445 = vunpack.c.l.b16 %v3339
    %v3446 = vunpack.c.l.b16 %v3340
    %v3447 = vunpack.c.h.b16 %v3340
    %v3448 = vunpack.c.l.b16 %v3341
    %v3449 = vunpack.c.l.b16 %v3342
    %v3450 = vunpack.c.h.b16 %v3342
    %v3451 = vunpack.c.l.b16 %v3343
    %v3452 = vunpack.c.l.b16 %v3344
    %v3453 = vunpack.c.h.b16 %v3344
    %v3454 = vunpack.c.l.b16 %v3345
    %v3455 = vunpack.c.l.b16 %v3346
    %v3456 = vunpack.c.h.b16 %v3346
    %v3457 = vunpack.c.l.b16 %v3347
    %v3458 = vunpack.c.l.b16 %v3348
    %v3459 = vunpack.c.h.b16 %v3348
    %v3460 = vunpack.c.l.b16 %v3349
    %v3461 = vunpack.c.l.b16 %v3350
    %v3462 = vunpack.c.h.b16 %v3350
    %v3463 = vunpack.c.l.b16 %v3351
    %v3464 = vpack.c.b16 %v3419, %v3416
    %v3465 = vpack.c.b16 %v3420, %v3417
    %v3466 = vpack.c.b16 %v3421, %v3418
    %v3467 = vpack.c.b16 %v3425, %v3422
    %v3468 = vpack.c.b16 %v3426, %v3423
    %v3469 = vpack.c.b16 %v3427, %v3424
    %v3470 = vpack.c.b16 %v3431, %v3428
    %v3471 = vpack.c.b16 %v3432, %v3429
    %v3472 = vpack.c.b16 %v3433, %v3430
    %v3473 = vpack.c.b16 %v3437, %v3434
    %v3474 = vpack.c.b16 %v3438, %v3435
    %v3475 = vpack.c.b16 %v3439, %v3436
    %v3476 = vpack.c.b16 %v3443, %v3440
    %v3477 = vpack.c.b16 %v3444, %v3441
    %v3478 = vpack.c.b16 %v3445, %v3442
    %v3479 = vpack.c.b16 %v3449, %v3446
    %v3480 = vpack.c.b16 %v3450, %v3447
    %v3481 = vpack.c.b16 %v3451, %v3448
    %v3482 = vpack.c.b16 %v3455, %v3452
    %v3483 = vpack.c.b16 %v3456, %v3453
    %v3484 = vpack.c.b16 %v3457, %v3454
    %v3485 = vpack.c.b16 %v3461, %v3458
    %v3486 = vpack.c.b16 %v3462, %v3459
    %v3487 = vpack.c.b16 %v3463, %v3460
    %3512 = vmatprep.subr.bf16.mxu0 %v3486
    %3513 = vmatpush1.bf16.msra.mxu0 %v3485
    %3514 = vmatprep.subr.bf16.mxu0 %v3483
    %3515 = vmatpush1.bf16.msra.mxu0 %v3482
    %3516 = vmatprep.subr.bf16.mxu0 %v3480
    %3517 = vmatpush1.bf16.msra.mxu0 %v3479
    %3518 = vmatprep.subr.bf16.mxu0 %v3477
    %3519 = vmatpush1.bf16.msra.mxu0 %v3476
    %3520 = vmatprep.subr.bf16.mxu0 %v3474
    %3521 = vmatpush1.bf16.msra.mxu0 %v3473
    %3522 = vmatprep.subr.bf16.mxu0 %v3471
    %3523 = vmatpush1.bf16.msra.mxu0 %v3470
    %3524 = vmatprep.subr.bf16.mxu0 %v3468
    %3525 = vmatpush1.bf16.msra.mxu0 %v3467
    %3526 = vmatprep.subr.bf16.mxu0 %v3465
    %3527 = vmatpush1.bf16.msra.mxu0 %v3464
    %3528 = vmatprep.subr.bf16.mxu0 0
    %3529 = vmatpush2.bf16.msra.mxu0 0
    %3530 = vmatprep.subr.bf16.mxu0 0
    %3531 = vmatpush2.bf16.msra.mxu0 0
    %3532 = vmatprep.subr.bf16.mxu0 0
    %3533 = vmatpush2.bf16.msra.mxu0 0
    %3534 = vmatprep.subr.bf16.mxu0 0
    %3535 = vmatpush2.bf16.msra.mxu0 0
    %3536 = vmatprep.subr.bf16.mxu0 0
    %3537 = vmatpush2.bf16.msra.mxu0 0
    %3538 = vmatprep.subr.bf16.mxu0 0
    %3539 = vmatpush2.bf16.msra.mxu0 0
    %3540 = vmatprep.subr.bf16.mxu0 0
    %3541 = vmatpush2.bf16.msra.mxu0 0
    %3542 = vmatprep.subr.bf16.mxu0 0
    %3543 = vmatpush2.bf16.msra.mxu0 0
    %3544 = vmatprep.mubr.bf16.mxu0 0
    %3545 = vmatmul.mubr.bf16.gmra.mxu0 %v3368
    %v3546 = vpop.f32.mrf.mxu0
    %v3547 = vadd.f32 0.0, %v3546
    %v3548 = vpop.f32.mrf.mxu0
    %v3549 = vadd.f32 0.0, %v3548
    %v3550 = vpop.f32.mrf.mxu0
    %v3551 = vadd.f32 0.0, %v3550
    %v3552 = vpop.f32.mrf.mxu0
    %v3553 = vadd.f32 0.0, %v3552
    %3554 = vmatprep.mubr.bf16.mxu0 0
    %3555 = vmatmul.mubr.bf16.gmra.mxu0 %v3369
    %v3556 = vpop.f32.mrf.mxu0
    %v3557 = vadd.f32 0.0, %v3556
    %v3558 = vpop.f32.mrf.mxu0
    %v3559 = vadd.f32 0.0, %v3558
    %v3560 = vpop.f32.mrf.mxu0
    %v3561 = vadd.f32 0.0, %v3560
    %v3562 = vpop.f32.mrf.mxu0
    %v3563 = vadd.f32 0.0, %v3562
    %3564 = vmatprep.mubr.bf16.mxu0 0
    %3565 = vmatmul.mubr.bf16.gmra.mxu0 %v3370
    %v3566 = vpop.f32.mrf.mxu0
    %v3567 = vadd.f32 0.0, %v3566
    %v3568 = vpop.f32.mrf.mxu0
    %v3569 = vadd.f32 0.0, %v3568
    %v3570 = vpop.f32.mrf.mxu0
    %v3571 = vadd.f32 0.0, %v3570
    %v3572 = vpop.f32.mrf.mxu0
    %v3573 = vadd.f32 0.0, %v3572
    %3574 = vmatprep.mubr.bf16.mxu0 0
    %3575 = vmatmul.mubr.bf16.gmra.mxu0 %v3371
    %v3576 = vpop.f32.mrf.mxu0
    %v3577 = vadd.f32 0.0, %v3576
    %v3578 = vpop.f32.mrf.mxu0
    %v3579 = vadd.f32 0.0, %v3578
    %v3580 = vpop.f32.mrf.mxu0
    %v3581 = vadd.f32 0.0, %v3580
    %v3582 = vpop.f32.mrf.mxu0
    %v3583 = vadd.f32 0.0, %v3582
    %3584 = vmatprep.mubr.bf16.mxu0 0
    %3585 = vmatmul.mubr.bf16.gmra.mxu0 %v3372
    %v3586 = vpop.f32.mrf.mxu0
    %v3587 = vadd.f32 0.0, %v3586
    %v3588 = vpop.f32.mrf.mxu0
    %v3589 = vadd.f32 0.0, %v3588
    %v3590 = vpop.f32.mrf.mxu0
    %v3591 = vadd.f32 0.0, %v3590
    %v3592 = vpop.f32.mrf.mxu0
    %v3593 = vadd.f32 0.0, %v3592
    %3594 = vmatprep.mubr.bf16.mxu0 0
    %3595 = vmatmul.mubr.bf16.gmra.mxu0 %v3373
    %v3596 = vpop.f32.mrf.mxu0
    %v3597 = vadd.f32 0.0, %v3596
    %v3598 = vpop.f32.mrf.mxu0
    %v3599 = vadd.f32 0.0, %v3598
    %v3600 = vpop.f32.mrf.mxu0
    %v3601 = vadd.f32 0.0, %v3600
    %v3602 = vpop.f32.mrf.mxu0
    %v3603 = vadd.f32 0.0, %v3602
    %3604 = vmatprep.mubr.bf16.mxu0 0
    %3605 = vmatmul.mubr.bf16.gmra.mxu0 %v3374
    %v3606 = vpop.f32.mrf.mxu0
    %v3607 = vadd.f32 0.0, %v3606
    %v3608 = vpop.f32.mrf.mxu0
    %v3609 = vadd.f32 0.0, %v3608
    %v3610 = vpop.f32.mrf.mxu0
    %v3611 = vadd.f32 0.0, %v3610
    %v3612 = vpop.f32.mrf.mxu0
    %v3613 = vadd.f32 0.0, %v3612
    %3614 = vmatprep.mubr.bf16.mxu0 0
    %3615 = vmatmul.mubr.bf16.gmra.mxu0 %v3375
    %v3616 = vpop.f32.mrf.mxu0
    %v3617 = vadd.f32 0.0, %v3616
    %v3618 = vpop.f32.mrf.mxu0
    %v3619 = vadd.f32 0.0, %v3618
    %v3620 = vpop.f32.mrf.mxu0
    %v3621 = vadd.f32 0.0, %v3620
    %v3622 = vpop.f32.mrf.mxu0
    %v3623 = vadd.f32 0.0, %v3622
    %3624 = vdwg.mxu0
    %3625 = vmatprep.subr.bf16.mxu0 0
    %3626 = vmatpush1.bf16.msra.mxu0 %v3487
    %3627 = vmatprep.subr.bf16.mxu0 0
    %3628 = vmatpush1.bf16.msra.mxu0 %v3484
    %3629 = vmatprep.subr.bf16.mxu0 0
    %3630 = vmatpush1.bf16.msra.mxu0 %v3481
    %3631 = vmatprep.subr.bf16.mxu0 0
    %3632 = vmatpush1.bf16.msra.mxu0 %v3478
    %3633 = vmatprep.subr.bf16.mxu0 0
    %3634 = vmatpush1.bf16.msra.mxu0 %v3475
    %3635 = vmatprep.subr.bf16.mxu0 0
    %3636 = vmatpush1.bf16.msra.mxu0 %v3472
    %3637 = vmatprep.subr.bf16.mxu0 0
    %3638 = vmatpush1.bf16.msra.mxu0 %v3469
    %3639 = vmatprep.subr.bf16.mxu0 0
    %3640 = vmatpush1.bf16.msra.mxu0 %v3466
    %3641 = vmatprep.subr.bf16.mxu0 0
    %3642 = vmatpush2.bf16.msra.mxu0 0
    %3643 = vmatprep.subr.bf16.mxu0 0
    %3644 = vmatpush2.bf16.msra.mxu0 0
    %3645 = vmatprep.subr.bf16.mxu0 0
    %3646 = vmatpush2.bf16.msra.mxu0 0
    %3647 = vmatprep.subr.bf16.mxu0 0
    %3648 = vmatpush2.bf16.msra.mxu0 0
    %3649 = vmatprep.subr.bf16.mxu0 0
    %3650 = vmatpush2.bf16.msra.mxu0 0
    %3651 = vmatprep.subr.bf16.mxu0 0
    %3652 = vmatpush2.bf16.msra.mxu0 0
    %3653 = vmatprep.subr.bf16.mxu0 0
    %3654 = vmatpush2.bf16.msra.mxu0 0
    %3655 = vmatprep.subr.bf16.mxu0 0
    %3656 = vmatpush2.bf16.msra.mxu0 0
    %3657 = vmatprep.mubr.bf16.mxu0 0
    %3658 = vmatmul.mubr.bf16.gmra.mxu0 %v3368
    %v3659 = vpop.f32.mrf.mxu0
    %v3660 = vadd.f32 0.0, %v3659
    %v3661 = vpop.f32.mrf.mxu0
    %v3662 = vpop.f32.mrf.mxu0
    %v3663 = vadd.f32 0.0, %v3662
    %v3664 = vpop.f32.mrf.mxu0
    %3665 = vmatprep.mubr.bf16.mxu0 0
    %3666 = vmatmul.mubr.bf16.gmra.mxu0 %v3369
    %v3667 = vpop.f32.mrf.mxu0
    %v3668 = vadd.f32 0.0, %v3667
    %v3669 = vpop.f32.mrf.mxu0
    %v3670 = vpop.f32.mrf.mxu0
    %v3671 = vadd.f32 0.0, %v3670
    %v3672 = vpop.f32.mrf.mxu0
    %3673 = vmatprep.mubr.bf16.mxu0 0
    %3674 = vmatmul.mubr.bf16.gmra.mxu0 %v3370
    %v3675 = vpop.f32.mrf.mxu0
    %v3676 = vadd.f32 0.0, %v3675
    %v3677 = vpop.f32.mrf.mxu0
    %v3678 = vpop.f32.mrf.mxu0
    %v3679 = vadd.f32 0.0, %v3678
    %v3680 = vpop.f32.mrf.mxu0
    %3681 = vmatprep.mubr.bf16.mxu0 0
    %3682 = vmatmul.mubr.bf16.gmra.mxu0 %v3371
    %v3683 = vpop.f32.mrf.mxu0
    %v3684 = vadd.f32 0.0, %v3683
    %v3685 = vpop.f32.mrf.mxu0
    %v3686 = vpop.f32.mrf.mxu0
    %v3687 = vadd.f32 0.0, %v3686
    %v3688 = vpop.f32.mrf.mxu0
    %3689 = vmatprep.mubr.bf16.mxu0 0
    %3690 = vmatmul.mubr.bf16.gmra.mxu0 %v3372
    %v3691 = vpop.f32.mrf.mxu0
    %v3692 = vadd.f32 0.0, %v3691
    %v3693 = vpop.f32.mrf.mxu0
    %v3694 = vpop.f32.mrf.mxu0
    %v3695 = vadd.f32 0.0, %v3694
    %v3696 = vpop.f32.mrf.mxu0
    %3697 = vmatprep.mubr.bf16.mxu0 0
    %3698 = vmatmul.mubr.bf16.gmra.mxu0 %v3373
    %v3699 = vpop.f32.mrf.mxu0
    %v3700 = vadd.f32 0.0, %v3699
    %v3701 = vpop.f32.mrf.mxu0
    %v3702 = vpop.f32.mrf.mxu0
    %v3703 = vadd.f32 0.0, %v3702
    %v3704 = vpop.f32.mrf.mxu0
    %3705 = vmatprep.mubr.bf16.mxu0 0
    %3706 = vmatmul.mubr.bf16.gmra.mxu0 %v3374
    %v3707 = vpop.f32.mrf.mxu0
    %v3708 = vadd.f32 0.0, %v3707
    %v3709 = vpop.f32.mrf.mxu0
    %v3710 = vpop.f32.mrf.mxu0
    %v3711 = vadd.f32 0.0, %v3710
    %v3712 = vpop.f32.mrf.mxu0
    %3713 = vmatprep.mubr.bf16.mxu0 0
    %3714 = vmatmul.mubr.bf16.gmra.mxu0 %v3375
    %v3715 = vpop.f32.mrf.mxu0
    %v3716 = vadd.f32 0.0, %v3715
    %v3717 = vpop.f32.mrf.mxu0
    %v3718 = vpop.f32.mrf.mxu0
    %v3719 = vadd.f32 0.0, %v3718
    %v3720 = vpop.f32.mrf.mxu0
    %3721 = vdwg.mxu0
    %v3722 = vadd.f32 %v3212, %v3547
    %v3723 = vadd.f32 %v3213, %v3549
    %v3724 = vadd.f32 %v3214, %v3660
    %v3725 = vadd.f32 %v3215, %v3551
    %v3726 = vadd.f32 %v3216, %v3553
    %v3727 = vadd.f32 %v3217, %v3663
    %v3728 = vadd.f32 %v3218, %v3557
    %v3729 = vadd.f32 %v3219, %v3559
    %v3730 = vadd.f32 %v3220, %v3668
    %v3731 = vadd.f32 %v3221, %v3561
    %v3732 = vadd.f32 %v3222, %v3563
    %v3733 = vadd.f32 %v3223, %v3671
    %v3734 = vadd.f32 %v3224, %v3567
    %v3735 = vadd.f32 %v3225, %v3569
    %v3736 = vadd.f32 %v3226, %v3676
    %v3737 = vadd.f32 %v3227, %v3571
    %v3738 = vadd.f32 %v3228, %v3573
    %v3739 = vadd.f32 %v3229, %v3679
    %v3740 = vadd.f32 %v3230, %v3577
    %v3741 = vadd.f32 %v3231, %v3579
    %v3742 = vadd.f32 %v3232, %v3684
    %v3743 = vadd.f32 %v3233, %v3581
    %v3744 = vadd.f32 %v3234, %v3583
    %v3745 = vadd.f32 %v3235, %v3687
    %v3746 = vadd.f32 %v3236, %v3587
    %v3747 = vadd.f32 %v3237, %v3589
    %v3748 = vadd.f32 %v3238, %v3692
    %v3749 = vadd.f32 %v3239, %v3591
    %v3750 = vadd.f32 %v3240, %v3593
    %v3751 = vadd.f32 %v3241, %v3695
    %v3752 = vadd.f32 %v3242, %v3597
    %v3753 = vadd.f32 %v3243, %v3599
    %v3754 = vadd.f32 %v3244, %v3700
    %v3755 = vadd.f32 %v3245, %v3601
    %v3756 = vadd.f32 %v3246, %v3603
    %v3757 = vadd.f32 %v3247, %v3703
    %v3758 = vadd.f32 %v3248, %v3607
    %v3759 = vadd.f32 %v3249, %v3609
    %v3760 = vadd.f32 %v3250, %v3708
    %v3761 = vadd.f32 %v3251, %v3611
    %v3762 = vadd.f32 %v3252, %v3613
    %v3763 = vadd.f32 %v3253, %v3711
    %v3764 = vadd.f32 %v3254, %v3617
    %v3765 = vadd.f32 %v3255, %v3619
    %v3766 = vadd.f32 %v3256, %v3716
    %v3767 = vadd.f32 %v3257, %v3621
    %v3768 = vadd.f32 %v3258, %v3623
    %v3769 = vadd.f32 %v3259, %v3719
    %v3770 = vld [vmem:[%s2] sm:$0x7]
    %v3772 = vlaneseq
    %v3773 = vshrl.u32 %v3772, 7
    %v3774 = vsub.s32 0, %v3773
    %v3775 = vrot.slane %v3770, %v3774
    %v3776 = vlaneseq
    %v3777 = vshrl.u32 %v3776, 7
    %v3778 = vsub.s32 1, %v3777
    %v3779 = vrot.slane %v3770, %v3778
    %v3780 = vlaneseq
    %v3781 = vshrl.u32 %v3780, 7
    %v3782 = vsub.s32 2, %v3781
    %v3783 = vrot.slane %v3770, %v3782
    %v3787 = vadd.f32 %v3722, %v3775
    %v3788 = vadd.f32 %v3723, %v3779
    %v3789 = vadd.f32 %v3724, %v3783
    %v3790 = vadd.f32 %v3725, %v3775
    %v3791 = vadd.f32 %v3726, %v3779
    %v3792 = vadd.f32 %v3727, %v3783
    %v3793 = vadd.f32 %v3728, %v3775
    %v3794 = vadd.f32 %v3729, %v3779
    %v3795 = vadd.f32 %v3730, %v3783
    %v3796 = vadd.f32 %v3731, %v3775
    %v3797 = vadd.f32 %v3732, %v3779
    %v3798 = vadd.f32 %v3733, %v3783
    %v3799 = vadd.f32 %v3734, %v3775
    %v3800 = vadd.f32 %v3735, %v3779
    %v3801 = vadd.f32 %v3736, %v3783
    %v3802 = vadd.f32 %v3737, %v3775
    %v3803 = vadd.f32 %v3738, %v3779
    %v3804 = vadd.f32 %v3739, %v3783
    %v3805 = vadd.f32 %v3740, %v3775
    %v3806 = vadd.f32 %v3741, %v3779
    %v3807 = vadd.f32 %v3742, %v3783
    %v3808 = vadd.f32 %v3743, %v3775
    %v3809 = vadd.f32 %v3744, %v3779
    %v3810 = vadd.f32 %v3745, %v3783
    %v3811 = vadd.f32 %v3746, %v3775
    %v3812 = vadd.f32 %v3747, %v3779
    %v3813 = vadd.f32 %v3748, %v3783
    %v3814 = vadd.f32 %v3749, %v3775
    %v3815 = vadd.f32 %v3750, %v3779
    %v3816 = vadd.f32 %v3751, %v3783
    %v3817 = vadd.f32 %v3752, %v3775
    %v3818 = vadd.f32 %v3753, %v3779
    %v3819 = vadd.f32 %v3754, %v3783
    %v3820 = vadd.f32 %v3755, %v3775
    %v3821 = vadd.f32 %v3756, %v3779
    %v3822 = vadd.f32 %v3757, %v3783
    %v3823 = vadd.f32 %v3758, %v3775
    %v3824 = vadd.f32 %v3759, %v3779
    %v3825 = vadd.f32 %v3760, %v3783
    %v3826 = vadd.f32 %v3761, %v3775
    %v3827 = vadd.f32 %v3762, %v3779
    %v3828 = vadd.f32 %v3763, %v3783
    %v3829 = vadd.f32 %v3764, %v3775
    %v3830 = vadd.f32 %v3765, %v3779
    %v3831 = vadd.f32 %v3766, %v3783
    %v3832 = vadd.f32 %v3767, %v3775
    %v3833 = vadd.f32 %v3768, %v3779
    %v3834 = vadd.f32 %v3769, %v3783
    %v3835 = vmax.f32 %v3787, 0.0
    %v3836 = vmax.f32 %v3788, 0.0
    %v3837 = vmax.f32 %v3789, 0.0
    %v3838 = vmax.f32 %v3790, 0.0
    %v3839 = vmax.f32 %v3791, 0.0
    %v3840 = vmax.f32 %v3792, 0.0
    %v3841 = vmax.f32 %v3793, 0.0
    %v3842 = vmax.f32 %v3794, 0.0
    %v3843 = vmax.f32 %v3795, 0.0
    %v3844 = vmax.f32 %v3796, 0.0
    %v3845 = vmax.f32 %v3797, 0.0
    %v3846 = vmax.f32 %v3798, 0.0
    %v3847 = vmax.f32 %v3799, 0.0
    %v3848 = vmax.f32 %v3800, 0.0
    %v3849 = vmax.f32 %v3801, 0.0
    %v3850 = vmax.f32 %v3802, 0.0
    %v3851 = vmax.f32 %v3803, 0.0
    %v3852 = vmax.f32 %v3804, 0.0
    %v3853 = vmax.f32 %v3805, 0.0
    %v3854 = vmax.f32 %v3806, 0.0
    %v3855 = vmax.f32 %v3807, 0.0
    %v3856 = vmax.f32 %v3808, 0.0
    %v3857 = vmax.f32 %v3809, 0.0
    %v3858 = vmax.f32 %v3810, 0.0
    %v3859 = vmax.f32 %v3811, 0.0
    %v3860 = vmax.f32 %v3812, 0.0
    %v3861 = vmax.f32 %v3813, 0.0
    %v3862 = vmax.f32 %v3814, 0.0
    %v3863 = vmax.f32 %v3815, 0.0
    %v3864 = vmax.f32 %v3816, 0.0
    %v3865 = vmax.f32 %v3817, 0.0
    %v3866 = vmax.f32 %v3818, 0.0
    %v3867 = vmax.f32 %v3819, 0.0
    %v3868 = vmax.f32 %v3820, 0.0
    %v3869 = vmax.f32 %v3821, 0.0
    %v3870 = vmax.f32 %v3822, 0.0
    %v3871 = vmax.f32 %v3823, 0.0
    %v3872 = vmax.f32 %v3824, 0.0
    %v3873 = vmax.f32 %v3825, 0.0
    %v3874 = vmax.f32 %v3826, 0.0
    %v3875 = vmax.f32 %v3827, 0.0
    %v3876 = vmax.f32 %v3828, 0.0
    %v3877 = vmax.f32 %v3829, 0.0
    %v3878 = vmax.f32 %v3830, 0.0
    %v3879 = vmax.f32 %v3831, 0.0
    %v3880 = vmax.f32 %v3832, 0.0
    %v3881 = vmax.f32 %v3833, 0.0
    %v3882 = vmax.f32 %v3834, 0.0
    %v3883 = vld [vmem:[#allocation7] sm:$0xff]
    %v3884 = vld [vmem:[#allocation7 + $0x8] sm:$0xff]
    %v3885 = vld [vmem:[#allocation7 + $0x10] sm:$0xff]
    %v3886 = vld [vmem:[#allocation7 + $0x18] sm:$0xff]
    %v3887 = vld [vmem:[#allocation7 + $0x20] sm:$0xff]
    %v3888 = vld [vmem:[#allocation7 + $0x28] sm:$0xff]
    %v3889 = vmul.f32 %v3835, %v3883
    %v3890 = vmul.f32 %v3836, %v3884
    %v3891 = vmul.f32 %v3837, %v3885
    %v3892 = vmul.f32 %v3838, %v3886
    %v3893 = vmul.f32 %v3839, %v3887
    %v3894 = vmul.f32 %v3840, %v3888
    %v3895 = vmul.f32 %v3841, %v3883
    %v3896 = vmul.f32 %v3842, %v3884
    %v3897 = vmul.f32 %v3843, %v3885
    %v3898 = vmul.f32 %v3844, %v3886
    %v3899 = vmul.f32 %v3845, %v3887
    %v3900 = vmul.f32 %v3846, %v3888
    %v3901 = vmul.f32 %v3847, %v3883
    %v3902 = vmul.f32 %v3848, %v3884
    %v3903 = vmul.f32 %v3849, %v3885
    %v3904 = vmul.f32 %v3850, %v3886
    %v3905 = vmul.f32 %v3851, %v3887
    %v3906 = vmul.f32 %v3852, %v3888
    %v3907 = vmul.f32 %v3853, %v3883
    %v3908 = vmul.f32 %v3854, %v3884
    %v3909 = vmul.f32 %v3855, %v3885
    %v3910 = vmul.f32 %v3856, %v3886
    %v3911 = vmul.f32 %v3857, %v3887
    %v3912 = vmul.f32 %v3858, %v3888
    %v3913 = vmul.f32 %v3859, %v3883
    %v3914 = vmul.f32 %v3860, %v3884
    %v3915 = vmul.f32 %v3861, %v3885
    %v3916 = vmul.f32 %v3862, %v3886
    %v3917 = vmul.f32 %v3863, %v3887
    %v3918 = vmul.f32 %v3864, %v3888
    %v3919 = vmul.f32 %v3865, %v3883
    %v3920 = vmul.f32 %v3866, %v3884
    %v3921 = vmul.f32 %v3867, %v3885
    %v3922 = vmul.f32 %v3868, %v3886
    %v3923 = vmul.f32 %v3869, %v3887
    %v3924 = vmul.f32 %v3870, %v3888
    %v3925 = vmul.f32 %v3871, %v3883
    %v3926 = vmul.f32 %v3872, %v3884
    %v3927 = vmul.f32 %v3873, %v3885
    %v3928 = vmul.f32 %v3874, %v3886
    %v3929 = vmul.f32 %v3875, %v3887
    %v3930 = vmul.f32 %v3876, %v3888
    %v3931 = vmul.f32 %v3877, %v3883
    %v3932 = vmul.f32 %v3878, %v3884
    %v3933 = vmul.f32 %v3879, %v3885
    %v3934 = vmul.f32 %v3880, %v3886
    %v3935 = vmul.f32 %v3881, %v3887
    %v3936 = vmul.f32 %v3882, %v3888
    %v3937 = vmax.f32 %v3889, %v3892
    %v3938 = vrot.slane %v3937, 4
    %v3939 = vmax.f32 %v3937, %v3938
    %v3940 = vrot.slane %v3939, 2
    %v3941 = vmax.f32 %v3939, %v3940
    %v3942 = vrot.slane %v3941, 1
    %v3943 = vmax.f32 %v3941, %v3942
    %v3944 = vmax.f32 %v3890, %v3893
    %v3945 = vrot.slane %v3944, 4
    %v3946 = vmax.f32 %v3944, %v3945
    %v3947 = vrot.slane %v3946, 2
    %v3948 = vmax.f32 %v3946, %v3947
    %v3949 = vrot.slane %v3948, 1
    %v3950 = vmax.f32 %v3948, %v3949
    %v3951 = vmax.f32 %v3891, %v3894
    %v3952 = vrot.slane %v3951, 4
    %v3953 = vmax.f32 %v3951, %v3952
    %v3954 = vrot.slane %v3953, 2
    %v3955 = vmax.f32 %v3953, %v3954
    %v3956 = vrot.slane %v3955, 1
    %v3957 = vmax.f32 %v3955, %v3956
    %v3958 = vmax.f32 %v3895, %v3898
    %v3959 = vrot.slane %v3958, 4
    %v3960 = vmax.f32 %v3958, %v3959
    %v3961 = vrot.slane %v3960, 2
    %v3962 = vmax.f32 %v3960, %v3961
    %v3963 = vrot.slane %v3962, 1
    %v3964 = vmax.f32 %v3962, %v3963
    %v3965 = vmax.f32 %v3896, %v3899
    %v3966 = vrot.slane %v3965, 4
    %v3967 = vmax.f32 %v3965, %v3966
    %v3968 = vrot.slane %v3967, 2
    %v3969 = vmax.f32 %v3967, %v3968
    %v3970 = vrot.slane %v3969, 1
    %v3971 = vmax.f32 %v3969, %v3970
    %v3972 = vmax.f32 %v3897, %v3900
    %v3973 = vrot.slane %v3972, 4
    %v3974 = vmax.f32 %v3972, %v3973
    %v3975 = vrot.slane %v3974, 2
    %v3976 = vmax.f32 %v3974, %v3975
    %v3977 = vrot.slane %v3976, 1
    %v3978 = vmax.f32 %v3976, %v3977
    %v3979 = vmax.f32 %v3901, %v3904
    %v3980 = vrot.slane %v3979, 4
    %v3981 = vmax.f32 %v3979, %v3980
    %v3982 = vrot.slane %v3981, 2
    %v3983 = vmax.f32 %v3981, %v3982
    %v3984 = vrot.slane %v3983, 1
    %v3985 = vmax.f32 %v3983, %v3984
    %v3986 = vmax.f32 %v3902, %v3905
    %v3987 = vrot.slane %v3986, 4
    %v3988 = vmax.f32 %v3986, %v3987
    %v3989 = vrot.slane %v3988, 2
    %v3990 = vmax.f32 %v3988, %v3989
    %v3991 = vrot.slane %v3990, 1
    %v3992 = vmax.f32 %v3990, %v3991
    %v3993 = vmax.f32 %v3903, %v3906
    %v3994 = vrot.slane %v3993, 4
    %v3995 = vmax.f32 %v3993, %v3994
    %v3996 = vrot.slane %v3995, 2
    %v3997 = vmax.f32 %v3995, %v3996
    %v3998 = vrot.slane %v3997, 1
    %v3999 = vmax.f32 %v3997, %v3998
    %v4000 = vmax.f32 %v3907, %v3910
    %v4001 = vrot.slane %v4000, 4
    %v4002 = vmax.f32 %v4000, %v4001
    %v4003 = vrot.slane %v4002, 2
    %v4004 = vmax.f32 %v4002, %v4003
    %v4005 = vrot.slane %v4004, 1
    %v4006 = vmax.f32 %v4004, %v4005
    %v4007 = vmax.f32 %v3908, %v3911
    %v4008 = vrot.slane %v4007, 4
    %v4009 = vmax.f32 %v4007, %v4008
    %v4010 = vrot.slane %v4009, 2
    %v4011 = vmax.f32 %v4009, %v4010
    %v4012 = vrot.slane %v4011, 1
    %v4013 = vmax.f32 %v4011, %v4012
    %v4014 = vmax.f32 %v3909, %v3912
    %v4015 = vrot.slane %v4014, 4
    %v4016 = vmax.f32 %v4014, %v4015
    %v4017 = vrot.slane %v4016, 2
    %v4018 = vmax.f32 %v4016, %v4017
    %v4019 = vrot.slane %v4018, 1
    %v4020 = vmax.f32 %v4018, %v4019
    %v4021 = vmax.f32 %v3913, %v3916
    %v4022 = vrot.slane %v4021, 4
    %v4023 = vmax.f32 %v4021, %v4022
    %v4024 = vrot.slane %v4023, 2
    %v4025 = vmax.f32 %v4023, %v4024
    %v4026 = vrot.slane %v4025, 1
    %v4027 = vmax.f32 %v4025, %v4026
    %v4028 = vmax.f32 %v3914, %v3917
    %v4029 = vrot.slane %v4028, 4
    %v4030 = vmax.f32 %v4028, %v4029
    %v4031 = vrot.slane %v4030, 2
    %v4032 = vmax.f32 %v4030, %v4031
    %v4033 = vrot.slane %v4032, 1
    %v4034 = vmax.f32 %v4032, %v4033
    %v4035 = vmax.f32 %v3915, %v3918
    %v4036 = vrot.slane %v4035, 4
    %v4037 = vmax.f32 %v4035, %v4036
    %v4038 = vrot.slane %v4037, 2
    %v4039 = vmax.f32 %v4037, %v4038
    %v4040 = vrot.slane %v4039, 1
    %v4041 = vmax.f32 %v4039, %v4040
    %v4042 = vmax.f32 %v3919, %v3922
    %v4043 = vrot.slane %v4042, 4
    %v4044 = vmax.f32 %v4042, %v4043
    %v4045 = vrot.slane %v4044, 2
    %v4046 = vmax.f32 %v4044, %v4045
    %v4047 = vrot.slane %v4046, 1
    %v4048 = vmax.f32 %v4046, %v4047
    %v4049 = vmax.f32 %v3920, %v3923
    %v4050 = vrot.slane %v4049, 4
    %v4051 = vmax.f32 %v4049, %v4050
    %v4052 = vrot.slane %v4051, 2
    %v4053 = vmax.f32 %v4051, %v4052
    %v4054 = vrot.slane %v4053, 1
    %v4055 = vmax.f32 %v4053, %v4054
    %v4056 = vmax.f32 %v3921, %v3924
    %v4057 = vrot.slane %v4056, 4
    %v4058 = vmax.f32 %v4056, %v4057
    %v4059 = vrot.slane %v4058, 2
    %v4060 = vmax.f32 %v4058, %v4059
    %v4061 = vrot.slane %v4060, 1
    %v4062 = vmax.f32 %v4060, %v4061
    %v4063 = vmax.f32 %v3925, %v3928
    %v4064 = vrot.slane %v4063, 4
    %v4065 = vmax.f32 %v4063, %v4064
    %v4066 = vrot.slane %v4065, 2
    %v4067 = vmax.f32 %v4065, %v4066
    %v4068 = vrot.slane %v4067, 1
    %v4069 = vmax.f32 %v4067, %v4068
    %v4070 = vmax.f32 %v3926, %v3929
    %v4071 = vrot.slane %v4070, 4
    %v4072 = vmax.f32 %v4070, %v4071
    %v4073 = vrot.slane %v4072, 2
    %v4074 = vmax.f32 %v4072, %v4073
    %v4075 = vrot.slane %v4074, 1
    %v4076 = vmax.f32 %v4074, %v4075
    %v4077 = vmax.f32 %v3927, %v3930
    %v4078 = vrot.slane %v4077, 4
    %v4079 = vmax.f32 %v4077, %v4078
    %v4080 = vrot.slane %v4079, 2
    %v4081 = vmax.f32 %v4079, %v4080
    %v4082 = vrot.slane %v4081, 1
    %v4083 = vmax.f32 %v4081, %v4082
    %v4084 = vmax.f32 %v3931, %v3934
    %v4085 = vrot.slane %v4084, 4
    %v4086 = vmax.f32 %v4084, %v4085
    %v4087 = vrot.slane %v4086, 2
    %v4088 = vmax.f32 %v4086, %v4087
    %v4089 = vrot.slane %v4088, 1
    %v4090 = vmax.f32 %v4088, %v4089
    %v4091 = vmax.f32 %v3932, %v3935
    %v4092 = vrot.slane %v4091, 4
    %v4093 = vmax.f32 %v4091, %v4092
    %v4094 = vrot.slane %v4093, 2
    %v4095 = vmax.f32 %v4093, %v4094
    %v4096 = vrot.slane %v4095, 1
    %v4097 = vmax.f32 %v4095, %v4096
    %v4098 = vmax.f32 %v3933, %v3936
    %v4099 = vrot.slane %v4098, 4
    %v4100 = vmax.f32 %v4098, %v4099
    %v4101 = vrot.slane %v4100, 2
    %v4102 = vmax.f32 %v4100, %v4101
    %v4103 = vrot.slane %v4102, 1
    %v4104 = vmax.f32 %v4102, %v4103
    %vm4129 = vcmask 1041409
    %v4130 = vsel %vm4129, %v3964, %v3943
    %vm4131 = vcmask 1042434
    %v4132 = vsel %vm4131, %v3985, %v4130
    %vm4133 = vcmask 1043459
    %v4134 = vsel %vm4133, %v4006, %v4132
    %vm4135 = vcmask 1044484
    %v4136 = vsel %vm4135, %v4027, %v4134
    %vm4137 = vcmask 1045509
    %v4138 = vsel %vm4137, %v4048, %v4136
    %vm4139 = vcmask 1046534
    %v4140 = vsel %vm4139, %v4069, %v4138
    %vm4141 = vcmask 1047559
    %v4142 = vsel %vm4141, %v4090, %v4140
    %v4143 = vsel %vm4129, %v3971, %v3950
    %v4144 = vsel %vm4131, %v3992, %v4143
    %v4145 = vsel %vm4133, %v4013, %v4144
    %v4146 = vsel %vm4135, %v4034, %v4145
    %v4147 = vsel %vm4137, %v4055, %v4146
    %v4148 = vsel %vm4139, %v4076, %v4147
    %v4149 = vsel %vm4141, %v4097, %v4148
    %v4150 = vsel %vm4129, %v3978, %v3957
    %v4151 = vsel %vm4131, %v3999, %v4150
    %v4152 = vsel %vm4133, %v4020, %v4151
    %v4153 = vsel %vm4135, %v4041, %v4152
    %v4154 = vsel %vm4137, %v4062, %v4153
    %v4155 = vsel %vm4139, %v4083, %v4154
    %v4156 = vsel %vm4141, %v4104, %v4155
    %4160 = vst [vmem:[#allocation8] sm:$0xff] %v4142
    %4161 = vst [vmem:[#allocation8 + $0x8] sm:$0xff] %v4149
    %4162 = vst [vmem:[#allocation8 + $0x10] sm:$0xff] %v4156
    // Predicated region
    $region30: #{tpu_custom_call.1} parent=1 // pred_check
      _
    $region31: #{tpu_custom_call.1} parent=1 // pred_check_branch
      %4164 = sbr.rel (0) target = $region33
    $region32: #{tpu_custom_call.1} parent=1 // pred_region
      %s4166 = ssub.s32 384, 384
      %4167 = vsyncadd [#allocation4], %s4166
      %s4169 = sshll.u32 [#allocation8], 4
      %s4170 = int_to_ptr.vmem [resolvable:$true] %s4169
      %4172 = dma.vmem_to_hbm [thread:$0]  %s4170, 384, %s4, [#allocation4]
    $region33: #{tpu_custom_call.1} parent=1 // pred_fallthru
      _
    // Predicated region
    $region34: #{tpu_custom_call.1} parent=1 // pred_check
      _
    $region35: #{tpu_custom_call.1} parent=1 // pred_check_branch
      %4174 = sbr.rel (0) target = $region37
    $region36: #{tpu_custom_call.1} parent=1 // pred_region
      %4175 = dma.done [#allocation4], 384
    $region37: #{tpu_custom_call.1} parent=1 // pred_fallthru
      _
    %4176 = vsyncpa [#allocation3], 1
    %4177 = vsyncpa [#allocation6], 1
    %4178 = vsyncpa [#allocation4], 1

</llo_original>
